<compile_context>
chip_gen: v7x
topology: tpu7x:2x2x1
jax: 0.10.0
libtpu: 0.0.40
codegen_flags: <defaults>
</compile_context>

<pallas_src>
import jax
import jax.numpy as jnp
from jax.experimental import pallas as pl
from jax.experimental.pallas import tpu as pltpu

Y_DIM = 10      # y_dimension is undefined in the source module; fixed here.
HIDDEN = 128


# ------------------------------ fused kernel ------------------------------

def _cnn_lstm_kernel(x_ref, w1_ref, b1_ref, w2_ref, b2_ref,
                     wih0_ref, whh0_ref, bl0_ref,
                     wih1_ref, whh1_ref, bl1_ref,
                     wfc_ref, bfc_ref,
                     out_ref, xp_scr, h0_scr):
    T, tb, _ = x_ref.shape              # T = LSTM sequence length (static)
    H = whh0_ref.shape[0]               # 128

    # ---------------- backbone (all lane-dense) ----------------
    # x_ref[j, b, :] = x[b, 4j : 4j+8]  (8-sample window per output position j)
    x8 = x_ref[...].reshape(T * tb, 8)                         # (T*tb, 8) f32

    # conv1 at the 6 needed positions as ONE spread matmul:
    #   lanes   0:128 = [c(4j)   | c(4j+2) | c(4j+4) | 0]   (pool parity A)
    #   lanes 128:256 = [c(4j+1) | c(4j+3) | c(4j+5) | 0]   (pool parity B)
    cc = jnp.dot(x8, w1_ref[...], preferred_element_type=jnp.float32)   # (T*tb, 256)
    # MaxPool(2,2) + bias + ReLU  ->  slab = [h1[2j] | h1[2j+1] | h1[2j+2] | 0]
    slab = jnp.maximum(jnp.maximum(cc[:, :128], cc[:, 128:]) + b1_ref[...], 0.0)

    # conv2 (Cin=32, K=2) for both pooling parities as ONE bf16 128x128 matmul.
    z = jnp.dot(slab.astype(jnp.bfloat16), w2_ref[...],
                preferred_element_type=jnp.float32)            # (T*tb, 128)
    seq = jnp.maximum(z[:, :64], z[:, 64:]) + b2_ref[...]      # (T*tb, 64), time-major

    # ---------------- 2-layer LSTM + FC ----------------
    def gates(g, c_prev):
        i = jax.nn.sigmoid(g[:, 0 * H:1 * H])
        f = jax.nn.sigmoid(g[:, 1 * H:2 * H])
        gg = jnp.tanh(g[:, 2 * H:3 * H])
        o = jax.nn.sigmoid(g[:, 3 * H:4 * H])
        c = f * c_prev + i * gg
        return o * jnp.tanh(c), c

    unroll = T if T <= 8 else 8
    h_zero = jnp.zeros((tb, H), jnp.float32)
    c_zero = jnp.zeros((tb, H), jnp.float32)

    # layer 0: hoisted input projection (one bf16 matmul for all timesteps, bias folded)
    xp_scr[...] = (jnp.dot(seq.astype(jnp.bfloat16), wih0_ref[...],
                           preferred_element_type=jnp.float32)
                   + bl0_ref[...]).reshape(T, tb, 4 * H)
    whh0 = whh0_ref[...]                                        # (H, 4H) bf16, loaded once

    def step0(t, carry):
        h, c = carry
        g = xp_scr[t] + jnp.dot(h.astype(jnp.bfloat16), whh0,
                                preferred_element_type=jnp.float32)
        h, c = gates(g, c)
        h0_scr[t] = h.astype(jnp.bfloat16)        # consumed as bf16 LHS below
        return h, c

    _ = jax.lax.fori_loop(0, T, step0, (h_zero, c_zero), unroll=unroll)

    # layer 1: hoisted input projection from the stored bf16 layer-0 hidden sequence
    xp_scr[...] = (jnp.dot(h0_scr[...].reshape(T * tb, H), wih1_ref[...],
                           preferred_element_type=jnp.float32)
                   + bl1_ref[...]).reshape(T, tb, 4 * H)
    whh1 = whh1_ref[...]

    def step1(t, carry):
        h, c = carry
        g = xp_scr[t] + jnp.dot(h.astype(jnp.bfloat16), whh1,
                                preferred_element_type=jnp.float32)
        return gates(g, c)

    h, _ = jax.lax.fori_loop(0, T, step1, (h_zero, c_zero), unroll=unroll)
    # TODO(synk): optional cross-layer software pipelining of the two recurrences
    # (helps only when the batch tile is tiny); skipped for robustness.

    # FC head, lane-padded to 128 columns (lane-dense store; sliced in the wrapper)
    out_ref[...] = (jnp.dot(h.astype(jnp.bfloat16), wfc_ref[...],
                            preferred_element_type=jnp.float32) + bfc_ref[...])


# ------------------------------ wrapper ------------------------------

def _round_up(v, m):
    return ((v + m - 1) // m) * m


def cnn_lstm_forward(x, p):
    """x: (B, 1, L) float32 — the PyTorch NCL layout."""
    B, _, L = x.shape
    T1 = L - 1                      # conv1 output length
    Tp1 = (T1 - 2) // 2 + 1         # pool1
    T2 = Tp1 - 1                    # conv2
    T = (T2 - 2) // 2 + 1           # pool2 == LSTM sequence length
    assert T >= 1, "input too short for the backbone"
    assert L >= 4 * T + 3           # last real sample the backbone reads is x[4T+2]

    # batch tile: as large as possible (MXU row occupancy), multiple of 8, capped at 128;
    # if that yields a single grid step, split it so v7x's two TensorCores both get work.
    b8 = _round_up(B, 8)
    tb = min(128, b8)
    if b8 // tb < 2 and tb >= 32:
        tb = _round_up(tb // 2, 8)
    b_pad = _round_up(B, tb)
    nb = b_pad // tb

    # 8-sample windows per output position (2x duplication of a tiny signal, but the
    # kernel-side conv stage becomes a single aligned matmul with no relayouts).
    xs = x[:, 0, :]                                             # (B, L)
    pad_len = max(0, 4 * T + 4 - L)
    if pad_len:
        xs = jnp.pad(xs, ((0, 0), (0, pad_len)))                # padded sample never used
    xs = jnp.pad(xs, ((0, b_pad - B), (0, 0)))                  # (b_pad, >=4T+4)
    win = 4 * jnp.arange(T)[:, None] + jnp.arange(8)[None, :]   # (T, 8)
    xw = jnp.transpose(xs[:, win], (1, 0, 2))                   # (T, b_pad, 8)

    def const(shape):
        return pl.BlockSpec(shape, lambda i, s=shape: (0,) * len(s))

    grid_spec = pltpu.PrefetchScalarGridSpec(
        num_scalar_prefetch=0,
        grid=(nb,),
        in_specs=[
            pl.BlockSpec((T, tb, 8), lambda i: (0, i, 0)),
            const((8, 256)), const((1, 128)),
            const((128, 128)), const((1, 64)),
            const((64, 4 * HIDDEN)), const((HIDDEN, 4 * HIDDEN)), const((1, 4 * HIDDEN)),
            const((HIDDEN, 4 * HIDDEN)), const((HIDDEN, 4 * HIDDEN)), const((1, 4 * HIDDEN)),
            const((HIDDEN, 128)), const((1, 128)),
        ],
        out_specs=pl.BlockSpec((tb, 128), lambda i: (i, 0)),
        scratch_shapes=[
            pltpu.VMEM((T, tb, 4 * HIDDEN), jnp.float32),   # hoisted input projections
            pltpu.VMEM((T, tb, HIDDEN), jnp.bfloat16),      # layer-0 hidden sequence
        ],
    )
    out = pl.pallas_call(
        _cnn_lstm_kernel,
        out_shape=jax.ShapeDtypeStruct((b_pad, 128), jnp.float32),
        grid_spec=grid_spec,
        compiler_params=pltpu.CompilerParams(
            dimension_semantics=("parallel",),
            vmem_limit_bytes=48 * 1024 * 1024),
    )(xw, p["w1"], p["b1"], p["w2"], p["b2"],
      p["wih0"], p["whh0"], p["bl0"],
      p["wih1"], p["whh1"], p["bl1"],
      p["wfc"], p["bfc"])
    return out[:B, :Y_DIM]


# ------------------------------ parameters ------------------------------

def init_params(key):
    ks = jax.random.split(key, 14)

    def u(k, shape, fan_in):
        bound = 1.0 / float(fan_in) ** 0.5
        return jax.random.uniform(k, shape, jnp.float32, -bound, bound)

    # PyTorch-shaped parameters (deterministic synthetic init)
    w1 = u(ks[0], (32, 1, 2), 2)              # conv1.weight (Cout, Cin, K)
    b1 = u(ks[1], (32,), 2)
    w2 = u(ks[2], (64, 32, 2), 64)
    b2 = u(ks[3], (64,), 64)
    wih0 = u(ks[4], (4 * HIDDEN, 64), HIDDEN)
    whh0 = u(ks[5], (4 * HIDDEN, HIDDEN), HIDDEN)
    bih0 = u(ks[6], (4 * HIDDEN,), HIDDEN)
    bhh0 = u(ks[7], (4 * HIDDEN,), HIDDEN)
    wih1 = u(ks[8], (4 * HIDDEN, HIDDEN), HIDDEN)
    whh1 = u(ks[9], (4 * HIDDEN, HIDDEN), HIDDEN)
    bih1 = u(ks[10], (4 * HIDDEN,), HIDDEN)
    bhh1 = u(ks[11], (4 * HIDDEN,), HIDDEN)
    wfc = u(ks[12], (Y_DIM, HIDDEN), HIDDEN)
    bfc = u(ks[13], (Y_DIM,), HIDDEN)

    torch_p = dict(w1=w1, b1=b1, w2=w2, b2=b2,
                   wih0=wih0, whh0=whh0, bih0=bih0, bhh0=bhh0,
                   wih1=wih1, whh1=whh1, bih1=bih1, bhh1=bhh1,
                   wfc=wfc, bfc=bfc)

    # ---- kernel-layout parameters ----
    # conv1 spread weight (8, 256): window cols a0..a7 = x[4j..4j+7]; cc lanes:
    #   0:128   = [a0*w1a+a1*w1b | a2*w1a+a3*w1b | a4*w1a+a5*w1b | 0]   (parity A)
    #   128:256 = [a1*w1a+a2*w1b | a3*w1a+a4*w1b | a5*w1a+a6*w1b | 0]   (parity B)
    w1a = w1[:, 0, 0]
    w1b = w1[:, 0, 1]
    w1f = jnp.zeros((8, 256), jnp.float32)
    w1f = w1f.at[0, 0:32].set(w1a)
    w1f = w1f.at[1, 0:32].set(w1b).at[1, 128:160].set(w1a)
    w1f = w1f.at[2, 32:64].set(w1a).at[2, 128:160].set(w1b)
    w1f = w1f.at[3, 32:64].set(w1b).at[3, 160:192].set(w1a)
    w1f = w1f.at[4, 64:96].set(w1a).at[4, 160:192].set(w1b)
    w1f = w1f.at[5, 64:96].set(w1b).at[5, 192:224].set(w1a)
    w1f = w1f.at[6, 192:224].set(w1b)
    b1t = jnp.concatenate([b1, b1, b1, jnp.zeros((32,), jnp.float32)]).reshape(1, 128)

    # fused conv2 weight (128, 128) bf16: slab = [h_e | h_m | h_o | 0]
    #   cols  0:64  -> even conv2 window [h_e|h_m];  cols 64:128 -> odd window [h_m|h_o]
    tap0 = w2[:, :, 0].T        # (32, 64)
    tap1 = w2[:, :, 1].T
    w2f = jnp.zeros((128, 128), jnp.float32)
    w2f = w2f.at[0:32, 0:64].set(tap0).at[32:64, 0:64].set(tap1)
    w2f = w2f.at[32:64, 64:128].set(tap0).at[64:96, 64:128].set(tap1)

    # FC weight/bias lane-padded to 128 output columns
    wfc_pad = jnp.zeros((HIDDEN, 128), jnp.float32).at[:, :Y_DIM].set(wfc.T)
    bfc_pad = jnp.zeros((1, 128), jnp.float32).at[0, :Y_DIM].set(bfc)

    kern_p = dict(
        w1=w1f, b1=b1t,
        w2=w2f.astype(jnp.bfloat16), b2=b2.reshape(1, 64),
        wih0=wih0.T.astype(jnp.bfloat16), whh0=whh0.T.astype(jnp.bfloat16),
        bl0=(bih0 + bhh0).reshape(1, -1),
        wih1=wih1.T.astype(jnp.bfloat16), whh1=whh1.T.astype(jnp.bfloat16),
        bl1=(bih1 + bhh1).reshape(1, -1),
        wfc=wfc_pad.astype(jnp.bfloat16), bfc=bfc_pad,
    )
    return torch_p, kern_p


# --------------------------- pure-JAX reference ---------------------------

def reference_forward(x, p):
    def conv1d(x, w, b):                       # x (B, Cin, L), w (Cout, Cin, K)
        K = w.shape[2]
        T = x.shape[2] - K + 1
        cols = jnp.stack([x[:, :, k:k + T] for k in range(K)], axis=-1)
        return jnp.einsum('bctk,ock->bot', cols, w) + b[None, :, None]

    def maxpool1d(x, k=2, s=2):                # x (B, C, L)
        T = (x.shape[2] - k) // s + 1
        win = jnp.stack([x[:, :, j:j + s * T:s] for j in range(k)], axis=-1)
        return jnp.max(win, axis=-1)

    h = conv1d(x, p['w1'], p['b1'])
    h = maxpool1d(h)
    h = jnp.maximum(h, 0.0)
    h = conv1d(h, p['w2'], p['b2'])
    h = maxpool1d(h)
    seq = jnp.transpose(h, (0, 2, 1))          # (B, T, 64)

    B, T, _ = seq.shape
    H = HIDDEN

    def lstm_layer(seq, wih, whh, bih, bhh):
        h = jnp.zeros((B, H), jnp.float32)
        c = jnp.zeros((B, H), jnp.float32)
        outs = []
        for t in range(T):
            g = seq[:, t, :] @ wih.T + bih + h @ whh.T + bhh
            i = jax.nn.sigmoid(g[:, 0:H])
            f = jax.nn.sigmoid(g[:, H:2 * H])
            gg = jnp.tanh(g[:, 2 * H:3 * H])
            o = jax.nn.sigmoid(g[:, 3 * H:4 * H])
            c = f * c + i * gg
            h = o * jnp.tanh(c)
            outs.append(h)
        return jnp.stack(outs, axis=1)

    s1 = lstm_layer(seq, p['wih0'], p['whh0'], p['bih0'], p['bhh0'])
    s2 = lstm_layer(s1, p['wih1'], p['whh1'], p['bih1'], p['bhh1'])
    return s2[:, -1, :] @ p['wfc'].T + p['bfc']


# ---------------------------------- main ----------------------------------

if __name__ == "__main__":
    key = jax.random.PRNGKey(0)
    pkey, xkey = jax.random.split(key)
    torch_p, kern_p = init_params(pkey)

    B, L = 2, 32                               # (B, 1, L) -> LSTM sequence length 7
    x = jax.random.normal(xkey, (B, 1, L), jnp.float32)

    fwd = jax.jit(cnn_lstm_forward)
    out = jax.block_until_ready(fwd(x, kern_p))
    assert out.shape == (B, Y_DIM), out.shape

    ref = reference_forward(x, torch_p)
    # conv2 / LSTM / FC matmuls use bf16 operands (f32 accumulation) -> loosened tolerance.
    if not bool(jnp.allclose(out, ref, atol=5e-2, rtol=5e-2)):
        raise AssertionError(
            f"Pallas output mismatch, max abs diff = {float(jnp.max(jnp.abs(out - ref)))}")

    print("KERNEL_OK")
</pallas_src>

<mosaic_0001>
module attributes {stable_mosaic.version = 11 : i64} {
  func.func @_cnn_lstm_kernel(%arg0: i32, %arg1: memref<7x8x8xf32, #tpu.memory_space<vmem>>, %arg2: memref<8x256xf32, #tpu.memory_space<vmem>>, %arg3: memref<1x128xf32, #tpu.memory_space<vmem>>, %arg4: memref<128x128xbf16, #tpu.memory_space<vmem>>, %arg5: memref<1x64xf32, #tpu.memory_space<vmem>>, %arg6: memref<64x512xbf16, #tpu.memory_space<vmem>>, %arg7: memref<128x512xbf16, #tpu.memory_space<vmem>>, %arg8: memref<1x512xf32, #tpu.memory_space<vmem>>, %arg9: memref<128x512xbf16, #tpu.memory_space<vmem>>, %arg10: memref<128x512xbf16, #tpu.memory_space<vmem>>, %arg11: memref<1x512xf32, #tpu.memory_space<vmem>>, %arg12: memref<128x128xbf16, #tpu.memory_space<vmem>>, %arg13: memref<1x128xf32, #tpu.memory_space<vmem>>, %arg14: memref<8x128xf32, #tpu.memory_space<vmem>>, %arg15: memref<7x8x512xf32, #tpu.memory_space<vmem>>, %arg16: memref<7x8x128xbf16, #tpu.memory_space<vmem>>) attributes {dimension_semantics = [#tpu.dimension_semantics<parallel>], iteration_bounds = array<i64: 1>, scalar_prefetch = 0 : i64, scratch_operands = 2 : i64, tpu.core_type = #tpu.core_type<tc>, window_params = [{transform_indices = @transform_0, window_bounds = array<i64: 7, 8, 8>}, {pipeline_mode = #tpu.pipeline_mode<synchronous>, transform_indices = @transform_1, window_bounds = array<i64: 8, 256>}, {pipeline_mode = #tpu.pipeline_mode<synchronous>, transform_indices = @transform_2, window_bounds = array<i64: 1, 128>}, {pipeline_mode = #tpu.pipeline_mode<synchronous>, transform_indices = @transform_3, window_bounds = array<i64: 128, 128>}, {pipeline_mode = #tpu.pipeline_mode<synchronous>, transform_indices = @transform_4, window_bounds = array<i64: 1, 64>}, {pipeline_mode = #tpu.pipeline_mode<synchronous>, transform_indices = @transform_5, window_bounds = array<i64: 64, 512>}, {pipeline_mode = #tpu.pipeline_mode<synchronous>, transform_indices = @transform_6, window_bounds = array<i64: 128, 512>}, {pipeline_mode = #tpu.pipeline_mode<synchronous>, transform_indices = @transform_7, window_bounds = array<i64: 1, 512>}, {pipeline_mode = #tpu.pipeline_mode<synchronous>, transform_indices = @transform_8, window_bounds = array<i64: 128, 512>}, {pipeline_mode = #tpu.pipeline_mode<synchronous>, transform_indices = @transform_9, window_bounds = array<i64: 128, 512>}, {pipeline_mode = #tpu.pipeline_mode<synchronous>, transform_indices = @transform_10, window_bounds = array<i64: 1, 512>}, {pipeline_mode = #tpu.pipeline_mode<synchronous>, transform_indices = @transform_11, window_bounds = array<i64: 128, 128>}, {pipeline_mode = #tpu.pipeline_mode<synchronous>, transform_indices = @transform_12, window_bounds = array<i64: 1, 128>}, {transform_indices = @transform_13, window_bounds = array<i64: 8, 128>}]} {
    %c0 = arith.constant 0 : index
    %c0_0 = arith.constant 0 : index
    %c0_1 = arith.constant 0 : index
    %0 = vector.load %arg1[%c0, %c0_0, %c0_1] : memref<7x8x8xf32, #tpu.memory_space<vmem>>, vector<7x8x8xf32>
    %1 = vector.shape_cast %0 : vector<7x8x8xf32> to vector<56x8xf32>
    %c0_2 = arith.constant 0 : index
    %c0_3 = arith.constant 0 : index
    %2 = vector.load %arg2[%c0_2, %c0_3] : memref<8x256xf32, #tpu.memory_space<vmem>>, vector<8x256xf32>
    %cst = arith.constant dense<0.000000e+00> : vector<56x256xf32>
    %3 = tpu.matmul %1, %2, %cst {dimension_numbers = #tpu.dot_dimension_numbers<[1], [0], [0], [1], [0, 0, 1, 1], [], []>} : vector<56x8xf32>, vector<8x256xf32>, vector<56x256xf32> -> vector<56x256xf32>
    %4 = vector.extract_strided_slice %3 {offsets = [0, 0], sizes = [56, 128], strides = [1, 1]} : vector<56x256xf32> to vector<56x128xf32>
    %5 = vector.extract_strided_slice %3 {offsets = [0, 128], sizes = [56, 128], strides = [1, 1]} : vector<56x256xf32> to vector<56x128xf32>
    %6 = arith.maximumf %4, %5 : vector<56x128xf32>
    %c0_4 = arith.constant 0 : index
    %c0_5 = arith.constant 0 : index
    %7 = vector.load %arg3[%c0_4, %c0_5] : memref<1x128xf32, #tpu.memory_space<vmem>>, vector<1x128xf32>
    %8 = vector.broadcast %7 : vector<1x128xf32> to vector<56x128xf32>
    %9 = arith.addf %6, %8 : vector<56x128xf32>
    %cst_6 = arith.constant 0.000000e+00 : f32
    %10 = vector.broadcast %cst_6 : f32 to vector<56x128xf32>
    %11 = arith.maximumf %9, %10 : vector<56x128xf32>
    %12 = arith.truncf %11 : vector<56x128xf32> to vector<56x128xbf16>
    %c0_7 = arith.constant 0 : index
    %c0_8 = arith.constant 0 : index
    %13 = vector.load %arg4[%c0_7, %c0_8] : memref<128x128xbf16, #tpu.memory_space<vmem>>, vector<128x128xbf16>
    %cst_9 = arith.constant dense<0.000000e+00> : vector<56x128xf32>
    %14 = tpu.matmul %12, %13, %cst_9 {dimension_numbers = #tpu.dot_dimension_numbers<[1], [0], [0], [1], [0, 0, 1, 1], [], []>} : vector<56x128xbf16>, vector<128x128xbf16>, vector<56x128xf32> -> vector<56x128xf32>
    %15 = vector.extract_strided_slice %14 {offsets = [0, 0], sizes = [56, 64], strides = [1, 1]} : vector<56x128xf32> to vector<56x64xf32>
    %16 = vector.extract_strided_slice %14 {offsets = [0, 64], sizes = [56, 64], strides = [1, 1]} : vector<56x128xf32> to vector<56x64xf32>
    %17 = arith.maximumf %15, %16 : vector<56x64xf32>
    %c0_10 = arith.constant 0 : index
    %c0_11 = arith.constant 0 : index
    %18 = vector.load %arg5[%c0_10, %c0_11] : memref<1x64xf32, #tpu.memory_space<vmem>>, vector<1x64xf32>
    %19 = vector.broadcast %18 : vector<1x64xf32> to vector<56x64xf32>
    %20 = arith.addf %17, %19 : vector<56x64xf32>
    %cst_12 = arith.constant 0.000000e+00 : f32
    %21 = vector.broadcast %cst_12 : f32 to vector<8x128xf32>
    %cst_13 = arith.constant 0.000000e+00 : f32
    %22 = vector.broadcast %cst_13 : f32 to vector<8x128xf32>
    %23 = arith.truncf %20 : vector<56x64xf32> to vector<56x64xbf16>
    %c0_14 = arith.constant 0 : index
    %c0_15 = arith.constant 0 : index
    %24 = vector.load %arg6[%c0_14, %c0_15] : memref<64x512xbf16, #tpu.memory_space<vmem>>, vector<64x512xbf16>
    %cst_16 = arith.constant dense<0.000000e+00> : vector<56x512xf32>
    %25 = tpu.matmul %23, %24, %cst_16 {dimension_numbers = #tpu.dot_dimension_numbers<[1], [0], [0], [1], [0, 0, 1, 1], [], []>} : vector<56x64xbf16>, vector<64x512xbf16>, vector<56x512xf32> -> vector<56x512xf32>
    %c0_17 = arith.constant 0 : index
    %c0_18 = arith.constant 0 : index
    %26 = vector.load %arg8[%c0_17, %c0_18] : memref<1x512xf32, #tpu.memory_space<vmem>>, vector<1x512xf32>
    %27 = vector.broadcast %26 : vector<1x512xf32> to vector<56x512xf32>
    %28 = arith.addf %25, %27 : vector<56x512xf32>
    %29 = vector.shape_cast %28 : vector<56x512xf32> to vector<7x8x512xf32>
    %c0_19 = arith.constant 0 : index
    %c0_20 = arith.constant 0 : index
    %c0_21 = arith.constant 0 : index
    %30 = vector.load %arg15[%c0_19, %c0_20, %c0_21] : memref<7x8x512xf32, #tpu.memory_space<vmem>>, vector<7x8x512xf32>
    tpu.vector_store %arg15[%c0_19, %c0_20, %c0_21], %29 {strides = array<i32>} : memref<7x8x512xf32, #tpu.memory_space<vmem>>, vector<7x8x512xf32>,
    %c0_22 = arith.constant 0 : index
    %c0_23 = arith.constant 0 : index
    %31 = vector.load %arg7[%c0_22, %c0_23] : memref<128x512xbf16, #tpu.memory_space<vmem>>, vector<128x512xbf16>
    %c0_i32 = arith.constant 0 : i32
    %32 = arith.index_cast %c0_i32 : i32 to index
    %c0_24 = arith.constant 0 : index
    %c0_25 = arith.constant 0 : index
    %33 = vector.load %arg15[%32, %c0_24, %c0_25] : memref<7x8x512xf32, #tpu.memory_space<vmem>>, vector<1x8x512xf32>
    %34 = vector.shape_cast %33 : vector<1x8x512xf32> to vector<8x512xf32>
    %35 = arith.truncf %21 : vector<8x128xf32> to vector<8x128xbf16>
    %cst_26 = arith.constant dense<0.000000e+00> : vector<8x512xf32>
    %36 = tpu.matmul %35, %31, %cst_26 {dimension_numbers = #tpu.dot_dimension_numbers<[1], [0], [0], [1], [0, 0, 1, 1], [], []>} : vector<8x128xbf16>, vector<128x512xbf16>, vector<8x512xf32> -> vector<8x512xf32>
    %37 = arith.addf %34, %36 : vector<8x512xf32>
    %38 = vector.extract_strided_slice %37 {offsets = [0, 0], sizes = [8, 128], strides = [1, 1]} : vector<8x512xf32> to vector<8x128xf32>
    %39 = arith.negf %38 : vector<8x128xf32>
    %40 = math.exp %39 : vector<8x128xf32>
    %cst_27 = arith.constant 1.000000e+00 : f32
    %41 = vector.broadcast %cst_27 : f32 to vector<8x128xf32>
    %42 = arith.addf %41, %40 : vector<8x128xf32>
    %43 = arith.divf %41, %42 : vector<8x128xf32>
    %44 = vector.extract_strided_slice %37 {offsets = [0, 128], sizes = [8, 128], strides = [1, 1]} : vector<8x512xf32> to vector<8x128xf32>
    %45 = arith.negf %44 : vector<8x128xf32>
    %46 = math.exp %45 : vector<8x128xf32>
    %cst_28 = arith.constant 1.000000e+00 : f32
    %47 = vector.broadcast %cst_28 : f32 to vector<8x128xf32>
    %48 = arith.addf %47, %46 : vector<8x128xf32>
    %49 = arith.divf %47, %48 : vector<8x128xf32>
    %50 = vector.extract_strided_slice %37 {offsets = [0, 256], sizes = [8, 128], strides = [1, 1]} : vector<8x512xf32> to vector<8x128xf32>
    %51 = math.tanh %50 : vector<8x128xf32>
    %52 = vector.extract_strided_slice %37 {offsets = [0, 384], sizes = [8, 128], strides = [1, 1]} : vector<8x512xf32> to vector<8x128xf32>
    %53 = arith.negf %52 : vector<8x128xf32>
    %54 = math.exp %53 : vector<8x128xf32>
    %cst_29 = arith.constant 1.000000e+00 : f32
    %55 = vector.broadcast %cst_29 : f32 to vector<8x128xf32>
    %56 = arith.addf %55, %54 : vector<8x128xf32>
    %57 = arith.divf %55, %56 : vector<8x128xf32>
    %58 = arith.mulf %49, %22 : vector<8x128xf32>
    %59 = arith.mulf %43, %51 : vector<8x128xf32>
    %60 = arith.addf %58, %59 : vector<8x128xf32>
    %61 = math.tanh %60 : vector<8x128xf32>
    %62 = arith.mulf %57, %61 : vector<8x128xf32>
    %63 = arith.truncf %62 : vector<8x128xf32> to vector<8x128xbf16>
    %64 = arith.index_cast %c0_i32 : i32 to index
    %c0_30 = arith.constant 0 : index
    %c0_31 = arith.constant 0 : index
    %65 = vector.load %arg16[%64, %c0_30, %c0_31] : memref<7x8x128xbf16, #tpu.memory_space<vmem>>, vector<1x8x128xbf16>
    %66 = vector.shape_cast %65 : vector<1x8x128xbf16> to vector<8x128xbf16>
    %67 = vector.shape_cast %63 : vector<8x128xbf16> to vector<1x8x128xbf16>
    tpu.vector_store %arg16[%64, %c0_30, %c0_31], %67 {strides = array<i32>} : memref<7x8x128xbf16, #tpu.memory_space<vmem>>, vector<1x8x128xbf16>,
    %c1_i32 = arith.constant 1 : i32
    %68 = arith.index_cast %c1_i32 : i32 to index
    %c0_32 = arith.constant 0 : index
    %c0_33 = arith.constant 0 : index
    %69 = vector.load %arg15[%68, %c0_32, %c0_33] : memref<7x8x512xf32, #tpu.memory_space<vmem>>, vector<1x8x512xf32>
    %70 = vector.shape_cast %69 : vector<1x8x512xf32> to vector<8x512xf32>
    %71 = arith.truncf %62 : vector<8x128xf32> to vector<8x128xbf16>
    %cst_34 = arith.constant dense<0.000000e+00> : vector<8x512xf32>
    %72 = tpu.matmul %71, %31, %cst_34 {dimension_numbers = #tpu.dot_dimension_numbers<[1], [0], [0], [1], [0, 0, 1, 1], [], []>} : vector<8x128xbf16>, vector<128x512xbf16>, vector<8x512xf32> -> vector<8x512xf32>
    %73 = arith.addf %70, %72 : vector<8x512xf32>
    %74 = vector.extract_strided_slice %73 {offsets = [0, 0], sizes = [8, 128], strides = [1, 1]} : vector<8x512xf32> to vector<8x128xf32>
    %75 = arith.negf %74 : vector<8x128xf32>
    %76 = math.exp %75 : vector<8x128xf32>
    %cst_35 = arith.constant 1.000000e+00 : f32
    %77 = vector.broadcast %cst_35 : f32 to vector<8x128xf32>
    %78 = arith.addf %77, %76 : vector<8x128xf32>
    %79 = arith.divf %77, %78 : vector<8x128xf32>
    %80 = vector.extract_strided_slice %73 {offsets = [0, 128], sizes = [8, 128], strides = [1, 1]} : vector<8x512xf32> to vector<8x128xf32>
    %81 = arith.negf %80 : vector<8x128xf32>
    %82 = math.exp %81 : vector<8x128xf32>
    %cst_36 = arith.constant 1.000000e+00 : f32
    %83 = vector.broadcast %cst_36 : f32 to vector<8x128xf32>
    %84 = arith.addf %83, %82 : vector<8x128xf32>
    %85 = arith.divf %83, %84 : vector<8x128xf32>
    %86 = vector.extract_strided_slice %73 {offsets = [0, 256], sizes = [8, 128], strides = [1, 1]} : vector<8x512xf32> to vector<8x128xf32>
    %87 = math.tanh %86 : vector<8x128xf32>
    %88 = vector.extract_strided_slice %73 {offsets = [0, 384], sizes = [8, 128], strides = [1, 1]} : vector<8x512xf32> to vector<8x128xf32>
    %89 = arith.negf %88 : vector<8x128xf32>
    %90 = math.exp %89 : vector<8x128xf32>
    %cst_37 = arith.constant 1.000000e+00 : f32
    %91 = vector.broadcast %cst_37 : f32 to vector<8x128xf32>
    %92 = arith.addf %91, %90 : vector<8x128xf32>
    %93 = arith.divf %91, %92 : vector<8x128xf32>
    %94 = arith.mulf %85, %60 : vector<8x128xf32>
    %95 = arith.mulf %79, %87 : vector<8x128xf32>
    %96 = arith.addf %94, %95 : vector<8x128xf32>
    %97 = math.tanh %96 : vector<8x128xf32>
    %98 = arith.mulf %93, %97 : vector<8x128xf32>
    %99 = arith.truncf %98 : vector<8x128xf32> to vector<8x128xbf16>
    %100 = arith.index_cast %c1_i32 : i32 to index
    %c0_38 = arith.constant 0 : index
    %c0_39 = arith.constant 0 : index
    %101 = vector.load %arg16[%100, %c0_38, %c0_39] : memref<7x8x128xbf16, #tpu.memory_space<vmem>>, vector<1x8x128xbf16>
    %102 = vector.shape_cast %101 : vector<1x8x128xbf16> to vector<8x128xbf16>
    %103 = vector.shape_cast %99 : vector<8x128xbf16> to vector<1x8x128xbf16>
    tpu.vector_store %arg16[%100, %c0_38, %c0_39], %103 {strides = array<i32>} : memref<7x8x128xbf16, #tpu.memory_space<vmem>>, vector<1x8x128xbf16>,
    %c2_i32 = arith.constant 2 : i32
    %104 = arith.index_cast %c2_i32 : i32 to index
    %c0_40 = arith.constant 0 : index
    %c0_41 = arith.constant 0 : index
    %105 = vector.load %arg15[%104, %c0_40, %c0_41] : memref<7x8x512xf32, #tpu.memory_space<vmem>>, vector<1x8x512xf32>
    %106 = vector.shape_cast %105 : vector<1x8x512xf32> to vector<8x512xf32>
    %107 = arith.truncf %98 : vector<8x128xf32> to vector<8x128xbf16>
    %cst_42 = arith.constant dense<0.000000e+00> : vector<8x512xf32>
    %108 = tpu.matmul %107, %31, %cst_42 {dimension_numbers = #tpu.dot_dimension_numbers<[1], [0], [0], [1], [0, 0, 1, 1], [], []>} : vector<8x128xbf16>, vector<128x512xbf16>, vector<8x512xf32> -> vector<8x512xf32>
    %109 = arith.addf %106, %108 : vector<8x512xf32>
    %110 = vector.extract_strided_slice %109 {offsets = [0, 0], sizes = [8, 128], strides = [1, 1]} : vector<8x512xf32> to vector<8x128xf32>
    %111 = arith.negf %110 : vector<8x128xf32>
    %112 = math.exp %111 : vector<8x128xf32>
    %cst_43 = arith.constant 1.000000e+00 : f32
    %113 = vector.broadcast %cst_43 : f32 to vector<8x128xf32>
    %114 = arith.addf %113, %112 : vector<8x128xf32>
    %115 = arith.divf %113, %114 : vector<8x128xf32>
    %116 = vector.extract_strided_slice %109 {offsets = [0, 128], sizes = [8, 128], strides = [1, 1]} : vector<8x512xf32> to vector<8x128xf32>
    %117 = arith.negf %116 : vector<8x128xf32>
    %118 = math.exp %117 : vector<8x128xf32>
    %cst_44 = arith.constant 1.000000e+00 : f32
    %119 = vector.broadcast %cst_44 : f32 to vector<8x128xf32>
    %120 = arith.addf %119, %118 : vector<8x128xf32>
    %121 = arith.divf %119, %120 : vector<8x128xf32>
    %122 = vector.extract_strided_slice %109 {offsets = [0, 256], sizes = [8, 128], strides = [1, 1]} : vector<8x512xf32> to vector<8x128xf32>
    %123 = math.tanh %122 : vector<8x128xf32>
    %124 = vector.extract_strided_slice %109 {offsets = [0, 384], sizes = [8, 128], strides = [1, 1]} : vector<8x512xf32> to vector<8x128xf32>
    %125 = arith.negf %124 : vector<8x128xf32>
    %126 = math.exp %125 : vector<8x128xf32>
    %cst_45 = arith.constant 1.000000e+00 : f32
    %127 = vector.broadcast %cst_45 : f32 to vector<8x128xf32>
    %128 = arith.addf %127, %126 : vector<8x128xf32>
    %129 = arith.divf %127, %128 : vector<8x128xf32>
    %130 = arith.mulf %121, %96 : vector<8x128xf32>
    %131 = arith.mulf %115, %123 : vector<8x128xf32>
    %132 = arith.addf %130, %131 : vector<8x128xf32>
    %133 = math.tanh %132 : vector<8x128xf32>
    %134 = arith.mulf %129, %133 : vector<8x128xf32>
    %135 = arith.truncf %134 : vector<8x128xf32> to vector<8x128xbf16>
    %136 = arith.index_cast %c2_i32 : i32 to index
    %c0_46 = arith.constant 0 : index
    %c0_47 = arith.constant 0 : index
    %137 = vector.load %arg16[%136, %c0_46, %c0_47] : memref<7x8x128xbf16, #tpu.memory_space<vmem>>, vector<1x8x128xbf16>
    %138 = vector.shape_cast %137 : vector<1x8x128xbf16> to vector<8x128xbf16>
    %139 = vector.shape_cast %135 : vector<8x128xbf16> to vector<1x8x128xbf16>
    tpu.vector_store %arg16[%136, %c0_46, %c0_47], %139 {strides = array<i32>} : memref<7x8x128xbf16, #tpu.memory_space<vmem>>, vector<1x8x128xbf16>,
    %c3_i32 = arith.constant 3 : i32
    %140 = arith.index_cast %c3_i32 : i32 to index
    %c0_48 = arith.constant 0 : index
    %c0_49 = arith.constant 0 : index
    %141 = vector.load %arg15[%140, %c0_48, %c0_49] : memref<7x8x512xf32, #tpu.memory_space<vmem>>, vector<1x8x512xf32>
    %142 = vector.shape_cast %141 : vector<1x8x512xf32> to vector<8x512xf32>
    %143 = arith.truncf %134 : vector<8x128xf32> to vector<8x128xbf16>
    %cst_50 = arith.constant dense<0.000000e+00> : vector<8x512xf32>
    %144 = tpu.matmul %143, %31, %cst_50 {dimension_numbers = #tpu.dot_dimension_numbers<[1], [0], [0], [1], [0, 0, 1, 1], [], []>} : vector<8x128xbf16>, vector<128x512xbf16>, vector<8x512xf32> -> vector<8x512xf32>
    %145 = arith.addf %142, %144 : vector<8x512xf32>
    %146 = vector.extract_strided_slice %145 {offsets = [0, 0], sizes = [8, 128], strides = [1, 1]} : vector<8x512xf32> to vector<8x128xf32>
    %147 = arith.negf %146 : vector<8x128xf32>
    %148 = math.exp %147 : vector<8x128xf32>
    %cst_51 = arith.constant 1.000000e+00 : f32
    %149 = vector.broadcast %cst_51 : f32 to vector<8x128xf32>
    %150 = arith.addf %149, %148 : vector<8x128xf32>
    %151 = arith.divf %149, %150 : vector<8x128xf32>
    %152 = vector.extract_strided_slice %145 {offsets = [0, 128], sizes = [8, 128], strides = [1, 1]} : vector<8x512xf32> to vector<8x128xf32>
    %153 = arith.negf %152 : vector<8x128xf32>
    %154 = math.exp %153 : vector<8x128xf32>
    %cst_52 = arith.constant 1.000000e+00 : f32
    %155 = vector.broadcast %cst_52 : f32 to vector<8x128xf32>
    %156 = arith.addf %155, %154 : vector<8x128xf32>
    %157 = arith.divf %155, %156 : vector<8x128xf32>
    %158 = vector.extract_strided_slice %145 {offsets = [0, 256], sizes = [8, 128], strides = [1, 1]} : vector<8x512xf32> to vector<8x128xf32>
    %159 = math.tanh %158 : vector<8x128xf32>
    %160 = vector.extract_strided_slice %145 {offsets = [0, 384], sizes = [8, 128], strides = [1, 1]} : vector<8x512xf32> to vector<8x128xf32>
    %161 = arith.negf %160 : vector<8x128xf32>
    %162 = math.exp %161 : vector<8x128xf32>
    %cst_53 = arith.constant 1.000000e+00 : f32
    %163 = vector.broadcast %cst_53 : f32 to vector<8x128xf32>
    %164 = arith.addf %163, %162 : vector<8x128xf32>
    %165 = arith.divf %163, %164 : vector<8x128xf32>
    %166 = arith.mulf %157, %132 : vector<8x128xf32>
    %167 = arith.mulf %151, %159 : vector<8x128xf32>
    %168 = arith.addf %166, %167 : vector<8x128xf32>
    %169 = math.tanh %168 : vector<8x128xf32>
    %170 = arith.mulf %165, %169 : vector<8x128xf32>
    %171 = arith.truncf %170 : vector<8x128xf32> to vector<8x128xbf16>
    %172 = arith.index_cast %c3_i32 : i32 to index
    %c0_54 = arith.constant 0 : index
    %c0_55 = arith.constant 0 : index
    %173 = vector.load %arg16[%172, %c0_54, %c0_55] : memref<7x8x128xbf16, #tpu.memory_space<vmem>>, vector<1x8x128xbf16>
    %174 = vector.shape_cast %173 : vector<1x8x128xbf16> to vector<8x128xbf16>
    %175 = vector.shape_cast %171 : vector<8x128xbf16> to vector<1x8x128xbf16>
    tpu.vector_store %arg16[%172, %c0_54, %c0_55], %175 {strides = array<i32>} : memref<7x8x128xbf16, #tpu.memory_space<vmem>>, vector<1x8x128xbf16>,
    %c4_i32 = arith.constant 4 : i32
    %176 = arith.index_cast %c4_i32 : i32 to index
    %c0_56 = arith.constant 0 : index
    %c0_57 = arith.constant 0 : index
    %177 = vector.load %arg15[%176, %c0_56, %c0_57] : memref<7x8x512xf32, #tpu.memory_space<vmem>>, vector<1x8x512xf32>
    %178 = vector.shape_cast %177 : vector<1x8x512xf32> to vector<8x512xf32>
    %179 = arith.truncf %170 : vector<8x128xf32> to vector<8x128xbf16>
    %cst_58 = arith.constant dense<0.000000e+00> : vector<8x512xf32>
    %180 = tpu.matmul %179, %31, %cst_58 {dimension_numbers = #tpu.dot_dimension_numbers<[1], [0], [0], [1], [0, 0, 1, 1], [], []>} : vector<8x128xbf16>, vector<128x512xbf16>, vector<8x512xf32> -> vector<8x512xf32>
    %181 = arith.addf %178, %180 : vector<8x512xf32>
    %182 = vector.extract_strided_slice %181 {offsets = [0, 0], sizes = [8, 128], strides = [1, 1]} : vector<8x512xf32> to vector<8x128xf32>
    %183 = arith.negf %182 : vector<8x128xf32>
    %184 = math.exp %183 : vector<8x128xf32>
    %cst_59 = arith.constant 1.000000e+00 : f32
    %185 = vector.broadcast %cst_59 : f32 to vector<8x128xf32>
    %186 = arith.addf %185, %184 : vector<8x128xf32>
    %187 = arith.divf %185, %186 : vector<8x128xf32>
    %188 = vector.extract_strided_slice %181 {offsets = [0, 128], sizes = [8, 128], strides = [1, 1]} : vector<8x512xf32> to vector<8x128xf32>
    %189 = arith.negf %188 : vector<8x128xf32>
    %190 = math.exp %189 : vector<8x128xf32>
    %cst_60 = arith.constant 1.000000e+00 : f32
    %191 = vector.broadcast %cst_60 : f32 to vector<8x128xf32>
    %192 = arith.addf %191, %190 : vector<8x128xf32>
    %193 = arith.divf %191, %192 : vector<8x128xf32>
    %194 = vector.extract_strided_slice %181 {offsets = [0, 256], sizes = [8, 128], strides = [1, 1]} : vector<8x512xf32> to vector<8x128xf32>
    %195 = math.tanh %194 : vector<8x128xf32>
    %196 = vector.extract_strided_slice %181 {offsets = [0, 384], sizes = [8, 128], strides = [1, 1]} : vector<8x512xf32> to vector<8x128xf32>
    %197 = arith.negf %196 : vector<8x128xf32>
    %198 = math.exp %197 : vector<8x128xf32>
    %cst_61 = arith.constant 1.000000e+00 : f32
    %199 = vector.broadcast %cst_61 : f32 to vector<8x128xf32>
    %200 = arith.addf %199, %198 : vector<8x128xf32>
    %201 = arith.divf %199, %200 : vector<8x128xf32>
    %202 = arith.mulf %193, %168 : vector<8x128xf32>
    %203 = arith.mulf %187, %195 : vector<8x128xf32>
    %204 = arith.addf %202, %203 : vector<8x128xf32>
    %205 = math.tanh %204 : vector<8x128xf32>
    %206 = arith.mulf %201, %205 : vector<8x128xf32>
    %207 = arith.truncf %206 : vector<8x128xf32> to vector<8x128xbf16>
    %208 = arith.index_cast %c4_i32 : i32 to index
    %c0_62 = arith.constant 0 : index
    %c0_63 = arith.constant 0 : index
    %209 = vector.load %arg16[%208, %c0_62, %c0_63] : memref<7x8x128xbf16, #tpu.memory_space<vmem>>, vector<1x8x128xbf16>
    %210 = vector.shape_cast %209 : vector<1x8x128xbf16> to vector<8x128xbf16>
    %211 = vector.shape_cast %207 : vector<8x128xbf16> to vector<1x8x128xbf16>
    tpu.vector_store %arg16[%208, %c0_62, %c0_63], %211 {strides = array<i32>} : memref<7x8x128xbf16, #tpu.memory_space<vmem>>, vector<1x8x128xbf16>,
    %c5_i32 = arith.constant 5 : i32
    %212 = arith.index_cast %c5_i32 : i32 to index
    %c0_64 = arith.constant 0 : index
    %c0_65 = arith.constant 0 : index
    %213 = vector.load %arg15[%212, %c0_64, %c0_65] : memref<7x8x512xf32, #tpu.memory_space<vmem>>, vector<1x8x512xf32>
    %214 = vector.shape_cast %213 : vector<1x8x512xf32> to vector<8x512xf32>
    %215 = arith.truncf %206 : vector<8x128xf32> to vector<8x128xbf16>
    %cst_66 = arith.constant dense<0.000000e+00> : vector<8x512xf32>
    %216 = tpu.matmul %215, %31, %cst_66 {dimension_numbers = #tpu.dot_dimension_numbers<[1], [0], [0], [1], [0, 0, 1, 1], [], []>} : vector<8x128xbf16>, vector<128x512xbf16>, vector<8x512xf32> -> vector<8x512xf32>
    %217 = arith.addf %214, %216 : vector<8x512xf32>
    %218 = vector.extract_strided_slice %217 {offsets = [0, 0], sizes = [8, 128], strides = [1, 1]} : vector<8x512xf32> to vector<8x128xf32>
    %219 = arith.negf %218 : vector<8x128xf32>
    %220 = math.exp %219 : vector<8x128xf32>
    %cst_67 = arith.constant 1.000000e+00 : f32
    %221 = vector.broadcast %cst_67 : f32 to vector<8x128xf32>
    %222 = arith.addf %221, %220 : vector<8x128xf32>
    %223 = arith.divf %221, %222 : vector<8x128xf32>
    %224 = vector.extract_strided_slice %217 {offsets = [0, 128], sizes = [8, 128], strides = [1, 1]} : vector<8x512xf32> to vector<8x128xf32>
    %225 = arith.negf %224 : vector<8x128xf32>
    %226 = math.exp %225 : vector<8x128xf32>
    %cst_68 = arith.constant 1.000000e+00 : f32
    %227 = vector.broadcast %cst_68 : f32 to vector<8x128xf32>
    %228 = arith.addf %227, %226 : vector<8x128xf32>
    %229 = arith.divf %227, %228 : vector<8x128xf32>
    %230 = vector.extract_strided_slice %217 {offsets = [0, 256], sizes = [8, 128], strides = [1, 1]} : vector<8x512xf32> to vector<8x128xf32>
    %231 = math.tanh %230 : vector<8x128xf32>
    %232 = vector.extract_strided_slice %217 {offsets = [0, 384], sizes = [8, 128], strides = [1, 1]} : vector<8x512xf32> to vector<8x128xf32>
    %233 = arith.negf %232 : vector<8x128xf32>
    %234 = math.exp %233 : vector<8x128xf32>
    %cst_69 = arith.constant 1.000000e+00 : f32
    %235 = vector.broadcast %cst_69 : f32 to vector<8x128xf32>
    %236 = arith.addf %235, %234 : vector<8x128xf32>
    %237 = arith.divf %235, %236 : vector<8x128xf32>
    %238 = arith.mulf %229, %204 : vector<8x128xf32>
    %239 = arith.mulf %223, %231 : vector<8x128xf32>
    %240 = arith.addf %238, %239 : vector<8x128xf32>
    %241 = math.tanh %240 : vector<8x128xf32>
    %242 = arith.mulf %237, %241 : vector<8x128xf32>
    %243 = arith.truncf %242 : vector<8x128xf32> to vector<8x128xbf16>
    %244 = arith.index_cast %c5_i32 : i32 to index
    %c0_70 = arith.constant 0 : index
    %c0_71 = arith.constant 0 : index
    %245 = vector.load %arg16[%244, %c0_70, %c0_71] : memref<7x8x128xbf16, #tpu.memory_space<vmem>>, vector<1x8x128xbf16>
    %246 = vector.shape_cast %245 : vector<1x8x128xbf16> to vector<8x128xbf16>
    %247 = vector.shape_cast %243 : vector<8x128xbf16> to vector<1x8x128xbf16>
    tpu.vector_store %arg16[%244, %c0_70, %c0_71], %247 {strides = array<i32>} : memref<7x8x128xbf16, #tpu.memory_space<vmem>>, vector<1x8x128xbf16>,
    %c6_i32 = arith.constant 6 : i32
    %248 = arith.index_cast %c6_i32 : i32 to index
    %c0_72 = arith.constant 0 : index
    %c0_73 = arith.constant 0 : index
    %249 = vector.load %arg15[%248, %c0_72, %c0_73] : memref<7x8x512xf32, #tpu.memory_space<vmem>>, vector<1x8x512xf32>
    %250 = vector.shape_cast %249 : vector<1x8x512xf32> to vector<8x512xf32>
    %251 = arith.truncf %242 : vector<8x128xf32> to vector<8x128xbf16>
    %cst_74 = arith.constant dense<0.000000e+00> : vector<8x512xf32>
    %252 = tpu.matmul %251, %31, %cst_74 {dimension_numbers = #tpu.dot_dimension_numbers<[1], [0], [0], [1], [0, 0, 1, 1], [], []>} : vector<8x128xbf16>, vector<128x512xbf16>, vector<8x512xf32> -> vector<8x512xf32>
    %253 = arith.addf %250, %252 : vector<8x512xf32>
    %254 = vector.extract_strided_slice %253 {offsets = [0, 0], sizes = [8, 128], strides = [1, 1]} : vector<8x512xf32> to vector<8x128xf32>
    %255 = arith.negf %254 : vector<8x128xf32>
    %256 = math.exp %255 : vector<8x128xf32>
    %cst_75 = arith.constant 1.000000e+00 : f32
    %257 = vector.broadcast %cst_75 : f32 to vector<8x128xf32>
    %258 = arith.addf %257, %256 : vector<8x128xf32>
    %259 = arith.divf %257, %258 : vector<8x128xf32>
    %260 = vector.extract_strided_slice %253 {offsets = [0, 128], sizes = [8, 128], strides = [1, 1]} : vector<8x512xf32> to vector<8x128xf32>
    %261 = arith.negf %260 : vector<8x128xf32>
    %262 = math.exp %261 : vector<8x128xf32>
    %cst_76 = arith.constant 1.000000e+00 : f32
    %263 = vector.broadcast %cst_76 : f32 to vector<8x128xf32>
    %264 = arith.addf %263, %262 : vector<8x128xf32>
    %265 = arith.divf %263, %264 : vector<8x128xf32>
    %266 = vector.extract_strided_slice %253 {offsets = [0, 256], sizes = [8, 128], strides = [1, 1]} : vector<8x512xf32> to vector<8x128xf32>
    %267 = math.tanh %266 : vector<8x128xf32>
    %268 = vector.extract_strided_slice %253 {offsets = [0, 384], sizes = [8, 128], strides = [1, 1]} : vector<8x512xf32> to vector<8x128xf32>
    %269 = arith.negf %268 : vector<8x128xf32>
    %270 = math.exp %269 : vector<8x128xf32>
    %cst_77 = arith.constant 1.000000e+00 : f32
    %271 = vector.broadcast %cst_77 : f32 to vector<8x128xf32>
    %272 = arith.addf %271, %270 : vector<8x128xf32>
    %273 = arith.divf %271, %272 : vector<8x128xf32>
    %274 = arith.mulf %265, %240 : vector<8x128xf32>
    %275 = arith.mulf %259, %267 : vector<8x128xf32>
    %276 = arith.addf %274, %275 : vector<8x128xf32>
    %277 = math.tanh %276 : vector<8x128xf32>
    %278 = arith.mulf %273, %277 : vector<8x128xf32>
    %279 = arith.truncf %278 : vector<8x128xf32> to vector<8x128xbf16>
    %280 = arith.index_cast %c6_i32 : i32 to index
    %c0_78 = arith.constant 0 : index
    %c0_79 = arith.constant 0 : index
    %281 = vector.load %arg16[%280, %c0_78, %c0_79] : memref<7x8x128xbf16, #tpu.memory_space<vmem>>, vector<1x8x128xbf16>
    %282 = vector.shape_cast %281 : vector<1x8x128xbf16> to vector<8x128xbf16>
    %283 = vector.shape_cast %279 : vector<8x128xbf16> to vector<1x8x128xbf16>
    tpu.vector_store %arg16[%280, %c0_78, %c0_79], %283 {strides = array<i32>} : memref<7x8x128xbf16, #tpu.memory_space<vmem>>, vector<1x8x128xbf16>,
    %c7_i32 = arith.constant 7 : i32
    %c0_80 = arith.constant 0 : index
    %c0_81 = arith.constant 0 : index
    %c0_82 = arith.constant 0 : index
    %284 = vector.load %arg16[%c0_80, %c0_81, %c0_82] : memref<7x8x128xbf16, #tpu.memory_space<vmem>>, vector<7x8x128xbf16>
    %285 = vector.shape_cast %284 : vector<7x8x128xbf16> to vector<56x128xbf16>
    %c0_83 = arith.constant 0 : index
    %c0_84 = arith.constant 0 : index
    %286 = vector.load %arg9[%c0_83, %c0_84] : memref<128x512xbf16, #tpu.memory_space<vmem>>, vector<128x512xbf16>
    %cst_85 = arith.constant dense<0.000000e+00> : vector<56x512xf32>
    %287 = tpu.matmul %285, %286, %cst_85 {dimension_numbers = #tpu.dot_dimension_numbers<[1], [0], [0], [1], [0, 0, 1, 1], [], []>} : vector<56x128xbf16>, vector<128x512xbf16>, vector<56x512xf32> -> vector<56x512xf32>
    %c0_86 = arith.constant 0 : index
    %c0_87 = arith.constant 0 : index
    %288 = vector.load %arg11[%c0_86, %c0_87] : memref<1x512xf32, #tpu.memory_space<vmem>>, vector<1x512xf32>
    %289 = vector.broadcast %288 : vector<1x512xf32> to vector<56x512xf32>
    %290 = arith.addf %287, %289 : vector<56x512xf32>
    %291 = vector.shape_cast %290 : vector<56x512xf32> to vector<7x8x512xf32>
    %c0_88 = arith.constant 0 : index
    %c0_89 = arith.constant 0 : index
    %c0_90 = arith.constant 0 : index
    %292 = vector.load %arg15[%c0_88, %c0_89, %c0_90] : memref<7x8x512xf32, #tpu.memory_space<vmem>>, vector<7x8x512xf32>
    tpu.vector_store %arg15[%c0_88, %c0_89, %c0_90], %291 {strides = array<i32>} : memref<7x8x512xf32, #tpu.memory_space<vmem>>, vector<7x8x512xf32>,
    %c0_91 = arith.constant 0 : index
    %c0_92 = arith.constant 0 : index
    %293 = vector.load %arg10[%c0_91, %c0_92] : memref<128x512xbf16, #tpu.memory_space<vmem>>, vector<128x512xbf16>
    %c0_i32_93 = arith.constant 0 : i32
    %294 = arith.index_cast %c0_i32_93 : i32 to index
    %c0_94 = arith.constant 0 : index
    %c0_95 = arith.constant 0 : index
    %295 = vector.load %arg15[%294, %c0_94, %c0_95] : memref<7x8x512xf32, #tpu.memory_space<vmem>>, vector<1x8x512xf32>
    %296 = vector.shape_cast %295 : vector<1x8x512xf32> to vector<8x512xf32>
    %297 = arith.truncf %21 : vector<8x128xf32> to vector<8x128xbf16>
    %cst_96 = arith.constant dense<0.000000e+00> : vector<8x512xf32>
    %298 = tpu.matmul %297, %293, %cst_96 {dimension_numbers = #tpu.dot_dimension_numbers<[1], [0], [0], [1], [0, 0, 1, 1], [], []>} : vector<8x128xbf16>, vector<128x512xbf16>, vector<8x512xf32> -> vector<8x512xf32>
    %299 = arith.addf %296, %298 : vector<8x512xf32>
    %300 = vector.extract_strided_slice %299 {offsets = [0, 0], sizes = [8, 128], strides = [1, 1]} : vector<8x512xf32> to vector<8x128xf32>
    %301 = arith.negf %300 : vector<8x128xf32>
    %302 = math.exp %301 : vector<8x128xf32>
    %cst_97 = arith.constant 1.000000e+00 : f32
    %303 = vector.broadcast %cst_97 : f32 to vector<8x128xf32>
    %304 = arith.addf %303, %302 : vector<8x128xf32>
    %305 = arith.divf %303, %304 : vector<8x128xf32>
    %306 = vector.extract_strided_slice %299 {offsets = [0, 128], sizes = [8, 128], strides = [1, 1]} : vector<8x512xf32> to vector<8x128xf32>
    %307 = arith.negf %306 : vector<8x128xf32>
    %308 = math.exp %307 : vector<8x128xf32>
    %cst_98 = arith.constant 1.000000e+00 : f32
    %309 = vector.broadcast %cst_98 : f32 to vector<8x128xf32>
    %310 = arith.addf %309, %308 : vector<8x128xf32>
    %311 = arith.divf %309, %310 : vector<8x128xf32>
    %312 = vector.extract_strided_slice %299 {offsets = [0, 256], sizes = [8, 128], strides = [1, 1]} : vector<8x512xf32> to vector<8x128xf32>
    %313 = math.tanh %312 : vector<8x128xf32>
    %314 = vector.extract_strided_slice %299 {offsets = [0, 384], sizes = [8, 128], strides = [1, 1]} : vector<8x512xf32> to vector<8x128xf32>
    %315 = arith.negf %314 : vector<8x128xf32>
    %316 = math.exp %315 : vector<8x128xf32>
    %cst_99 = arith.constant 1.000000e+00 : f32
    %317 = vector.broadcast %cst_99 : f32 to vector<8x128xf32>
    %318 = arith.addf %317, %316 : vector<8x128xf32>
    %319 = arith.divf %317, %318 : vector<8x128xf32>
    %320 = arith.mulf %311, %22 : vector<8x128xf32>
    %321 = arith.mulf %305, %313 : vector<8x128xf32>
    %322 = arith.addf %320, %321 : vector<8x128xf32>
    %323 = math.tanh %322 : vector<8x128xf32>
    %324 = arith.mulf %319, %323 : vector<8x128xf32>
    %c1_i32_100 = arith.constant 1 : i32
    %325 = arith.index_cast %c1_i32_100 : i32 to index
    %c0_101 = arith.constant 0 : index
    %c0_102 = arith.constant 0 : index
    %326 = vector.load %arg15[%325, %c0_101, %c0_102] : memref<7x8x512xf32, #tpu.memory_space<vmem>>, vector<1x8x512xf32>
    %327 = vector.shape_cast %326 : vector<1x8x512xf32> to vector<8x512xf32>
    %328 = arith.truncf %324 : vector<8x128xf32> to vector<8x128xbf16>
    %cst_103 = arith.constant dense<0.000000e+00> : vector<8x512xf32>
    %329 = tpu.matmul %328, %293, %cst_103 {dimension_numbers = #tpu.dot_dimension_numbers<[1], [0], [0], [1], [0, 0, 1, 1], [], []>} : vector<8x128xbf16>, vector<128x512xbf16>, vector<8x512xf32> -> vector<8x512xf32>
    %330 = arith.addf %327, %329 : vector<8x512xf32>
    %331 = vector.extract_strided_slice %330 {offsets = [0, 0], sizes = [8, 128], strides = [1, 1]} : vector<8x512xf32> to vector<8x128xf32>
    %332 = arith.negf %331 : vector<8x128xf32>
    %333 = math.exp %332 : vector<8x128xf32>
    %cst_104 = arith.constant 1.000000e+00 : f32
    %334 = vector.broadcast %cst_104 : f32 to vector<8x128xf32>
    %335 = arith.addf %334, %333 : vector<8x128xf32>
    %336 = arith.divf %334, %335 : vector<8x128xf32>
    %337 = vector.extract_strided_slice %330 {offsets = [0, 128], sizes = [8, 128], strides = [1, 1]} : vector<8x512xf32> to vector<8x128xf32>
    %338 = arith.negf %337 : vector<8x128xf32>
    %339 = math.exp %338 : vector<8x128xf32>
    %cst_105 = arith.constant 1.000000e+00 : f32
    %340 = vector.broadcast %cst_105 : f32 to vector<8x128xf32>
    %341 = arith.addf %340, %339 : vector<8x128xf32>
    %342 = arith.divf %340, %341 : vector<8x128xf32>
    %343 = vector.extract_strided_slice %330 {offsets = [0, 256], sizes = [8, 128], strides = [1, 1]} : vector<8x512xf32> to vector<8x128xf32>
    %344 = math.tanh %343 : vector<8x128xf32>
    %345 = vector.extract_strided_slice %330 {offsets = [0, 384], sizes = [8, 128], strides = [1, 1]} : vector<8x512xf32> to vector<8x128xf32>
    %346 = arith.negf %345 : vector<8x128xf32>
    %347 = math.exp %346 : vector<8x128xf32>
    %cst_106 = arith.constant 1.000000e+00 : f32
    %348 = vector.broadcast %cst_106 : f32 to vector<8x128xf32>
    %349 = arith.addf %348, %347 : vector<8x128xf32>
    %350 = arith.divf %348, %349 : vector<8x128xf32>
    %351 = arith.mulf %342, %322 : vector<8x128xf32>
    %352 = arith.mulf %336, %344 : vector<8x128xf32>
    %353 = arith.addf %351, %352 : vector<8x128xf32>
    %354 = math.tanh %353 : vector<8x128xf32>
    %355 = arith.mulf %350, %354 : vector<8x128xf32>
    %c2_i32_107 = arith.constant 2 : i32
    %356 = arith.index_cast %c2_i32_107 : i32 to index
    %c0_108 = arith.constant 0 : index
    %c0_109 = arith.constant 0 : index
    %357 = vector.load %arg15[%356, %c0_108, %c0_109] : memref<7x8x512xf32, #tpu.memory_space<vmem>>, vector<1x8x512xf32>
    %358 = vector.shape_cast %357 : vector<1x8x512xf32> to vector<8x512xf32>
    %359 = arith.truncf %355 : vector<8x128xf32> to vector<8x128xbf16>
    %cst_110 = arith.constant dense<0.000000e+00> : vector<8x512xf32>
    %360 = tpu.matmul %359, %293, %cst_110 {dimension_numbers = #tpu.dot_dimension_numbers<[1], [0], [0], [1], [0, 0, 1, 1], [], []>} : vector<8x128xbf16>, vector<128x512xbf16>, vector<8x512xf32> -> vector<8x512xf32>
    %361 = arith.addf %358, %360 : vector<8x512xf32>
    %362 = vector.extract_strided_slice %361 {offsets = [0, 0], sizes = [8, 128], strides = [1, 1]} : vector<8x512xf32> to vector<8x128xf32>
    %363 = arith.negf %362 : vector<8x128xf32>
    %364 = math.exp %363 : vector<8x128xf32>
    %cst_111 = arith.constant 1.000000e+00 : f32
    %365 = vector.broadcast %cst_111 : f32 to vector<8x128xf32>
    %366 = arith.addf %365, %364 : vector<8x128xf32>
    %367 = arith.divf %365, %366 : vector<8x128xf32>
    %368 = vector.extract_strided_slice %361 {offsets = [0, 128], sizes = [8, 128], strides = [1, 1]} : vector<8x512xf32> to vector<8x128xf32>
    %369 = arith.negf %368 : vector<8x128xf32>
    %370 = math.exp %369 : vector<8x128xf32>
    %cst_112 = arith.constant 1.000000e+00 : f32
    %371 = vector.broadcast %cst_112 : f32 to vector<8x128xf32>
    %372 = arith.addf %371, %370 : vector<8x128xf32>
    %373 = arith.divf %371, %372 : vector<8x128xf32>
    %374 = vector.extract_strided_slice %361 {offsets = [0, 256], sizes = [8, 128], strides = [1, 1]} : vector<8x512xf32> to vector<8x128xf32>
    %375 = math.tanh %374 : vector<8x128xf32>
    %376 = vector.extract_strided_slice %361 {offsets = [0, 384], sizes = [8, 128], strides = [1, 1]} : vector<8x512xf32> to vector<8x128xf32>
    %377 = arith.negf %376 : vector<8x128xf32>
    %378 = math.exp %377 : vector<8x128xf32>
    %cst_113 = arith.constant 1.000000e+00 : f32
    %379 = vector.broadcast %cst_113 : f32 to vector<8x128xf32>
    %380 = arith.addf %379, %378 : vector<8x128xf32>
    %381 = arith.divf %379, %380 : vector<8x128xf32>
    %382 = arith.mulf %373, %353 : vector<8x128xf32>
    %383 = arith.mulf %367, %375 : vector<8x128xf32>
    %384 = arith.addf %382, %383 : vector<8x128xf32>
    %385 = math.tanh %384 : vector<8x128xf32>
    %386 = arith.mulf %381, %385 : vector<8x128xf32>
    %c3_i32_114 = arith.constant 3 : i32
    %387 = arith.index_cast %c3_i32_114 : i32 to index
    %c0_115 = arith.constant 0 : index
    %c0_116 = arith.constant 0 : index
    %388 = vector.load %arg15[%387, %c0_115, %c0_116] : memref<7x8x512xf32, #tpu.memory_space<vmem>>, vector<1x8x512xf32>
    %389 = vector.shape_cast %388 : vector<1x8x512xf32> to vector<8x512xf32>
    %390 = arith.truncf %386 : vector<8x128xf32> to vector<8x128xbf16>
    %cst_117 = arith.constant dense<0.000000e+00> : vector<8x512xf32>
    %391 = tpu.matmul %390, %293, %cst_117 {dimension_numbers = #tpu.dot_dimension_numbers<[1], [0], [0], [1], [0, 0, 1, 1], [], []>} : vector<8x128xbf16>, vector<128x512xbf16>, vector<8x512xf32> -> vector<8x512xf32>
    %392 = arith.addf %389, %391 : vector<8x512xf32>
    %393 = vector.extract_strided_slice %392 {offsets = [0, 0], sizes = [8, 128], strides = [1, 1]} : vector<8x512xf32> to vector<8x128xf32>
    %394 = arith.negf %393 : vector<8x128xf32>
    %395 = math.exp %394 : vector<8x128xf32>
    %cst_118 = arith.constant 1.000000e+00 : f32
    %396 = vector.broadcast %cst_118 : f32 to vector<8x128xf32>
    %397 = arith.addf %396, %395 : vector<8x128xf32>
    %398 = arith.divf %396, %397 : vector<8x128xf32>
    %399 = vector.extract_strided_slice %392 {offsets = [0, 128], sizes = [8, 128], strides = [1, 1]} : vector<8x512xf32> to vector<8x128xf32>
    %400 = arith.negf %399 : vector<8x128xf32>
    %401 = math.exp %400 : vector<8x128xf32>
    %cst_119 = arith.constant 1.000000e+00 : f32
    %402 = vector.broadcast %cst_119 : f32 to vector<8x128xf32>
    %403 = arith.addf %402, %401 : vector<8x128xf32>
    %404 = arith.divf %402, %403 : vector<8x128xf32>
    %405 = vector.extract_strided_slice %392 {offsets = [0, 256], sizes = [8, 128], strides = [1, 1]} : vector<8x512xf32> to vector<8x128xf32>
    %406 = math.tanh %405 : vector<8x128xf32>
    %407 = vector.extract_strided_slice %392 {offsets = [0, 384], sizes = [8, 128], strides = [1, 1]} : vector<8x512xf32> to vector<8x128xf32>
    %408 = arith.negf %407 : vector<8x128xf32>
    %409 = math.exp %408 : vector<8x128xf32>
    %cst_120 = arith.constant 1.000000e+00 : f32
    %410 = vector.broadcast %cst_120 : f32 to vector<8x128xf32>
    %411 = arith.addf %410, %409 : vector<8x128xf32>
    %412 = arith.divf %410, %411 : vector<8x128xf32>
    %413 = arith.mulf %404, %384 : vector<8x128xf32>
    %414 = arith.mulf %398, %406 : vector<8x128xf32>
    %415 = arith.addf %413, %414 : vector<8x128xf32>
    %416 = math.tanh %415 : vector<8x128xf32>
    %417 = arith.mulf %412, %416 : vector<8x128xf32>
    %c4_i32_121 = arith.constant 4 : i32
    %418 = arith.index_cast %c4_i32_121 : i32 to index
    %c0_122 = arith.constant 0 : index
    %c0_123 = arith.constant 0 : index
    %419 = vector.load %arg15[%418, %c0_122, %c0_123] : memref<7x8x512xf32, #tpu.memory_space<vmem>>, vector<1x8x512xf32>
    %420 = vector.shape_cast %419 : vector<1x8x512xf32> to vector<8x512xf32>
    %421 = arith.truncf %417 : vector<8x128xf32> to vector<8x128xbf16>
    %cst_124 = arith.constant dense<0.000000e+00> : vector<8x512xf32>
    %422 = tpu.matmul %421, %293, %cst_124 {dimension_numbers = #tpu.dot_dimension_numbers<[1], [0], [0], [1], [0, 0, 1, 1], [], []>} : vector<8x128xbf16>, vector<128x512xbf16>, vector<8x512xf32> -> vector<8x512xf32>
    %423 = arith.addf %420, %422 : vector<8x512xf32>
    %424 = vector.extract_strided_slice %423 {offsets = [0, 0], sizes = [8, 128], strides = [1, 1]} : vector<8x512xf32> to vector<8x128xf32>
    %425 = arith.negf %424 : vector<8x128xf32>
    %426 = math.exp %425 : vector<8x128xf32>
    %cst_125 = arith.constant 1.000000e+00 : f32
    %427 = vector.broadcast %cst_125 : f32 to vector<8x128xf32>
    %428 = arith.addf %427, %426 : vector<8x128xf32>
    %429 = arith.divf %427, %428 : vector<8x128xf32>
    %430 = vector.extract_strided_slice %423 {offsets = [0, 128], sizes = [8, 128], strides = [1, 1]} : vector<8x512xf32> to vector<8x128xf32>
    %431 = arith.negf %430 : vector<8x128xf32>
    %432 = math.exp %431 : vector<8x128xf32>
    %cst_126 = arith.constant 1.000000e+00 : f32
    %433 = vector.broadcast %cst_126 : f32 to vector<8x128xf32>
    %434 = arith.addf %433, %432 : vector<8x128xf32>
    %435 = arith.divf %433, %434 : vector<8x128xf32>
    %436 = vector.extract_strided_slice %423 {offsets = [0, 256], sizes = [8, 128], strides = [1, 1]} : vector<8x512xf32> to vector<8x128xf32>
    %437 = math.tanh %436 : vector<8x128xf32>
    %438 = vector.extract_strided_slice %423 {offsets = [0, 384], sizes = [8, 128], strides = [1, 1]} : vector<8x512xf32> to vector<8x128xf32>
    %439 = arith.negf %438 : vector<8x128xf32>
    %440 = math.exp %439 : vector<8x128xf32>
    %cst_127 = arith.constant 1.000000e+00 : f32
    %441 = vector.broadcast %cst_127 : f32 to vector<8x128xf32>
    %442 = arith.addf %441, %440 : vector<8x128xf32>
    %443 = arith.divf %441, %442 : vector<8x128xf32>
    %444 = arith.mulf %435, %415 : vector<8x128xf32>
    %445 = arith.mulf %429, %437 : vector<8x128xf32>
    %446 = arith.addf %444, %445 : vector<8x128xf32>
    %447 = math.tanh %446 : vector<8x128xf32>
    %448 = arith.mulf %443, %447 : vector<8x128xf32>
    %c5_i32_128 = arith.constant 5 : i32
    %449 = arith.index_cast %c5_i32_128 : i32 to index
    %c0_129 = arith.constant 0 : index
    %c0_130 = arith.constant 0 : index
    %450 = vector.load %arg15[%449, %c0_129, %c0_130] : memref<7x8x512xf32, #tpu.memory_space<vmem>>, vector<1x8x512xf32>
    %451 = vector.shape_cast %450 : vector<1x8x512xf32> to vector<8x512xf32>
    %452 = arith.truncf %448 : vector<8x128xf32> to vector<8x128xbf16>
    %cst_131 = arith.constant dense<0.000000e+00> : vector<8x512xf32>
    %453 = tpu.matmul %452, %293, %cst_131 {dimension_numbers = #tpu.dot_dimension_numbers<[1], [0], [0], [1], [0, 0, 1, 1], [], []>} : vector<8x128xbf16>, vector<128x512xbf16>, vector<8x512xf32> -> vector<8x512xf32>
    %454 = arith.addf %451, %453 : vector<8x512xf32>
    %455 = vector.extract_strided_slice %454 {offsets = [0, 0], sizes = [8, 128], strides = [1, 1]} : vector<8x512xf32> to vector<8x128xf32>
    %456 = arith.negf %455 : vector<8x128xf32>
    %457 = math.exp %456 : vector<8x128xf32>
    %cst_132 = arith.constant 1.000000e+00 : f32
    %458 = vector.broadcast %cst_132 : f32 to vector<8x128xf32>
    %459 = arith.addf %458, %457 : vector<8x128xf32>
    %460 = arith.divf %458, %459 : vector<8x128xf32>
    %461 = vector.extract_strided_slice %454 {offsets = [0, 128], sizes = [8, 128], strides = [1, 1]} : vector<8x512xf32> to vector<8x128xf32>
    %462 = arith.negf %461 : vector<8x128xf32>
    %463 = math.exp %462 : vector<8x128xf32>
    %cst_133 = arith.constant 1.000000e+00 : f32
    %464 = vector.broadcast %cst_133 : f32 to vector<8x128xf32>
    %465 = arith.addf %464, %463 : vector<8x128xf32>
    %466 = arith.divf %464, %465 : vector<8x128xf32>
    %467 = vector.extract_strided_slice %454 {offsets = [0, 256], sizes = [8, 128], strides = [1, 1]} : vector<8x512xf32> to vector<8x128xf32>
    %468 = math.tanh %467 : vector<8x128xf32>
    %469 = vector.extract_strided_slice %454 {offsets = [0, 384], sizes = [8, 128], strides = [1, 1]} : vector<8x512xf32> to vector<8x128xf32>
    %470 = arith.negf %469 : vector<8x128xf32>
    %471 = math.exp %470 : vector<8x128xf32>
    %cst_134 = arith.constant 1.000000e+00 : f32
    %472 = vector.broadcast %cst_134 : f32 to vector<8x128xf32>
    %473 = arith.addf %472, %471 : vector<8x128xf32>
    %474 = arith.divf %472, %473 : vector<8x128xf32>
    %475 = arith.mulf %466, %446 : vector<8x128xf32>
    %476 = arith.mulf %460, %468 : vector<8x128xf32>
    %477 = arith.addf %475, %476 : vector<8x128xf32>
    %478 = math.tanh %477 : vector<8x128xf32>
    %479 = arith.mulf %474, %478 : vector<8x128xf32>
    %c6_i32_135 = arith.constant 6 : i32
    %480 = arith.index_cast %c6_i32_135 : i32 to index
    %c0_136 = arith.constant 0 : index
    %c0_137 = arith.constant 0 : index
    %481 = vector.load %arg15[%480, %c0_136, %c0_137] : memref<7x8x512xf32, #tpu.memory_space<vmem>>, vector<1x8x512xf32>
    %482 = vector.shape_cast %481 : vector<1x8x512xf32> to vector<8x512xf32>
    %483 = arith.truncf %479 : vector<8x128xf32> to vector<8x128xbf16>
    %cst_138 = arith.constant dense<0.000000e+00> : vector<8x512xf32>
    %484 = tpu.matmul %483, %293, %cst_138 {dimension_numbers = #tpu.dot_dimension_numbers<[1], [0], [0], [1], [0, 0, 1, 1], [], []>} : vector<8x128xbf16>, vector<128x512xbf16>, vector<8x512xf32> -> vector<8x512xf32>
    %485 = arith.addf %482, %484 : vector<8x512xf32>
    %486 = vector.extract_strided_slice %485 {offsets = [0, 0], sizes = [8, 128], strides = [1, 1]} : vector<8x512xf32> to vector<8x128xf32>
    %487 = arith.negf %486 : vector<8x128xf32>
    %488 = math.exp %487 : vector<8x128xf32>
    %cst_139 = arith.constant 1.000000e+00 : f32
    %489 = vector.broadcast %cst_139 : f32 to vector<8x128xf32>
    %490 = arith.addf %489, %488 : vector<8x128xf32>
    %491 = arith.divf %489, %490 : vector<8x128xf32>
    %492 = vector.extract_strided_slice %485 {offsets = [0, 128], sizes = [8, 128], strides = [1, 1]} : vector<8x512xf32> to vector<8x128xf32>
    %493 = arith.negf %492 : vector<8x128xf32>
    %494 = math.exp %493 : vector<8x128xf32>
    %cst_140 = arith.constant 1.000000e+00 : f32
    %495 = vector.broadcast %cst_140 : f32 to vector<8x128xf32>
    %496 = arith.addf %495, %494 : vector<8x128xf32>
    %497 = arith.divf %495, %496 : vector<8x128xf32>
    %498 = vector.extract_strided_slice %485 {offsets = [0, 256], sizes = [8, 128], strides = [1, 1]} : vector<8x512xf32> to vector<8x128xf32>
    %499 = math.tanh %498 : vector<8x128xf32>
    %500 = vector.extract_strided_slice %485 {offsets = [0, 384], sizes = [8, 128], strides = [1, 1]} : vector<8x512xf32> to vector<8x128xf32>
    %501 = arith.negf %500 : vector<8x128xf32>
    %502 = math.exp %501 : vector<8x128xf32>
    %cst_141 = arith.constant 1.000000e+00 : f32
    %503 = vector.broadcast %cst_141 : f32 to vector<8x128xf32>
    %504 = arith.addf %503, %502 : vector<8x128xf32>
    %505 = arith.divf %503, %504 : vector<8x128xf32>
    %506 = arith.mulf %497, %477 : vector<8x128xf32>
    %507 = arith.mulf %491, %499 : vector<8x128xf32>
    %508 = arith.addf %506, %507 : vector<8x128xf32>
    %509 = math.tanh %508 : vector<8x128xf32>
    %510 = arith.mulf %505, %509 : vector<8x128xf32>
    %c7_i32_142 = arith.constant 7 : i32
    %511 = arith.truncf %510 : vector<8x128xf32> to vector<8x128xbf16>
    %c0_143 = arith.constant 0 : index
    %c0_144 = arith.constant 0 : index
    %512 = vector.load %arg12[%c0_143, %c0_144] : memref<128x128xbf16, #tpu.memory_space<vmem>>, vector<128x128xbf16>
    %cst_145 = arith.constant dense<0.000000e+00> : vector<8x128xf32>
    %513 = tpu.matmul %511, %512, %cst_145 {dimension_numbers = #tpu.dot_dimension_numbers<[1], [0], [0], [1], [0, 0, 1, 1], [], []>} : vector<8x128xbf16>, vector<128x128xbf16>, vector<8x128xf32> -> vector<8x128xf32>
    %c0_146 = arith.constant 0 : index
    %c0_147 = arith.constant 0 : index
    %514 = vector.load %arg13[%c0_146, %c0_147] : memref<1x128xf32, #tpu.memory_space<vmem>>, vector<1x128xf32>
    %515 = vector.broadcast %514 : vector<1x128xf32> to vector<8x128xf32>
    %516 = arith.addf %513, %515 : vector<8x128xf32>
    %c0_148 = arith.constant 0 : index
    %c0_149 = arith.constant 0 : index
    %517 = vector.load %arg14[%c0_148, %c0_149] : memref<8x128xf32, #tpu.memory_space<vmem>>, vector<8x128xf32>
    tpu.vector_store %arg14[%c0_148, %c0_149], %516 {strides = array<i32>} : memref<8x128xf32, #tpu.memory_space<vmem>>, vector<8x128xf32>,
    return
  }
  func.func @transform_0(%arg0: i32) -> (i32, i32, i32) {
    %c0_i32 = arith.constant 0 : i32
    %c0_i32_0 = arith.constant 0 : i32
    %c0_i32_1 = arith.constant 0 : i32
    return %c0_i32, %arg0, %c0_i32_0 : i32, i32, i32
  }
  func.func @transform_1(%arg0: i32) -> (i32, i32) {
    %c0_i32 = arith.constant 0 : i32
    %c0_i32_0 = arith.constant 0 : i32
    %c0_i32_1 = arith.constant 0 : i32
    return %c0_i32, %c0_i32_0 : i32, i32
  }
  func.func @transform_2(%arg0: i32) -> (i32, i32) {
    %c0_i32 = arith.constant 0 : i32
    %c0_i32_0 = arith.constant 0 : i32
    %c0_i32_1 = arith.constant 0 : i32
    return %c0_i32, %c0_i32_0 : i32, i32
  }
  func.func @transform_3(%arg0: i32) -> (i32, i32) {
    %c0_i32 = arith.constant 0 : i32
    %c0_i32_0 = arith.constant 0 : i32
    %c0_i32_1 = arith.constant 0 : i32
    return %c0_i32, %c0_i32_0 : i32, i32
  }
  func.func @transform_4(%arg0: i32) -> (i32, i32) {
    %c0_i32 = arith.constant 0 : i32
    %c0_i32_0 = arith.constant 0 : i32
    %c0_i32_1 = arith.constant 0 : i32
    return %c0_i32, %c0_i32_0 : i32, i32
  }
  func.func @transform_5(%arg0: i32) -> (i32, i32) {
    %c0_i32 = arith.constant 0 : i32
    %c0_i32_0 = arith.constant 0 : i32
    %c0_i32_1 = arith.constant 0 : i32
    return %c0_i32, %c0_i32_0 : i32, i32
  }
  func.func @transform_6(%arg0: i32) -> (i32, i32) {
    %c0_i32 = arith.constant 0 : i32
    %c0_i32_0 = arith.constant 0 : i32
    %c0_i32_1 = arith.constant 0 : i32
    return %c0_i32, %c0_i32_0 : i32, i32
  }
  func.func @transform_7(%arg0: i32) -> (i32, i32) {
    %c0_i32 = arith.constant 0 : i32
    %c0_i32_0 = arith.constant 0 : i32
    %c0_i32_1 = arith.constant 0 : i32
    return %c0_i32, %c0_i32_0 : i32, i32
  }
  func.func @transform_8(%arg0: i32) -> (i32, i32) {
    %c0_i32 = arith.constant 0 : i32
    %c0_i32_0 = arith.constant 0 : i32
    %c0_i32_1 = arith.constant 0 : i32
    return %c0_i32, %c0_i32_0 : i32, i32
  }
  func.func @transform_9(%arg0: i32) -> (i32, i32) {
    %c0_i32 = arith.constant 0 : i32
    %c0_i32_0 = arith.constant 0 : i32
    %c0_i32_1 = arith.constant 0 : i32
    return %c0_i32, %c0_i32_0 : i32, i32
  }
  func.func @transform_10(%arg0: i32) -> (i32, i32) {
    %c0_i32 = arith.constant 0 : i32
    %c0_i32_0 = arith.constant 0 : i32
    %c0_i32_1 = arith.constant 0 : i32
    return %c0_i32, %c0_i32_0 : i32, i32
  }
  func.func @transform_11(%arg0: i32) -> (i32, i32) {
    %c0_i32 = arith.constant 0 : i32
    %c0_i32_0 = arith.constant 0 : i32
    %c0_i32_1 = arith.constant 0 : i32
    return %c0_i32, %c0_i32_0 : i32, i32
  }
  func.func @transform_12(%arg0: i32) -> (i32, i32) {
    %c0_i32 = arith.constant 0 : i32
    %c0_i32_0 = arith.constant 0 : i32
    %c0_i32_1 = arith.constant 0 : i32
    return %c0_i32, %c0_i32_0 : i32, i32
  }
  func.func @transform_13(%arg0: i32) -> (i32, i32) {
    %c0_i32 = arith.constant 0 : i32
    %c0_i32_0 = arith.constant 0 : i32
    return %arg0, %c0_i32 : i32, i32
  }
}

</mosaic_0001>

<llo_original>
// kernel: cnn_lstm_forward.1
$region0: #{cnn_lstm_forward.1}
  #allocation0 [shape = 'u32[]', space=smem, size = 0x4, offset = 0x4, fixed_abs, tag = 'smem constant byte address 0x4 - core index']
  #allocation1 [shape = 'u32[144,128]{1,0:T(1,128)}', space=vmem, size = 0x12000, scoped, tag = 'internal scratch']
  #allocation2 [shape = 'f32[7,8,512]{2,1,0:T(8,128)}', space=vmem, size = 0x1c000, scoped, tag = 'scratch operand']
  #allocation3 [shape = 'bf16[7,8,128]{2,1,0:T(8,128)(2,1)}', space=vmem, size = 0x3800, scoped, tag = 'scratch operand']
  %s0 = inlined_call_operand.vmem [shape: f32[7,8,8], index: 0, kind: input, shape index: {}]
  %s1 = inlined_call_operand.vmem [shape: f32[8,256], index: 1, kind: input, shape index: {}]
  %s2 = inlined_call_operand.vmem [shape: f32[1,128], index: 2, kind: input, shape index: {}]
  %s3 = inlined_call_operand.hbm [shape: bf16[128,128], index: 3, kind: input, shape index: {}]
  %s4 = inlined_call_operand.vmem [shape: f32[1,64], index: 4, kind: input, shape index: {}]
  %s5 = inlined_call_operand.vmem [shape: bf16[64,512], index: 5, kind: input, shape index: {}]
  %s6 = inlined_call_operand.vmem [shape: bf16[128,512], index: 6, kind: input, shape index: {}]
  %s7 = inlined_call_operand.hbm [shape: f32[1,512], index: 7, kind: input, shape index: {}]
  %s8 = inlined_call_operand.hbm [shape: bf16[128,512], index: 8, kind: input, shape index: {}]
  %s9 = inlined_call_operand.hbm [shape: bf16[128,512], index: 9, kind: input, shape index: {}]
  %s10 = inlined_call_operand.hbm [shape: f32[1,512], index: 10, kind: input, shape index: {}]
  %s11 = inlined_call_operand.hbm [shape: bf16[128,128], index: 11, kind: input, shape index: {}]
  %s12 = inlined_call_operand.hbm [shape: f32[1,128], index: 12, kind: input, shape index: {}]
  %s13 = inlined_call_operand.vmem [shape: f32[8,128], index: 13, kind: output, shape index: {}]
  %s14 = sld [smem:[#allocation0]]
  $region90: #{cnn_lstm_forward.1} parent=0
    _
  %s16 = ssub.s32 1, %s14
  %s17 = scalar_select 0, %s16, %s14
  $region1: #{cnn_lstm_forward.1} parent=0
    #allocation4 [shape = 'u8[32768]{0}', space=vmem, size = 0x8000, scoped, tag = 'input window, operand 3, single buffered']
    #allocation5 [shape = 's32[1]{0}', space=sflag, size = 0x4, scoped, tag = 'scoped memory for cnn_lstm_forward.1']
    #allocation6 [shape = 'u8[2048]{0}', space=vmem, size = 0x800, scoped, tag = 'input window, operand 7, single buffered']
    #allocation7 [shape = 's32[1]{0}', space=sflag, size = 0x4, scoped, tag = 'scoped memory for cnn_lstm_forward.1']
    #allocation8 [shape = 'u8[131072]{0}', space=vmem, size = 0x20000, scoped, tag = 'input window, operand 8, single buffered']
    #allocation9 [shape = 'u8[131072]{0}', space=vmem, size = 0x20000, scoped, tag = 'input window, operand 9, single buffered']
    #allocation10 [shape = 's32[1]{0}', space=sflag, size = 0x4, scoped, tag = 'scoped memory for cnn_lstm_forward.1']
    #allocation11 [shape = 'u8[2048]{0}', space=vmem, size = 0x800, scoped, tag = 'input window, operand 10, single buffered']
    #allocation12 [shape = 'u8[32768]{0}', space=vmem, size = 0x8000, scoped, tag = 'input window, operand 11, single buffered']
    #allocation13 [shape = 's32[1]{0}', space=sflag, size = 0x4, scoped, tag = 'scoped memory for cnn_lstm_forward.1']
    #allocation14 [shape = 'u8[512]{0}', space=vmem, size = 0x400, scoped, tag = 'input window, operand 12, single buffered']
    %18 = vsyncpa [#allocation5], 0
    %19 = vsyncpa [#allocation7], 0
    %20 = vsyncpa [#allocation10], 0
    %21 = vsyncpa [#allocation13], 0
    // Predicated region
    $region2: #{cnn_lstm_forward.1} parent=1 // pred_check
      _
    $region3: #{cnn_lstm_forward.1} parent=1 // pred_check_branch
      %23 = sbr.rel (0) target = $region5
    $region4: #{cnn_lstm_forward.1} parent=1 // pred_region
      _
    $region5: #{cnn_lstm_forward.1} parent=1 // pred_fallthru
      _
    // Predicated region
    $region6: #{cnn_lstm_forward.1} parent=1 // pred_check
      _
    $region7: #{cnn_lstm_forward.1} parent=1 // pred_check_branch
      %25 = sbr.rel (0) target = $region9
    $region8: #{cnn_lstm_forward.1} parent=1 // pred_region
      _
    $region9: #{cnn_lstm_forward.1} parent=1 // pred_fallthru
      _
    // Predicated region
    $region10: #{cnn_lstm_forward.1} parent=1 // pred_check
      _
    $region11: #{cnn_lstm_forward.1} parent=1 // pred_check_branch
      %27 = sbr.rel (0) target = $region13
    $region12: #{cnn_lstm_forward.1} parent=1 // pred_region
      _
    $region13: #{cnn_lstm_forward.1} parent=1 // pred_fallthru
      _
    // Predicated region
    $region14: #{cnn_lstm_forward.1} parent=1 // pred_check
      _
    $region15: #{cnn_lstm_forward.1} parent=1 // pred_check_branch
      %29 = sbr.rel (0) target = $region17
    $region16: #{cnn_lstm_forward.1} parent=1 // pred_region
      %s31 = ssub.s32 1024, 1024
      %32 = vsyncadd [#allocation5], %s31
      %s33 = sshll.u32 [#allocation4], 4
      %s34 = int_to_ptr.vmem [resolvable:$true] %s33
      %39 = dma.hbm_to_vmem [thread:$0]  %s3, 1024, %s34, [#allocation5], 64, 64, 4
    $region17: #{cnn_lstm_forward.1} parent=1 // pred_fallthru
      _
    // Predicated region
    $region18: #{cnn_lstm_forward.1} parent=1 // pred_check
      _
    $region19: #{cnn_lstm_forward.1} parent=1 // pred_check_branch
      %41 = sbr.rel (0) target = $region21
    $region20: #{cnn_lstm_forward.1} parent=1 // pred_region
      _
    $region21: #{cnn_lstm_forward.1} parent=1 // pred_fallthru
      _
    // Predicated region
    $region22: #{cnn_lstm_forward.1} parent=1 // pred_check
      _
    $region23: #{cnn_lstm_forward.1} parent=1 // pred_check_branch
      %43 = sbr.rel (0) target = $region25
    $region24: #{cnn_lstm_forward.1} parent=1 // pred_region
      _
    $region25: #{cnn_lstm_forward.1} parent=1 // pred_fallthru
      _
    // Predicated region
    $region26: #{cnn_lstm_forward.1} parent=1 // pred_check
      _
    $region27: #{cnn_lstm_forward.1} parent=1 // pred_check_branch
      %45 = sbr.rel (0) target = $region29
    $region28: #{cnn_lstm_forward.1} parent=1 // pred_region
      _
    $region29: #{cnn_lstm_forward.1} parent=1 // pred_fallthru
      _
    // Predicated region
    $region30: #{cnn_lstm_forward.1} parent=1 // pred_check
      _
    $region31: #{cnn_lstm_forward.1} parent=1 // pred_check_branch
      %47 = sbr.rel (0) target = $region33
    $region32: #{cnn_lstm_forward.1} parent=1 // pred_region
      %s49 = ssub.s32 64, 64
      %50 = vsyncadd [#allocation7], %s49
      %s52 = sshll.u32 [#allocation6], 4
      %s53 = int_to_ptr.vmem [resolvable:$true] %s52
      %55 = dma.hbm_to_vmem [thread:$0]  %s7, 64, %s53, [#allocation7]
    $region33: #{cnn_lstm_forward.1} parent=1 // pred_fallthru
      _
    // Predicated region
    $region34: #{cnn_lstm_forward.1} parent=1 // pred_check
      _
    $region35: #{cnn_lstm_forward.1} parent=1 // pred_check_branch
      %57 = sbr.rel (0) target = $region37
    $region36: #{cnn_lstm_forward.1} parent=1 // pred_region
      %s59 = ssub.s32 4096, 4096
      %60 = vsyncadd [#allocation7], %s59
      %s61 = sshll.u32 [#allocation8], 4
      %s62 = int_to_ptr.vmem [resolvable:$true] %s61
      %67 = dma.hbm_to_vmem [thread:$0]  %s8, 4096, %s62, [#allocation7], 256, 256, 16
    $region37: #{cnn_lstm_forward.1} parent=1 // pred_fallthru
      _
    // Predicated region
    $region38: #{cnn_lstm_forward.1} parent=1 // pred_check
      _
    $region39: #{cnn_lstm_forward.1} parent=1 // pred_check_branch
      %69 = sbr.rel (0) target = $region41
    $region40: #{cnn_lstm_forward.1} parent=1 // pred_region
      %s71 = ssub.s32 4096, 4096
      %72 = vsyncadd [#allocation10], %s71
      %s73 = sshll.u32 [#allocation9], 4
      %s74 = int_to_ptr.vmem [resolvable:$true] %s73
      %79 = dma.hbm_to_vmem [thread:$0]  %s9, 4096, %s74, [#allocation10], 256, 256, 16
    $region41: #{cnn_lstm_forward.1} parent=1 // pred_fallthru
      _
    // Predicated region
    $region42: #{cnn_lstm_forward.1} parent=1 // pred_check
      _
    $region43: #{cnn_lstm_forward.1} parent=1 // pred_check_branch
      %81 = sbr.rel (0) target = $region45
    $region44: #{cnn_lstm_forward.1} parent=1 // pred_region
      %s83 = ssub.s32 64, 64
      %84 = vsyncadd [#allocation10], %s83
      %s86 = sshll.u32 [#allocation11], 4
      %s87 = int_to_ptr.vmem [resolvable:$true] %s86
      %89 = dma.hbm_to_vmem [thread:$0]  %s10, 64, %s87, [#allocation10]
    $region45: #{cnn_lstm_forward.1} parent=1 // pred_fallthru
      _
    // Predicated region
    $region46: #{cnn_lstm_forward.1} parent=1 // pred_check
      _
    $region47: #{cnn_lstm_forward.1} parent=1 // pred_check_branch
      %91 = sbr.rel (0) target = $region49
    $region48: #{cnn_lstm_forward.1} parent=1 // pred_region
      %s93 = ssub.s32 1024, 1024
      %94 = vsyncadd [#allocation13], %s93
      %s95 = sshll.u32 [#allocation12], 4
      %s96 = int_to_ptr.vmem [resolvable:$true] %s95
      %101 = dma.hbm_to_vmem [thread:$0]  %s11, 1024, %s96, [#allocation13], 64, 64, 4
    $region49: #{cnn_lstm_forward.1} parent=1 // pred_fallthru
      _
    // Predicated region
    $region50: #{cnn_lstm_forward.1} parent=1 // pred_check
      _
    $region51: #{cnn_lstm_forward.1} parent=1 // pred_check_branch
      %103 = sbr.rel (0) target = $region53
    $region52: #{cnn_lstm_forward.1} parent=1 // pred_region
      %s105 = ssub.s32 16, 16
      %106 = vsyncadd [#allocation13], %s105
      %s108 = sshll.u32 [#allocation14], 4
      %s109 = int_to_ptr.vmem [resolvable:$true] %s108
      %111 = dma.hbm_to_vmem [thread:$0]  %s12, 16, %s109, [#allocation13]
    $region53: #{cnn_lstm_forward.1} parent=1 // pred_fallthru
      _
    // Predicated region
    $region54: #{cnn_lstm_forward.1} parent=1 // pred_check
      _
    $region55: #{cnn_lstm_forward.1} parent=1 // pred_check_branch
      %113 = sbr.rel (0) target = $region57
    $region56: #{cnn_lstm_forward.1} parent=1 // pred_region
      %114 = dma.done [#allocation5], 1024
    $region57: #{cnn_lstm_forward.1} parent=1 // pred_fallthru
      _
    // Predicated region
    $region58: #{cnn_lstm_forward.1} parent=1 // pred_check
      _
    $region59: #{cnn_lstm_forward.1} parent=1 // pred_check_branch
      %116 = sbr.rel (0) target = $region61
    $region60: #{cnn_lstm_forward.1} parent=1 // pred_region
      %117 = dma.done [#allocation7], 64
    $region61: #{cnn_lstm_forward.1} parent=1 // pred_fallthru
      _
    // Predicated region
    $region62: #{cnn_lstm_forward.1} parent=1 // pred_check
      _
    $region63: #{cnn_lstm_forward.1} parent=1 // pred_check_branch
      %119 = sbr.rel (0) target = $region65
    $region64: #{cnn_lstm_forward.1} parent=1 // pred_region
      %120 = dma.done [#allocation7], 4096
    $region65: #{cnn_lstm_forward.1} parent=1 // pred_fallthru
      _
    // Predicated region
    $region66: #{cnn_lstm_forward.1} parent=1 // pred_check
      _
    $region67: #{cnn_lstm_forward.1} parent=1 // pred_check_branch
      %122 = sbr.rel (0) target = $region69
    $region68: #{cnn_lstm_forward.1} parent=1 // pred_region
      %123 = dma.done [#allocation10], 4096
    $region69: #{cnn_lstm_forward.1} parent=1 // pred_fallthru
      _
    // Predicated region
    $region70: #{cnn_lstm_forward.1} parent=1 // pred_check
      _
    $region71: #{cnn_lstm_forward.1} parent=1 // pred_check_branch
      %125 = sbr.rel (0) target = $region73
    $region72: #{cnn_lstm_forward.1} parent=1 // pred_region
      %126 = dma.done [#allocation10], 64
    $region73: #{cnn_lstm_forward.1} parent=1 // pred_fallthru
      _
    // Predicated region
    $region74: #{cnn_lstm_forward.1} parent=1 // pred_check
      _
    $region75: #{cnn_lstm_forward.1} parent=1 // pred_check_branch
      %128 = sbr.rel (0) target = $region77
    $region76: #{cnn_lstm_forward.1} parent=1 // pred_region
      %129 = dma.done [#allocation13], 1024
    $region77: #{cnn_lstm_forward.1} parent=1 // pred_fallthru
      _
    // Predicated region
    $region78: #{cnn_lstm_forward.1} parent=1 // pred_check
      _
    $region79: #{cnn_lstm_forward.1} parent=1 // pred_check_branch
      %131 = sbr.rel (0) target = $region81
    $region80: #{cnn_lstm_forward.1} parent=1 // pred_region
      %132 = dma.done [#allocation13], 16
    $region81: #{cnn_lstm_forward.1} parent=1 // pred_fallthru
      _
    %v134 = vld [vmem:[%s0] sm:$0xff]
    %v135 = vld [vmem:[%s0 + $0x8] sm:$0xff]
    %v136 = vld [vmem:[%s0 + $0x10] sm:$0xff]
    %v137 = vld [vmem:[%s0 + $0x18] sm:$0xff]
    %v138 = vld [vmem:[%s0 + $0x20] sm:$0xff]
    %v139 = vld [vmem:[%s0 + $0x28] sm:$0xff]
    %v140 = vld [vmem:[%s0 + $0x30] sm:$0xff]
    %v141 = vld [vmem:[%s1] sm:$0xff]
    %v142 = vld [vmem:[%s1 + $0x8] sm:$0xff]
    %vm143 = vcmask 64512
    %v145 = vsel %vm143, %v134, 0
    %v148 = vsel %vm143, %v135, 0
    %v151 = vsel %vm143, %v136, 0
    %v154 = vsel %vm143, %v137, 0
    %v157 = vsel %vm143, %v138, 0
    %v160 = vsel %vm143, %v139, 0
    %v163 = vsel %vm143, %v140, 0
    %165 = vmatprep.subr.mxu0 %v142
    %166 = vmatpush1.msra.mxu0 %v141
    %167 = vmatprep.subr.mxu0 0.0
    %168 = vmatpush1.msra.mxu0 0.0
    %169 = vmatprep.subr.mxu0 0.0
    %170 = vmatpush1.msra.mxu0 0.0
    %171 = vmatprep.subr.mxu0 0.0
    %172 = vmatpush1.msra.mxu0 0.0
    %173 = vmatprep.subr.mxu0 0.0
    %174 = vmatpush1.msra.mxu0 0.0
    %175 = vmatprep.subr.mxu0 0.0
    %176 = vmatpush1.msra.mxu0 0.0
    %177 = vmatprep.subr.mxu0 0.0
    %178 = vmatpush1.msra.mxu0 0.0
    %179 = vmatprep.subr.mxu0 0.0
    %180 = vmatpush1.msra.mxu0 0.0
    %181 = vmatprep.subr.mxu0 0.0
    %182 = vmatpush1.msra.mxu0 0.0
    %183 = vmatprep.subr.mxu0 0.0
    %184 = vmatpush1.msra.mxu0 0.0
    %185 = vmatprep.subr.mxu0 0.0
    %186 = vmatpush1.msra.mxu0 0.0
    %187 = vmatprep.subr.mxu0 0.0
    %188 = vmatpush1.msra.mxu0 0.0
    %189 = vmatprep.subr.mxu0 0.0
    %190 = vmatpush1.msra.mxu0 0.0
    %191 = vmatprep.subr.mxu0 0.0
    %192 = vmatpush1.msra.mxu0 0.0
    %193 = vmatprep.subr.mxu0 0.0
    %194 = vmatpush1.msra.mxu0 0.0
    %195 = vmatprep.subr.mxu0 0.0
    %196 = vmatpush1.msra.mxu0 0.0
    %197 = vmatprep.subr.mxu0 0.0
    %198 = vmatpush1.msra.mxu0 0.0
    %199 = vmatprep.subr.mxu0 0.0
    %200 = vmatpush1.msra.mxu0 0.0
    %201 = vmatprep.subr.mxu0 0.0
    %202 = vmatpush1.msra.mxu0 0.0
    %203 = vmatprep.subr.mxu0 0.0
    %204 = vmatpush1.msra.mxu0 0.0
    %205 = vmatprep.subr.mxu0 0.0
    %206 = vmatpush1.msra.mxu0 0.0
    %207 = vmatprep.subr.mxu0 0.0
    %208 = vmatpush1.msra.mxu0 0.0
    %209 = vmatprep.subr.mxu0 0.0
    %210 = vmatpush1.msra.mxu0 0.0
    %211 = vmatprep.subr.mxu0 0.0
    %212 = vmatpush1.msra.mxu0 0.0
    %213 = vmatprep.subr.mxu0 0.0
    %214 = vmatpush1.msra.mxu0 0.0
    %215 = vmatprep.subr.mxu0 0.0
    %216 = vmatpush1.msra.mxu0 0.0
    %217 = vmatprep.subr.mxu0 0.0
    %218 = vmatpush1.msra.mxu0 0.0
    %219 = vmatprep.subr.mxu0 0.0
    %220 = vmatpush1.msra.mxu0 0.0
    %221 = vmatprep.subr.mxu0 0.0
    %222 = vmatpush1.msra.mxu0 0.0
    %223 = vmatprep.subr.mxu0 0.0
    %224 = vmatpush1.msra.mxu0 0.0
    %225 = vmatprep.subr.mxu0 0.0
    %226 = vmatpush1.msra.mxu0 0.0
    %227 = vmatprep.subr.mxu0 0.0
    %228 = vmatpush1.msra.mxu0 0.0
    %229 = vmatprep.mubr.f32.mxu0 0.0
    %230 = vmatmul.mubr.f32.gmra.mrb[0].mxu0 %v145
    %v231 = vpop.f32.mrb[0].mxu0
    %v232 = vadd.f32 0.0, %v231
    %v233 = vpop.f32.mrb[0].mxu0
    %v234 = vadd.f32 0.0, %v233
    %235 = vmatprep.mubr.f32.mxu0 0.0
    %236 = vmatmul.mubr.f32.gmra.mrb[0].mxu0 %v148
    %v237 = vpop.f32.mrb[0].mxu0
    %v238 = vadd.f32 0.0, %v237
    %v239 = vpop.f32.mrb[0].mxu0
    %v240 = vadd.f32 0.0, %v239
    %241 = vmatprep.mubr.f32.mxu0 0.0
    %242 = vmatmul.mubr.f32.gmra.mrb[0].mxu0 %v151
    %v243 = vpop.f32.mrb[0].mxu0
    %v244 = vadd.f32 0.0, %v243
    %v245 = vpop.f32.mrb[0].mxu0
    %v246 = vadd.f32 0.0, %v245
    %247 = vmatprep.mubr.f32.mxu0 0.0
    %248 = vmatmul.mubr.f32.gmra.mrb[0].mxu0 %v154
    %v249 = vpop.f32.mrb[0].mxu0
    %v250 = vadd.f32 0.0, %v249
    %v251 = vpop.f32.mrb[0].mxu0
    %v252 = vadd.f32 0.0, %v251
    %253 = vmatprep.mubr.f32.mxu0 0.0
    %254 = vmatmul.mubr.f32.gmra.mrb[0].mxu0 %v157
    %v255 = vpop.f32.mrb[0].mxu0
    %v256 = vadd.f32 0.0, %v255
    %v257 = vpop.f32.mrb[0].mxu0
    %v258 = vadd.f32 0.0, %v257
    %259 = vmatprep.mubr.f32.mxu0 0.0
    %260 = vmatmul.mubr.f32.gmra.mrb[0].mxu0 %v160
    %v261 = vpop.f32.mrb[0].mxu0
    %v262 = vadd.f32 0.0, %v261
    %v263 = vpop.f32.mrb[0].mxu0
    %v264 = vadd.f32 0.0, %v263
    %265 = vmatprep.mubr.f32.mxu0 0.0
    %266 = vmatmul.mubr.f32.gmra.mrb[0].mxu0 %v163
    %v267 = vpop.f32.mrb[0].mxu0
    %v268 = vadd.f32 0.0, %v267
    %v269 = vpop.f32.mrb[0].mxu0
    %v270 = vadd.f32 0.0, %v269
    %271 = vdwg.mxu0
    %v272 = vmax.f32 %v232, %v234
    %v273 = vmax.f32 %v238, %v240
    %v274 = vmax.f32 %v244, %v246
    %v275 = vmax.f32 %v250, %v252
    %v276 = vmax.f32 %v256, %v258
    %v277 = vmax.f32 %v262, %v264
    %v278 = vmax.f32 %v268, %v270
    %v279 = vld [vmem:[%s2] sm:$0x1]
    %v281 = vlaneseq
    %v282 = vshrl.u32 %v281, 7
    %v283 = vsub.s32 0, %v282
    %v284 = vrot.slane %v279, %v283
    %v286 = vadd.f32 %v272, %v284
    %v287 = vadd.f32 %v273, %v284
    %v288 = vadd.f32 %v274, %v284
    %v289 = vadd.f32 %v275, %v284
    %v290 = vadd.f32 %v276, %v284
    %v291 = vadd.f32 %v277, %v284
    %v292 = vadd.f32 %v278, %v284
    %v293 = vmax.f32 %v286, 0.0
    %v294 = vmax.f32 %v287, 0.0
    %v295 = vmax.f32 %v288, 0.0
    %v296 = vmax.f32 %v289, 0.0
    %v297 = vmax.f32 %v290, 0.0
    %v298 = vmax.f32 %v291, 0.0
    %v299 = vmax.f32 %v292, 0.0
    %v300 = vpack.c.bf16 %v294, %v293
    %v301 = vpack.c.bf16 %v296, %v295
    %v302 = vpack.c.bf16 %v298, %v297
    %v303 = vpack.c.bf16 %v299, %v299
    %v304 = vld [vmem:[#allocation4] sm:$0xf]
    %v305 = vld [vmem:[#allocation4 + $0x4] sm:$0xf]
    %v306 = vld [vmem:[#allocation4 + $0x8] sm:$0xf]
    %v307 = vld [vmem:[#allocation4 + $0xc] sm:$0xf]
    %v308 = vld [vmem:[#allocation4 + $0x10] sm:$0xf]
    %v309 = vld [vmem:[#allocation4 + $0x14] sm:$0xf]
    %v310 = vld [vmem:[#allocation4 + $0x18] sm:$0xf]
    %v311 = vld [vmem:[#allocation4 + $0x1c] sm:$0xf]
    %v312 = vld [vmem:[#allocation4 + $0x20] sm:$0xf]
    %v313 = vld [vmem:[#allocation4 + $0x24] sm:$0xf]
    %v314 = vld [vmem:[#allocation4 + $0x28] sm:$0xf]
    %v315 = vld [vmem:[#allocation4 + $0x2c] sm:$0xf]
    %v316 = vld [vmem:[#allocation4 + $0x30] sm:$0xf]
    %v317 = vld [vmem:[#allocation4 + $0x34] sm:$0xf]
    %v318 = vld [vmem:[#allocation4 + $0x38] sm:$0xf]
    %v319 = vld [vmem:[#allocation4 + $0x3c] sm:$0xf]
    %v336 = vunpack.c.l.b16 %v304
    %v337 = vunpack.c.l.b16 %v305
    %v338 = vunpack.c.l.b16 %v306
    %v339 = vunpack.c.l.b16 %v307
    %v340 = vunpack.c.l.b16 %v308
    %v341 = vunpack.c.l.b16 %v309
    %v342 = vunpack.c.l.b16 %v310
    %v343 = vunpack.c.l.b16 %v311
    %v344 = vunpack.c.l.b16 %v312
    %v345 = vunpack.c.l.b16 %v313
    %v346 = vunpack.c.l.b16 %v314
    %v347 = vunpack.c.l.b16 %v315
    %v348 = vunpack.c.l.b16 %v316
    %v349 = vunpack.c.l.b16 %v317
    %v350 = vunpack.c.l.b16 %v318
    %v351 = vunpack.c.l.b16 %v319
    %v352 = vpack.c.b16 %v337, %v336
    %v353 = vpack.c.b16 %v339, %v338
    %v354 = vpack.c.b16 %v341, %v340
    %v355 = vpack.c.b16 %v343, %v342
    %v356 = vpack.c.b16 %v345, %v344
    %v357 = vpack.c.b16 %v347, %v346
    %v358 = vpack.c.b16 %v349, %v348
    %v359 = vpack.c.b16 %v351, %v350
    %368 = vmatprep.subr.bf16.mxu0 0
    %369 = vmatpush1.bf16.msra.mxu0 %v352
    %370 = vmatprep.subr.bf16.mxu0 0
    %371 = vmatpush1.bf16.msra.mxu0 %v353
    %372 = vmatprep.subr.bf16.mxu0 0
    %373 = vmatpush1.bf16.msra.mxu0 %v354
    %374 = vmatprep.subr.bf16.mxu0 0
    %375 = vmatpush1.bf16.msra.mxu0 %v355
    %376 = vmatprep.subr.bf16.mxu0 0
    %377 = vmatpush1.bf16.msra.mxu0 %v356
    %378 = vmatprep.subr.bf16.mxu0 0
    %379 = vmatpush1.bf16.msra.mxu0 %v357
    %380 = vmatprep.subr.bf16.mxu0 0
    %381 = vmatpush1.bf16.msra.mxu0 %v358
    %382 = vmatprep.subr.bf16.mxu0 0
    %383 = vmatpush1.bf16.msra.mxu0 %v359
    %384 = vmatprep.subr.bf16.mxu0 0
    %385 = vmatpush1.bf16.msra.mxu0 0
    %386 = vmatprep.subr.bf16.mxu0 0
    %387 = vmatpush1.bf16.msra.mxu0 0
    %388 = vmatprep.subr.bf16.mxu0 0
    %389 = vmatpush1.bf16.msra.mxu0 0
    %390 = vmatprep.subr.bf16.mxu0 0
    %391 = vmatpush1.bf16.msra.mxu0 0
    %392 = vmatprep.subr.bf16.mxu0 0
    %393 = vmatpush1.bf16.msra.mxu0 0
    %394 = vmatprep.subr.bf16.mxu0 0
    %395 = vmatpush1.bf16.msra.mxu0 0
    %396 = vmatprep.subr.bf16.mxu0 0
    %397 = vmatpush1.bf16.msra.mxu0 0
    %398 = vmatprep.subr.bf16.mxu0 0
    %399 = vmatpush1.bf16.msra.mxu0 0
    %400 = vmatprep.mubr.bf16.mxu0 0
    %401 = vmatmul.mubr.bf16.gmra.mrb[0].mxu0 %v300
    %v402 = vpop.f32.mrb[0].mxu0
    %v403 = vadd.f32 0.0, %v402
    %v404 = vpop.f32.mrb[0].mxu0
    %v405 = vpop.f32.mrb[0].mxu0
    %v406 = vadd.f32 0.0, %v405
    %v407 = vpop.f32.mrb[0].mxu0
    %408 = vmatprep.mubr.bf16.mxu0 0
    %409 = vmatmul.mubr.bf16.gmra.mrb[0].mxu0 %v301
    %v410 = vpop.f32.mrb[0].mxu0
    %v411 = vadd.f32 0.0, %v410
    %v412 = vpop.f32.mrb[0].mxu0
    %v413 = vpop.f32.mrb[0].mxu0
    %v414 = vadd.f32 0.0, %v413
    %v415 = vpop.f32.mrb[0].mxu0
    %416 = vmatprep.mubr.bf16.mxu0 0
    %417 = vmatmul.mubr.bf16.gmra.mrb[0].mxu0 %v302
    %v418 = vpop.f32.mrb[0].mxu0
    %v419 = vadd.f32 0.0, %v418
    %v420 = vpop.f32.mrb[0].mxu0
    %v421 = vpop.f32.mrb[0].mxu0
    %v422 = vadd.f32 0.0, %v421
    %v423 = vpop.f32.mrb[0].mxu0
    %424 = vmatprep.mubr.bf16.mxu0 0
    %425 = vmatmul.mubr.bf16.gmra.mrb[0].mxu0 %v303
    %v426 = vpop.f32.mrb[0].mxu0
    %v427 = vadd.f32 0.0, %v426
    %v428 = vpop.f32.mrb[0].mxu0
    %v429 = vpop.f32.mrb[0].mxu0
    %v430 = vpop.f32.mrb[0].mxu0
    %431 = vdwg.mxu0
    %439 = vrot.lane.b32.xlu0 %v403, 64
    %v440 = vpop.permute.xlu0 %439
    %441 = vrot.lane.b32.xlu0 %v406, 64
    %v442 = vpop.permute.xlu0 %441
    %443 = vrot.lane.b32.xlu0 %v411, 64
    %v444 = vpop.permute.xlu0 %443
    %445 = vrot.lane.b32.xlu0 %v414, 64
    %v446 = vpop.permute.xlu0 %445
    %447 = vrot.lane.b32.xlu0 %v419, 64
    %v448 = vpop.permute.xlu0 %447
    %449 = vrot.lane.b32.xlu0 %v422, 64
    %v450 = vpop.permute.xlu0 %449
    %451 = vrot.lane.b32.xlu0 %v427, 64
    %v452 = vpop.permute.xlu0 %451
    %v460 = vmax.f32 %v403, %v440
    %v461 = vmax.f32 %v406, %v442
    %v462 = vmax.f32 %v411, %v444
    %v463 = vmax.f32 %v414, %v446
    %v464 = vmax.f32 %v419, %v448
    %v465 = vmax.f32 %v422, %v450
    %v466 = vmax.f32 %v427, %v452
    %v467 = vld [vmem:[%s4] sm:$0x1]
    %v469 = vlaneseq
    %v470 = vshrl.u32 %v469, 7
    %v471 = vsub.s32 0, %v470
    %v472 = vrot.slane %v467, %v471
    %v474 = vadd.f32 %v460, %v472
    %v475 = vadd.f32 %v461, %v472
    %v476 = vadd.f32 %v462, %v472
    %v477 = vadd.f32 %v463, %v472
    %v478 = vadd.f32 %v464, %v472
    %v479 = vadd.f32 %v465, %v472
    %v480 = vadd.f32 %v466, %v472
    %v481 = vpack.c.bf16 %v475, %v474
    %v482 = vpack.c.bf16 %v477, %v476
    %v483 = vpack.c.bf16 %v479, %v478
    %v484 = vpack.c.bf16 %v480, %v480
    %v485 = vld [vmem:[%s5] sm:$0xff]
    %v486 = vld [vmem:[%s5 + $0x8] sm:$0xff]
    %v487 = vld [vmem:[%s5 + $0x10] sm:$0xff]
    %v488 = vld [vmem:[%s5 + $0x18] sm:$0xff]
    %v489 = vld [vmem:[%s5 + $0x20] sm:$0xff]
    %v490 = vld [vmem:[%s5 + $0x28] sm:$0xff]
    %v491 = vld [vmem:[%s5 + $0x30] sm:$0xff]
    %v492 = vld [vmem:[%s5 + $0x38] sm:$0xff]
    %v493 = vld [vmem:[%s5 + $0x40] sm:$0xff]
    %v494 = vld [vmem:[%s5 + $0x48] sm:$0xff]
    %v495 = vld [vmem:[%s5 + $0x50] sm:$0xff]
    %v496 = vld [vmem:[%s5 + $0x58] sm:$0xff]
    %v497 = vld [vmem:[%s5 + $0x60] sm:$0xff]
    %v498 = vld [vmem:[%s5 + $0x68] sm:$0xff]
    %v499 = vld [vmem:[%s5 + $0x70] sm:$0xff]
    %v500 = vld [vmem:[%s5 + $0x78] sm:$0xff]
    %v501 = vld [vmem:[#allocation6] sm:$0xf]
    %v503 = vlaneseq
    %v504 = vshrl.u32 %v503, 7
    %v505 = vsub.s32 0, %v504
    %v506 = vrot.slane %v501, %v505
    %v507 = vlaneseq
    %v508 = vshrl.u32 %v507, 7
    %v509 = vsub.s32 1, %v508
    %v510 = vrot.slane %v501, %v509
    %v511 = vlaneseq
    %v512 = vshrl.u32 %v511, 7
    %v513 = vsub.s32 2, %v512
    %v514 = vrot.slane %v501, %v513
    %v515 = vlaneseq
    %v516 = vshrl.u32 %v515, 7
    %v517 = vsub.s32 3, %v516
    %v518 = vrot.slane %v501, %v517
    %v539 = vunpack.c.l.b16 %v485
    %v540 = vunpack.c.h.b16 %v485
    %v541 = vunpack.c.l.b16 %v486
    %v542 = vunpack.c.h.b16 %v486
    %v543 = vunpack.c.l.b16 %v487
    %v544 = vunpack.c.h.b16 %v487
    %v545 = vunpack.c.l.b16 %v488
    %v546 = vunpack.c.h.b16 %v488
    %v547 = vunpack.c.l.b16 %v489
    %v548 = vunpack.c.h.b16 %v489
    %v549 = vunpack.c.l.b16 %v490
    %v550 = vunpack.c.h.b16 %v490
    %v551 = vunpack.c.l.b16 %v491
    %v552 = vunpack.c.h.b16 %v491
    %v553 = vunpack.c.l.b16 %v492
    %v554 = vunpack.c.h.b16 %v492
    %v555 = vunpack.c.l.b16 %v493
    %v556 = vunpack.c.h.b16 %v493
    %v557 = vunpack.c.l.b16 %v494
    %v558 = vunpack.c.h.b16 %v494
    %v559 = vunpack.c.l.b16 %v495
    %v560 = vunpack.c.h.b16 %v495
    %v561 = vunpack.c.l.b16 %v496
    %v562 = vunpack.c.h.b16 %v496
    %v563 = vunpack.c.l.b16 %v497
    %v564 = vunpack.c.h.b16 %v497
    %v565 = vunpack.c.l.b16 %v498
    %v566 = vunpack.c.h.b16 %v498
    %v567 = vunpack.c.l.b16 %v499
    %v568 = vunpack.c.h.b16 %v499
    %v569 = vunpack.c.l.b16 %v500
    %v570 = vunpack.c.h.b16 %v500
    %v571 = vpack.c.b16 %v543, %v539
    %v572 = vpack.c.b16 %v544, %v540
    %v573 = vpack.c.b16 %v545, %v541
    %v574 = vpack.c.b16 %v546, %v542
    %v575 = vpack.c.b16 %v551, %v547
    %v576 = vpack.c.b16 %v552, %v548
    %v577 = vpack.c.b16 %v553, %v549
    %v578 = vpack.c.b16 %v554, %v550
    %v579 = vpack.c.b16 %v559, %v555
    %v580 = vpack.c.b16 %v560, %v556
    %v581 = vpack.c.b16 %v561, %v557
    %v582 = vpack.c.b16 %v562, %v558
    %v583 = vpack.c.b16 %v567, %v563
    %v584 = vpack.c.b16 %v568, %v564
    %v585 = vpack.c.b16 %v569, %v565
    %v586 = vpack.c.b16 %v570, %v566
    %vm603 = vcmask 523264
    %v605 = vsel %vm603, %v481, 0
    %v608 = vsel %vm603, %v482, 0
    %v611 = vsel %vm603, %v483, 0
    %v614 = vsel %vm603, %v484, 0
    %616 = vmatprep.subr.bf16.mxu0 %v572
    %617 = vmatpush1.bf16.msra.mxu0 %v571
    %618 = vmatprep.subr.bf16.mxu0 %v576
    %619 = vmatpush1.bf16.msra.mxu0 %v575
    %620 = vmatprep.subr.bf16.mxu0 %v580
    %621 = vmatpush1.bf16.msra.mxu0 %v579
    %622 = vmatprep.subr.bf16.mxu0 %v584
    %623 = vmatpush1.bf16.msra.mxu0 %v583
    %624 = vmatprep.subr.bf16.mxu0 0
    %625 = vmatpush1.bf16.msra.mxu0 0
    %626 = vmatprep.subr.bf16.mxu0 0
    %627 = vmatpush1.bf16.msra.mxu0 0
    %628 = vmatprep.subr.bf16.mxu0 0
    %629 = vmatpush1.bf16.msra.mxu0 0
    %630 = vmatprep.subr.bf16.mxu0 0
    %631 = vmatpush1.bf16.msra.mxu0 0
    %632 = vmatprep.subr.bf16.mxu0 0
    %633 = vmatpush1.bf16.msra.mxu0 0
    %634 = vmatprep.subr.bf16.mxu0 0
    %635 = vmatpush1.bf16.msra.mxu0 0
    %636 = vmatprep.subr.bf16.mxu0 0
    %637 = vmatpush1.bf16.msra.mxu0 0
    %638 = vmatprep.subr.bf16.mxu0 0
    %639 = vmatpush1.bf16.msra.mxu0 0
    %640 = vmatprep.subr.bf16.mxu0 0
    %641 = vmatpush1.bf16.msra.mxu0 0
    %642 = vmatprep.subr.bf16.mxu0 0
    %643 = vmatpush1.bf16.msra.mxu0 0
    %644 = vmatprep.subr.bf16.mxu0 0
    %645 = vmatpush1.bf16.msra.mxu0 0
    %646 = vmatprep.subr.bf16.mxu0 0
    %647 = vmatpush1.bf16.msra.mxu0 0
    %648 = vmatprep.mubr.bf16.mxu0 0
    %649 = vmatmul.mubr.bf16.gmra.mrb[0].mxu0 %v605
    %v650 = vpop.f32.mrb[0].mxu0
    %v651 = vadd.f32 %v506, %v650
    %v652 = vpop.f32.mrb[0].mxu0
    %v653 = vadd.f32 %v510, %v652
    %v654 = vpop.f32.mrb[0].mxu0
    %v655 = vadd.f32 %v506, %v654
    %v656 = vpop.f32.mrb[0].mxu0
    %v657 = vadd.f32 %v510, %v656
    %658 = vmatprep.mubr.bf16.mxu0 0
    %659 = vmatmul.mubr.bf16.gmra.mrb[0].mxu0 %v608
    %v660 = vpop.f32.mrb[0].mxu0
    %v661 = vadd.f32 %v506, %v660
    %v662 = vpop.f32.mrb[0].mxu0
    %v663 = vadd.f32 %v510, %v662
    %v664 = vpop.f32.mrb[0].mxu0
    %v665 = vadd.f32 %v506, %v664
    %v666 = vpop.f32.mrb[0].mxu0
    %v667 = vadd.f32 %v510, %v666
    %668 = vmatprep.mubr.bf16.mxu0 0
    %669 = vmatmul.mubr.bf16.gmra.mrb[0].mxu0 %v611
    %v670 = vpop.f32.mrb[0].mxu0
    %v671 = vadd.f32 %v506, %v670
    %v672 = vpop.f32.mrb[0].mxu0
    %v673 = vadd.f32 %v510, %v672
    %v674 = vpop.f32.mrb[0].mxu0
    %v675 = vadd.f32 %v506, %v674
    %v676 = vpop.f32.mrb[0].mxu0
    %v677 = vadd.f32 %v510, %v676
    %678 = vmatprep.mubr.bf16.mxu0 0
    %679 = vmatmul.mubr.bf16.gmra.mrb[0].mxu0 %v614
    %v680 = vpop.f32.mrb[0].mxu0
    %v681 = vadd.f32 %v506, %v680
    %v682 = vpop.f32.mrb[0].mxu0
    %v683 = vadd.f32 %v510, %v682
    %v684 = vpop.f32.mrb[0].mxu0
    %v685 = vpop.f32.mrb[0].mxu0
    %686 = vdwg.mxu0
    %687 = vmatprep.subr.bf16.mxu0 %v574
    %688 = vmatpush1.bf16.msra.mxu0 %v573
    %689 = vmatprep.subr.bf16.mxu0 %v578
    %690 = vmatpush1.bf16.msra.mxu0 %v577
    %691 = vmatprep.subr.bf16.mxu0 %v582
    %692 = vmatpush1.bf16.msra.mxu0 %v581
    %693 = vmatprep.subr.bf16.mxu0 %v586
    %694 = vmatpush1.bf16.msra.mxu0 %v585
    %695 = vmatprep.subr.bf16.mxu0 0
    %696 = vmatpush1.bf16.msra.mxu0 0
    %697 = vmatprep.subr.bf16.mxu0 0
    %698 = vmatpush1.bf16.msra.mxu0 0
    %699 = vmatprep.subr.bf16.mxu0 0
    %700 = vmatpush1.bf16.msra.mxu0 0
    %701 = vmatprep.subr.bf16.mxu0 0
    %702 = vmatpush1.bf16.msra.mxu0 0
    %703 = vmatprep.subr.bf16.mxu0 0
    %704 = vmatpush1.bf16.msra.mxu0 0
    %705 = vmatprep.subr.bf16.mxu0 0
    %706 = vmatpush1.bf16.msra.mxu0 0
    %707 = vmatprep.subr.bf16.mxu0 0
    %708 = vmatpush1.bf16.msra.mxu0 0
    %709 = vmatprep.subr.bf16.mxu0 0
    %710 = vmatpush1.bf16.msra.mxu0 0
    %711 = vmatprep.subr.bf16.mxu0 0
    %712 = vmatpush1.bf16.msra.mxu0 0
    %713 = vmatprep.subr.bf16.mxu0 0
    %714 = vmatpush1.bf16.msra.mxu0 0
    %715 = vmatprep.subr.bf16.mxu0 0
    %716 = vmatpush1.bf16.msra.mxu0 0
    %717 = vmatprep.subr.bf16.mxu0 0
    %718 = vmatpush1.bf16.msra.mxu0 0
    %719 = vmatprep.mubr.bf16.mxu0 0
    %720 = vmatmul.mubr.bf16.gmra.mrb[0].mxu0 %v605
    %v721 = vpop.f32.mrb[0].mxu0
    %v722 = vadd.f32 %v514, %v721
    %v723 = vpop.f32.mrb[0].mxu0
    %v724 = vadd.f32 %v518, %v723
    %v725 = vpop.f32.mrb[0].mxu0
    %v726 = vadd.f32 %v514, %v725
    %v727 = vpop.f32.mrb[0].mxu0
    %v728 = vadd.f32 %v518, %v727
    %729 = vmatprep.mubr.bf16.mxu0 0
    %730 = vmatmul.mubr.bf16.gmra.mrb[0].mxu0 %v608
    %v731 = vpop.f32.mrb[0].mxu0
    %v732 = vadd.f32 %v514, %v731
    %v733 = vpop.f32.mrb[0].mxu0
    %v734 = vadd.f32 %v518, %v733
    %v735 = vpop.f32.mrb[0].mxu0
    %v736 = vadd.f32 %v514, %v735
    %v737 = vpop.f32.mrb[0].mxu0
    %v738 = vadd.f32 %v518, %v737
    %739 = vmatprep.mubr.bf16.mxu0 0
    %740 = vmatmul.mubr.bf16.gmra.mrb[0].mxu0 %v611
    %v741 = vpop.f32.mrb[0].mxu0
    %v742 = vadd.f32 %v514, %v741
    %v743 = vpop.f32.mrb[0].mxu0
    %v744 = vadd.f32 %v518, %v743
    %v745 = vpop.f32.mrb[0].mxu0
    %v746 = vadd.f32 %v514, %v745
    %v747 = vpop.f32.mrb[0].mxu0
    %v748 = vadd.f32 %v518, %v747
    %749 = vmatprep.mubr.bf16.mxu0 0
    %750 = vmatmul.mubr.bf16.gmra.mrb[0].mxu0 %v614
    %v751 = vpop.f32.mrb[0].mxu0
    %v752 = vadd.f32 %v514, %v751
    %v753 = vpop.f32.mrb[0].mxu0
    %v754 = vadd.f32 %v518, %v753
    %v755 = vpop.f32.mrb[0].mxu0
    %v756 = vpop.f32.mrb[0].mxu0
    %757 = vdwg.mxu0
    %758 = vst [vmem:[#allocation2] sm:$0xff] %v651
    %759 = vst [vmem:[#allocation2 + $0x8] sm:$0xff] %v653
    %760 = vst [vmem:[#allocation2 + $0x10] sm:$0xff] %v722
    %761 = vst [vmem:[#allocation2 + $0x18] sm:$0xff] %v724
    %762 = vst [vmem:[#allocation2 + $0x20] sm:$0xff] %v655
    %763 = vst [vmem:[#allocation2 + $0x28] sm:$0xff] %v657
    %764 = vst [vmem:[#allocation2 + $0x30] sm:$0xff] %v726
    %765 = vst [vmem:[#allocation2 + $0x38] sm:$0xff] %v728
    %766 = vst [vmem:[#allocation2 + $0x40] sm:$0xff] %v661
    %767 = vst [vmem:[#allocation2 + $0x48] sm:$0xff] %v663
    %768 = vst [vmem:[#allocation2 + $0x50] sm:$0xff] %v732
    %769 = vst [vmem:[#allocation2 + $0x58] sm:$0xff] %v734
    %770 = vst [vmem:[#allocation2 + $0x60] sm:$0xff] %v665
    %771 = vst [vmem:[#allocation2 + $0x68] sm:$0xff] %v667
    %772 = vst [vmem:[#allocation2 + $0x70] sm:$0xff] %v736
    %773 = vst [vmem:[#allocation2 + $0x78] sm:$0xff] %v738
    %774 = vst [vmem:[#allocation2 + $0x80] sm:$0xff] %v671
    %775 = vst [vmem:[#allocation2 + $0x88] sm:$0xff] %v673
    %776 = vst [vmem:[#allocation2 + $0x90] sm:$0xff] %v742
    %777 = vst [vmem:[#allocation2 + $0x98] sm:$0xff] %v744
    %778 = vst [vmem:[#allocation2 + $0xa0] sm:$0xff] %v675
    %779 = vst [vmem:[#allocation2 + $0xa8] sm:$0xff] %v677
    %780 = vst [vmem:[#allocation2 + $0xb0] sm:$0xff] %v746
    %781 = vst [vmem:[#allocation2 + $0xb8] sm:$0xff] %v748
    %782 = vst [vmem:[#allocation2 + $0xc0] sm:$0xff] %v681
    %783 = vst [vmem:[#allocation2 + $0xc8] sm:$0xff] %v683
    %784 = vst [vmem:[#allocation2 + $0xd0] sm:$0xff] %v752
    %785 = vst [vmem:[#allocation2 + $0xd8] sm:$0xff] %v754
    %v786 = vld [vmem:[%s6] sm:$0xff]
    %v787 = vld [vmem:[%s6 + $0x8] sm:$0xff]
    %v788 = vld [vmem:[%s6 + $0x10] sm:$0xff]
    %v789 = vld [vmem:[%s6 + $0x18] sm:$0xff]
    %v790 = vld [vmem:[%s6 + $0x20] sm:$0xff]
    %v791 = vld [vmem:[%s6 + $0x28] sm:$0xff]
    %v792 = vld [vmem:[%s6 + $0x30] sm:$0xff]
    %v793 = vld [vmem:[%s6 + $0x38] sm:$0xff]
    %v794 = vld [vmem:[%s6 + $0x40] sm:$0xff]
    %v795 = vld [vmem:[%s6 + $0x48] sm:$0xff]
    %v796 = vld [vmem:[%s6 + $0x50] sm:$0xff]
    %v797 = vld [vmem:[%s6 + $0x58] sm:$0xff]
    %v798 = vld [vmem:[%s6 + $0x60] sm:$0xff]
    %v799 = vld [vmem:[%s6 + $0x68] sm:$0xff]
    %v800 = vld [vmem:[%s6 + $0x70] sm:$0xff]
    %v801 = vld [vmem:[%s6 + $0x78] sm:$0xff]
    %v802 = vld [vmem:[%s6 + $0x80] sm:$0xff]
    %v803 = vld [vmem:[%s6 + $0x88] sm:$0xff]
    %v804 = vld [vmem:[%s6 + $0x90] sm:$0xff]
    %v805 = vld [vmem:[%s6 + $0x98] sm:$0xff]
    %v806 = vld [vmem:[%s6 + $0xa0] sm:$0xff]
    %v807 = vld [vmem:[%s6 + $0xa8] sm:$0xff]
    %v808 = vld [vmem:[%s6 + $0xb0] sm:$0xff]
    %v809 = vld [vmem:[%s6 + $0xb8] sm:$0xff]
    %v810 = vld [vmem:[%s6 + $0xc0] sm:$0xff]
    %v811 = vld [vmem:[%s6 + $0xc8] sm:$0xff]
    %v812 = vld [vmem:[%s6 + $0xd0] sm:$0xff]
    %v813 = vld [vmem:[%s6 + $0xd8] sm:$0xff]
    %v814 = vld [vmem:[%s6 + $0xe0] sm:$0xff]
    %v815 = vld [vmem:[%s6 + $0xe8] sm:$0xff]
    %v816 = vld [vmem:[%s6 + $0xf0] sm:$0xff]
    %v817 = vld [vmem:[%s6 + $0xf8] sm:$0xff]
    %v818 = vld [vmem:[#allocation2] sm:$0xff]
    %v819 = vld [vmem:[#allocation2 + $0x8] sm:$0xff]
    %v820 = vld [vmem:[#allocation2 + $0x10] sm:$0xff]
    %v821 = vld [vmem:[#allocation2 + $0x18] sm:$0xff]
    %v854 = vunpack.c.l.b16 %v786
    %v855 = vunpack.c.h.b16 %v786
    %v856 = vunpack.c.l.b16 %v787
    %v857 = vunpack.c.h.b16 %v787
    %v858 = vunpack.c.l.b16 %v788
    %v859 = vunpack.c.h.b16 %v788
    %v860 = vunpack.c.l.b16 %v789
    %v861 = vunpack.c.h.b16 %v789
    %v862 = vunpack.c.l.b16 %v790
    %v863 = vunpack.c.h.b16 %v790
    %v864 = vunpack.c.l.b16 %v791
    %v865 = vunpack.c.h.b16 %v791
    %v866 = vunpack.c.l.b16 %v792
    %v867 = vunpack.c.h.b16 %v792
    %v868 = vunpack.c.l.b16 %v793
    %v869 = vunpack.c.h.b16 %v793
    %v870 = vunpack.c.l.b16 %v794
    %v871 = vunpack.c.h.b16 %v794
    %v872 = vunpack.c.l.b16 %v795
    %v873 = vunpack.c.h.b16 %v795
    %v874 = vunpack.c.l.b16 %v796
    %v875 = vunpack.c.h.b16 %v796
    %v876 = vunpack.c.l.b16 %v797
    %v877 = vunpack.c.h.b16 %v797
    %v878 = vunpack.c.l.b16 %v798
    %v879 = vunpack.c.h.b16 %v798
    %v880 = vunpack.c.l.b16 %v799
    %v881 = vunpack.c.h.b16 %v799
    %v882 = vunpack.c.l.b16 %v800
    %v883 = vunpack.c.h.b16 %v800
    %v884 = vunpack.c.l.b16 %v801
    %v885 = vunpack.c.h.b16 %v801
    %v886 = vunpack.c.l.b16 %v802
    %v887 = vunpack.c.h.b16 %v802
    %v888 = vunpack.c.l.b16 %v803
    %v889 = vunpack.c.h.b16 %v803
    %v890 = vunpack.c.l.b16 %v804
    %v891 = vunpack.c.h.b16 %v804
    %v892 = vunpack.c.l.b16 %v805
    %v893 = vunpack.c.h.b16 %v805
    %v894 = vunpack.c.l.b16 %v806
    %v895 = vunpack.c.h.b16 %v806
    %v896 = vunpack.c.l.b16 %v807
    %v897 = vunpack.c.h.b16 %v807
    %v898 = vunpack.c.l.b16 %v808
    %v899 = vunpack.c.h.b16 %v808
    %v900 = vunpack.c.l.b16 %v809
    %v901 = vunpack.c.h.b16 %v809
    %v902 = vunpack.c.l.b16 %v810
    %v903 = vunpack.c.h.b16 %v810
    %v904 = vunpack.c.l.b16 %v811
    %v905 = vunpack.c.h.b16 %v811
    %v906 = vunpack.c.l.b16 %v812
    %v907 = vunpack.c.h.b16 %v812
    %v908 = vunpack.c.l.b16 %v813
    %v909 = vunpack.c.h.b16 %v813
    %v910 = vunpack.c.l.b16 %v814
    %v911 = vunpack.c.h.b16 %v814
    %v912 = vunpack.c.l.b16 %v815
    %v913 = vunpack.c.h.b16 %v815
    %v914 = vunpack.c.l.b16 %v816
    %v915 = vunpack.c.h.b16 %v816
    %v916 = vunpack.c.l.b16 %v817
    %v917 = vunpack.c.h.b16 %v817
    %v918 = vpack.c.b16 %v858, %v854
    %v919 = vpack.c.b16 %v859, %v855
    %v920 = vpack.c.b16 %v860, %v856
    %v921 = vpack.c.b16 %v861, %v857
    %v922 = vpack.c.b16 %v866, %v862
    %v923 = vpack.c.b16 %v867, %v863
    %v924 = vpack.c.b16 %v868, %v864
    %v925 = vpack.c.b16 %v869, %v865
    %v926 = vpack.c.b16 %v874, %v870
    %v927 = vpack.c.b16 %v875, %v871
    %v928 = vpack.c.b16 %v876, %v872
    %v929 = vpack.c.b16 %v877, %v873
    %v930 = vpack.c.b16 %v882, %v878
    %v931 = vpack.c.b16 %v883, %v879
    %v932 = vpack.c.b16 %v884, %v880
    %v933 = vpack.c.b16 %v885, %v881
    %v934 = vpack.c.b16 %v890, %v886
    %v935 = vpack.c.b16 %v891, %v887
    %v936 = vpack.c.b16 %v892, %v888
    %v937 = vpack.c.b16 %v893, %v889
    %v938 = vpack.c.b16 %v898, %v894
    %v939 = vpack.c.b16 %v899, %v895
    %v940 = vpack.c.b16 %v900, %v896
    %v941 = vpack.c.b16 %v901, %v897
    %v942 = vpack.c.b16 %v906, %v902
    %v943 = vpack.c.b16 %v907, %v903
    %v944 = vpack.c.b16 %v908, %v904
    %v945 = vpack.c.b16 %v909, %v905
    %v946 = vpack.c.b16 %v914, %v910
    %v947 = vpack.c.b16 %v915, %v911
    %v948 = vpack.c.b16 %v916, %v912
    %v949 = vpack.c.b16 %v917, %v913
    %982 = vmatprep.subr.bf16.mxu0 %v919
    %983 = vmatpush1.bf16.msra.mxu0 %v918
    %984 = vmatprep.subr.bf16.mxu0 %v923
    %985 = vmatpush1.bf16.msra.mxu0 %v922
    %986 = vmatprep.subr.bf16.mxu0 %v927
    %987 = vmatpush1.bf16.msra.mxu0 %v926
    %988 = vmatprep.subr.bf16.mxu0 %v931
    %989 = vmatpush1.bf16.msra.mxu0 %v930
    %990 = vmatprep.subr.bf16.mxu0 %v935
    %991 = vmatpush1.bf16.msra.mxu0 %v934
    %992 = vmatprep.subr.bf16.mxu0 %v939
    %993 = vmatpush1.bf16.msra.mxu0 %v938
    %994 = vmatprep.subr.bf16.mxu0 %v943
    %995 = vmatpush1.bf16.msra.mxu0 %v942
    %996 = vmatprep.subr.bf16.mxu0 %v947
    %997 = vmatpush1.bf16.msra.mxu0 %v946
    %998 = vmatprep.subr.bf16.mxu0 0
    %999 = vmatpush1.bf16.msra.mxu0 0
    %1000 = vmatprep.subr.bf16.mxu0 0
    %1001 = vmatpush1.bf16.msra.mxu0 0
    %1002 = vmatprep.subr.bf16.mxu0 0
    %1003 = vmatpush1.bf16.msra.mxu0 0
    %1004 = vmatprep.subr.bf16.mxu0 0
    %1005 = vmatpush1.bf16.msra.mxu0 0
    %1006 = vmatprep.subr.bf16.mxu0 0
    %1007 = vmatpush1.bf16.msra.mxu0 0
    %1008 = vmatprep.subr.bf16.mxu0 0
    %1009 = vmatpush1.bf16.msra.mxu0 0
    %1010 = vmatprep.subr.bf16.mxu0 0
    %1011 = vmatpush1.bf16.msra.mxu0 0
    %1012 = vmatprep.subr.bf16.mxu0 0
    %1013 = vmatpush1.bf16.msra.mxu0 0
    %1014 = vmatprep.mubr.bf16.mxu0 0
    %1015 = vmatmul.mubr.bf16.gmra.mrb[0].mxu0 0
    %v1016 = vpop.f32.mrb[0].mxu0
    %v1017 = vadd.f32 0.0, %v1016
    %v1018 = vpop.f32.mrb[0].mxu0
    %v1019 = vadd.f32 0.0, %v1018
    %v1020 = vpop.f32.mrb[0].mxu0
    %v1021 = vpop.f32.mrb[0].mxu0
    %1022 = vdwg.mxu0
    %1023 = vmatprep.subr.bf16.mxu0 %v921
    %1024 = vmatpush1.bf16.msra.mxu0 %v920
    %1025 = vmatprep.subr.bf16.mxu0 %v925
    %1026 = vmatpush1.bf16.msra.mxu0 %v924
    %1027 = vmatprep.subr.bf16.mxu0 %v929
    %1028 = vmatpush1.bf16.msra.mxu0 %v928
    %1029 = vmatprep.subr.bf16.mxu0 %v933
    %1030 = vmatpush1.bf16.msra.mxu0 %v932
    %1031 = vmatprep.subr.bf16.mxu0 %v937
    %1032 = vmatpush1.bf16.msra.mxu0 %v936
    %1033 = vmatprep.subr.bf16.mxu0 %v941
    %1034 = vmatpush1.bf16.msra.mxu0 %v940
    %1035 = vmatprep.subr.bf16.mxu0 %v945
    %1036 = vmatpush1.bf16.msra.mxu0 %v944
    %1037 = vmatprep.subr.bf16.mxu0 %v949
    %1038 = vmatpush1.bf16.msra.mxu0 %v948
    %1039 = vmatprep.subr.bf16.mxu0 0
    %1040 = vmatpush1.bf16.msra.mxu0 0
    %1041 = vmatprep.subr.bf16.mxu0 0
    %1042 = vmatpush1.bf16.msra.mxu0 0
    %1043 = vmatprep.subr.bf16.mxu0 0
    %1044 = vmatpush1.bf16.msra.mxu0 0
    %1045 = vmatprep.subr.bf16.mxu0 0
    %1046 = vmatpush1.bf16.msra.mxu0 0
    %1047 = vmatprep.subr.bf16.mxu0 0
    %1048 = vmatpush1.bf16.msra.mxu0 0
    %1049 = vmatprep.subr.bf16.mxu0 0
    %1050 = vmatpush1.bf16.msra.mxu0 0
    %1051 = vmatprep.subr.bf16.mxu0 0
    %1052 = vmatpush1.bf16.msra.mxu0 0
    %1053 = vmatprep.subr.bf16.mxu0 0
    %1054 = vmatpush1.bf16.msra.mxu0 0
    %1055 = vmatprep.mubr.bf16.mxu0 0
    %1056 = vmatmul.mubr.bf16.gmra.mrb[0].mxu0 0
    %v1057 = vpop.f32.mrb[0].mxu0
    %v1058 = vadd.f32 0.0, %v1057
    %v1059 = vpop.f32.mrb[0].mxu0
    %v1060 = vadd.f32 0.0, %v1059
    %v1061 = vpop.f32.mrb[0].mxu0
    %v1062 = vpop.f32.mrb[0].mxu0
    %1063 = vdwg.mxu0
    %v1064 = vadd.f32 %v818, %v1017
    %v1065 = vadd.f32 %v819, %v1019
    %v1066 = vadd.f32 %v820, %v1058
    %v1067 = vadd.f32 %v821, %v1060
    %v1068 = vxor.u32 %v1064, 2147483648
    %v1069 = vmul.f32 %v1068, 1.442695
    %v1070 = vpow.pop %v1069
    %v1071 = vadd.f32 %v1070, 1.0
    %v1072 = vrcp.pop %v1071
    %v1073 = vmul.f32 1.0, %v1072
    %v1074 = vxor.u32 %v1065, 2147483648
    %v1075 = vmul.f32 %v1074, 1.442695
    %v1076 = vpow.pop %v1075
    %v1077 = vadd.f32 %v1076, 1.0
    %v1078 = vrcp.pop %v1077
    %v1079 = vmul.f32 1.0, %v1078
    %v1080 = vtanh.pop %v1066
    %v1081 = vxor.u32 %v1067, 2147483648
    %v1082 = vmul.f32 %v1081, 1.442695
    %v1083 = vpow.pop %v1082
    %v1084 = vadd.f32 %v1083, 1.0
    %v1085 = vrcp.pop %v1084
    %v1086 = vmul.f32 1.0, %v1085
    %v1087 = vmul.f32 %v1079, 0.0
    %v1088 = vmul.f32 %v1073, %v1080
    %v1089 = vadd.f32 %v1087, %v1088
    %v1090 = vtanh.pop %v1089
    %v1091 = vmul.f32 %v1086, %v1090
    %v1092 = vpack.c.bf16 %v1091, %v1091
    %1093 = vst [vmem:[#allocation3] sm:$0xf] %v1092
    %s1094 = scalar_lea.vmem [#allocation2], 32
    %v1095 = vld [vmem:[%s1094] sm:$0xff]
    %v1096 = vld [vmem:[%s1094 + $0x8] sm:$0xff]
    %v1097 = vld [vmem:[%s1094 + $0x10] sm:$0xff]
    %v1098 = vld [vmem:[%s1094 + $0x18] sm:$0xff]
    %1099 = vmatprep.subr.bf16.mxu0 %v919
    %1100 = vmatpush1.bf16.msra.mxu0 %v918
    %1101 = vmatprep.subr.bf16.mxu0 %v923
    %1102 = vmatpush1.bf16.msra.mxu0 %v922
    %1103 = vmatprep.subr.bf16.mxu0 %v927
    %1104 = vmatpush1.bf16.msra.mxu0 %v926
    %1105 = vmatprep.subr.bf16.mxu0 %v931
    %1106 = vmatpush1.bf16.msra.mxu0 %v930
    %1107 = vmatprep.subr.bf16.mxu0 %v935
    %1108 = vmatpush1.bf16.msra.mxu0 %v934
    %1109 = vmatprep.subr.bf16.mxu0 %v939
    %1110 = vmatpush1.bf16.msra.mxu0 %v938
    %1111 = vmatprep.subr.bf16.mxu0 %v943
    %1112 = vmatpush1.bf16.msra.mxu0 %v942
    %1113 = vmatprep.subr.bf16.mxu0 %v947
    %1114 = vmatpush1.bf16.msra.mxu0 %v946
    %1115 = vmatprep.subr.bf16.mxu0 0
    %1116 = vmatpush1.bf16.msra.mxu0 0
    %1117 = vmatprep.subr.bf16.mxu0 0
    %1118 = vmatpush1.bf16.msra.mxu0 0
    %1119 = vmatprep.subr.bf16.mxu0 0
    %1120 = vmatpush1.bf16.msra.mxu0 0
    %1121 = vmatprep.subr.bf16.mxu0 0
    %1122 = vmatpush1.bf16.msra.mxu0 0
    %1123 = vmatprep.subr.bf16.mxu0 0
    %1124 = vmatpush1.bf16.msra.mxu0 0
    %1125 = vmatprep.subr.bf16.mxu0 0
    %1126 = vmatpush1.bf16.msra.mxu0 0
    %1127 = vmatprep.subr.bf16.mxu0 0
    %1128 = vmatpush1.bf16.msra.mxu0 0
    %1129 = vmatprep.subr.bf16.mxu0 0
    %1130 = vmatpush1.bf16.msra.mxu0 0
    %1131 = vmatprep.mubr.bf16.mxu0 0
    %1132 = vmatmul.mubr.bf16.gmra.mrb[0].mxu0 %v1092
    %v1133 = vpop.f32.mrb[0].mxu0
    %v1134 = vadd.f32 0.0, %v1133
    %v1135 = vpop.f32.mrb[0].mxu0
    %v1136 = vadd.f32 0.0, %v1135
    %v1137 = vpop.f32.mrb[0].mxu0
    %v1138 = vpop.f32.mrb[0].mxu0
    %1139 = vdwg.mxu0
    %1140 = vmatprep.subr.bf16.mxu0 %v921
    %1141 = vmatpush1.bf16.msra.mxu0 %v920
    %1142 = vmatprep.subr.bf16.mxu0 %v925
    %1143 = vmatpush1.bf16.msra.mxu0 %v924
    %1144 = vmatprep.subr.bf16.mxu0 %v929
    %1145 = vmatpush1.bf16.msra.mxu0 %v928
    %1146 = vmatprep.subr.bf16.mxu0 %v933
    %1147 = vmatpush1.bf16.msra.mxu0 %v932
    %1148 = vmatprep.subr.bf16.mxu0 %v937
    %1149 = vmatpush1.bf16.msra.mxu0 %v936
    %1150 = vmatprep.subr.bf16.mxu0 %v941
    %1151 = vmatpush1.bf16.msra.mxu0 %v940
    %1152 = vmatprep.subr.bf16.mxu0 %v945
    %1153 = vmatpush1.bf16.msra.mxu0 %v944
    %1154 = vmatprep.subr.bf16.mxu0 %v949
    %1155 = vmatpush1.bf16.msra.mxu0 %v948
    %1156 = vmatprep.subr.bf16.mxu0 0
    %1157 = vmatpush1.bf16.msra.mxu0 0
    %1158 = vmatprep.subr.bf16.mxu0 0
    %1159 = vmatpush1.bf16.msra.mxu0 0
    %1160 = vmatprep.subr.bf16.mxu0 0
    %1161 = vmatpush1.bf16.msra.mxu0 0
    %1162 = vmatprep.subr.bf16.mxu0 0
    %1163 = vmatpush1.bf16.msra.mxu0 0
    %1164 = vmatprep.subr.bf16.mxu0 0
    %1165 = vmatpush1.bf16.msra.mxu0 0
    %1166 = vmatprep.subr.bf16.mxu0 0
    %1167 = vmatpush1.bf16.msra.mxu0 0
    %1168 = vmatprep.subr.bf16.mxu0 0
    %1169 = vmatpush1.bf16.msra.mxu0 0
    %1170 = vmatprep.subr.bf16.mxu0 0
    %1171 = vmatpush1.bf16.msra.mxu0 0
    %1172 = vmatprep.mubr.bf16.mxu0 0
    %1173 = vmatmul.mubr.bf16.gmra.mrb[0].mxu0 %v1092
    %v1174 = vpop.f32.mrb[0].mxu0
    %v1175 = vadd.f32 0.0, %v1174
    %v1176 = vpop.f32.mrb[0].mxu0
    %v1177 = vadd.f32 0.0, %v1176
    %v1178 = vpop.f32.mrb[0].mxu0
    %v1179 = vpop.f32.mrb[0].mxu0
    %1180 = vdwg.mxu0
    %v1181 = vadd.f32 %v1095, %v1134
    %v1182 = vadd.f32 %v1096, %v1136
    %v1183 = vadd.f32 %v1097, %v1175
    %v1184 = vadd.f32 %v1098, %v1177
    %v1185 = vxor.u32 %v1181, 2147483648
    %v1186 = vmul.f32 %v1185, 1.442695
    %v1187 = vpow.pop %v1186
    %v1188 = vadd.f32 %v1187, 1.0
    %v1189 = vrcp.pop %v1188
    %v1190 = vmul.f32 1.0, %v1189
    %v1191 = vxor.u32 %v1182, 2147483648
    %v1192 = vmul.f32 %v1191, 1.442695
    %v1193 = vpow.pop %v1192
    %v1194 = vadd.f32 %v1193, 1.0
    %v1195 = vrcp.pop %v1194
    %v1196 = vmul.f32 1.0, %v1195
    %v1197 = vtanh.pop %v1183
    %v1198 = vxor.u32 %v1184, 2147483648
    %v1199 = vmul.f32 %v1198, 1.442695
    %v1200 = vpow.pop %v1199
    %v1201 = vadd.f32 %v1200, 1.0
    %v1202 = vrcp.pop %v1201
    %v1203 = vmul.f32 1.0, %v1202
    %v1204 = vmul.f32 %v1196, %v1089
    %v1205 = vmul.f32 %v1190, %v1197
    %v1206 = vadd.f32 %v1204, %v1205
    %v1207 = vtanh.pop %v1206
    %v1208 = vmul.f32 %v1203, %v1207
    %v1209 = vpack.c.bf16 %v1208, %v1208
    %s1210 = scalar_lea.vmem [#allocation3], 4
    %1211 = vst [vmem:[%s1210] sm:$0xf] %v1209
    %s1212 = scalar_lea.vmem [#allocation2], 64
    %v1213 = vld [vmem:[%s1212] sm:$0xff]
    %v1214 = vld [vmem:[%s1212 + $0x8] sm:$0xff]
    %v1215 = vld [vmem:[%s1212 + $0x10] sm:$0xff]
    %v1216 = vld [vmem:[%s1212 + $0x18] sm:$0xff]
    %1217 = vmatprep.subr.bf16.mxu0 %v919
    %1218 = vmatpush1.bf16.msra.mxu0 %v918
    %1219 = vmatprep.subr.bf16.mxu0 %v923
    %1220 = vmatpush1.bf16.msra.mxu0 %v922
    %1221 = vmatprep.subr.bf16.mxu0 %v927
    %1222 = vmatpush1.bf16.msra.mxu0 %v926
    %1223 = vmatprep.subr.bf16.mxu0 %v931
    %1224 = vmatpush1.bf16.msra.mxu0 %v930
    %1225 = vmatprep.subr.bf16.mxu0 %v935
    %1226 = vmatpush1.bf16.msra.mxu0 %v934
    %1227 = vmatprep.subr.bf16.mxu0 %v939
    %1228 = vmatpush1.bf16.msra.mxu0 %v938
    %1229 = vmatprep.subr.bf16.mxu0 %v943
    %1230 = vmatpush1.bf16.msra.mxu0 %v942
    %1231 = vmatprep.subr.bf16.mxu0 %v947
    %1232 = vmatpush1.bf16.msra.mxu0 %v946
    %1233 = vmatprep.subr.bf16.mxu0 0
    %1234 = vmatpush1.bf16.msra.mxu0 0
    %1235 = vmatprep.subr.bf16.mxu0 0
    %1236 = vmatpush1.bf16.msra.mxu0 0
    %1237 = vmatprep.subr.bf16.mxu0 0
    %1238 = vmatpush1.bf16.msra.mxu0 0
    %1239 = vmatprep.subr.bf16.mxu0 0
    %1240 = vmatpush1.bf16.msra.mxu0 0
    %1241 = vmatprep.subr.bf16.mxu0 0
    %1242 = vmatpush1.bf16.msra.mxu0 0
    %1243 = vmatprep.subr.bf16.mxu0 0
    %1244 = vmatpush1.bf16.msra.mxu0 0
    %1245 = vmatprep.subr.bf16.mxu0 0
    %1246 = vmatpush1.bf16.msra.mxu0 0
    %1247 = vmatprep.subr.bf16.mxu0 0
    %1248 = vmatpush1.bf16.msra.mxu0 0
    %1249 = vmatprep.mubr.bf16.mxu0 0
    %1250 = vmatmul.mubr.bf16.gmra.mrb[0].mxu0 %v1209
    %v1251 = vpop.f32.mrb[0].mxu0
    %v1252 = vadd.f32 0.0, %v1251
    %v1253 = vpop.f32.mrb[0].mxu0
    %v1254 = vadd.f32 0.0, %v1253
    %v1255 = vpop.f32.mrb[0].mxu0
    %v1256 = vpop.f32.mrb[0].mxu0
    %1257 = vdwg.mxu0
    %1258 = vmatprep.subr.bf16.mxu0 %v921
    %1259 = vmatpush1.bf16.msra.mxu0 %v920
    %1260 = vmatprep.subr.bf16.mxu0 %v925
    %1261 = vmatpush1.bf16.msra.mxu0 %v924
    %1262 = vmatprep.subr.bf16.mxu0 %v929
    %1263 = vmatpush1.bf16.msra.mxu0 %v928
    %1264 = vmatprep.subr.bf16.mxu0 %v933
    %1265 = vmatpush1.bf16.msra.mxu0 %v932
    %1266 = vmatprep.subr.bf16.mxu0 %v937
    %1267 = vmatpush1.bf16.msra.mxu0 %v936
    %1268 = vmatprep.subr.bf16.mxu0 %v941
    %1269 = vmatpush1.bf16.msra.mxu0 %v940
    %1270 = vmatprep.subr.bf16.mxu0 %v945
    %1271 = vmatpush1.bf16.msra.mxu0 %v944
    %1272 = vmatprep.subr.bf16.mxu0 %v949
    %1273 = vmatpush1.bf16.msra.mxu0 %v948
    %1274 = vmatprep.subr.bf16.mxu0 0
    %1275 = vmatpush1.bf16.msra.mxu0 0
    %1276 = vmatprep.subr.bf16.mxu0 0
    %1277 = vmatpush1.bf16.msra.mxu0 0
    %1278 = vmatprep.subr.bf16.mxu0 0
    %1279 = vmatpush1.bf16.msra.mxu0 0
    %1280 = vmatprep.subr.bf16.mxu0 0
    %1281 = vmatpush1.bf16.msra.mxu0 0
    %1282 = vmatprep.subr.bf16.mxu0 0
    %1283 = vmatpush1.bf16.msra.mxu0 0
    %1284 = vmatprep.subr.bf16.mxu0 0
    %1285 = vmatpush1.bf16.msra.mxu0 0
    %1286 = vmatprep.subr.bf16.mxu0 0
    %1287 = vmatpush1.bf16.msra.mxu0 0
    %1288 = vmatprep.subr.bf16.mxu0 0
    %1289 = vmatpush1.bf16.msra.mxu0 0
    %1290 = vmatprep.mubr.bf16.mxu0 0
    %1291 = vmatmul.mubr.bf16.gmra.mrb[0].mxu0 %v1209
    %v1292 = vpop.f32.mrb[0].mxu0
    %v1293 = vadd.f32 0.0, %v1292
    %v1294 = vpop.f32.mrb[0].mxu0
    %v1295 = vadd.f32 0.0, %v1294
    %v1296 = vpop.f32.mrb[0].mxu0
    %v1297 = vpop.f32.mrb[0].mxu0
    %1298 = vdwg.mxu0
    %v1299 = vadd.f32 %v1213, %v1252
    %v1300 = vadd.f32 %v1214, %v1254
    %v1301 = vadd.f32 %v1215, %v1293
    %v1302 = vadd.f32 %v1216, %v1295
    %v1303 = vxor.u32 %v1299, 2147483648
    %v1304 = vmul.f32 %v1303, 1.442695
    %v1305 = vpow.pop %v1304
    %v1306 = vadd.f32 %v1305, 1.0
    %v1307 = vrcp.pop %v1306
    %v1308 = vmul.f32 1.0, %v1307
    %v1309 = vxor.u32 %v1300, 2147483648
    %v1310 = vmul.f32 %v1309, 1.442695
    %v1311 = vpow.pop %v1310
    %v1312 = vadd.f32 %v1311, 1.0
    %v1313 = vrcp.pop %v1312
    %v1314 = vmul.f32 1.0, %v1313
    %v1315 = vtanh.pop %v1301
    %v1316 = vxor.u32 %v1302, 2147483648
    %v1317 = vmul.f32 %v1316, 1.442695
    %v1318 = vpow.pop %v1317
    %v1319 = vadd.f32 %v1318, 1.0
    %v1320 = vrcp.pop %v1319
    %v1321 = vmul.f32 1.0, %v1320
    %v1322 = vmul.f32 %v1314, %v1206
    %v1323 = vmul.f32 %v1308, %v1315
    %v1324 = vadd.f32 %v1322, %v1323
    %v1325 = vtanh.pop %v1324
    %v1326 = vmul.f32 %v1321, %v1325
    %v1327 = vpack.c.bf16 %v1326, %v1326
    %s1328 = scalar_lea.vmem [#allocation3], 8
    %1329 = vst [vmem:[%s1328] sm:$0xf] %v1327
    %s1330 = scalar_lea.vmem [#allocation2], 96
    %v1331 = vld [vmem:[%s1330] sm:$0xff]
    %v1332 = vld [vmem:[%s1330 + $0x8] sm:$0xff]
    %v1333 = vld [vmem:[%s1330 + $0x10] sm:$0xff]
    %v1334 = vld [vmem:[%s1330 + $0x18] sm:$0xff]
    %1335 = vmatprep.subr.bf16.mxu0 %v919
    %1336 = vmatpush1.bf16.msra.mxu0 %v918
    %1337 = vmatprep.subr.bf16.mxu0 %v923
    %1338 = vmatpush1.bf16.msra.mxu0 %v922
    %1339 = vmatprep.subr.bf16.mxu0 %v927
    %1340 = vmatpush1.bf16.msra.mxu0 %v926
    %1341 = vmatprep.subr.bf16.mxu0 %v931
    %1342 = vmatpush1.bf16.msra.mxu0 %v930
    %1343 = vmatprep.subr.bf16.mxu0 %v935
    %1344 = vmatpush1.bf16.msra.mxu0 %v934
    %1345 = vmatprep.subr.bf16.mxu0 %v939
    %1346 = vmatpush1.bf16.msra.mxu0 %v938
    %1347 = vmatprep.subr.bf16.mxu0 %v943
    %1348 = vmatpush1.bf16.msra.mxu0 %v942
    %1349 = vmatprep.subr.bf16.mxu0 %v947
    %1350 = vmatpush1.bf16.msra.mxu0 %v946
    %1351 = vmatprep.subr.bf16.mxu0 0
    %1352 = vmatpush1.bf16.msra.mxu0 0
    %1353 = vmatprep.subr.bf16.mxu0 0
    %1354 = vmatpush1.bf16.msra.mxu0 0
    %1355 = vmatprep.subr.bf16.mxu0 0
    %1356 = vmatpush1.bf16.msra.mxu0 0
    %1357 = vmatprep.subr.bf16.mxu0 0
    %1358 = vmatpush1.bf16.msra.mxu0 0
    %1359 = vmatprep.subr.bf16.mxu0 0
    %1360 = vmatpush1.bf16.msra.mxu0 0
    %1361 = vmatprep.subr.bf16.mxu0 0
    %1362 = vmatpush1.bf16.msra.mxu0 0
    %1363 = vmatprep.subr.bf16.mxu0 0
    %1364 = vmatpush1.bf16.msra.mxu0 0
    %1365 = vmatprep.subr.bf16.mxu0 0
    %1366 = vmatpush1.bf16.msra.mxu0 0
    %1367 = vmatprep.mubr.bf16.mxu0 0
    %1368 = vmatmul.mubr.bf16.gmra.mrb[0].mxu0 %v1327
    %v1369 = vpop.f32.mrb[0].mxu0
    %v1370 = vadd.f32 0.0, %v1369
    %v1371 = vpop.f32.mrb[0].mxu0
    %v1372 = vadd.f32 0.0, %v1371
    %v1373 = vpop.f32.mrb[0].mxu0
    %v1374 = vpop.f32.mrb[0].mxu0
    %1375 = vdwg.mxu0
    %1376 = vmatprep.subr.bf16.mxu0 %v921
    %1377 = vmatpush1.bf16.msra.mxu0 %v920
    %1378 = vmatprep.subr.bf16.mxu0 %v925
    %1379 = vmatpush1.bf16.msra.mxu0 %v924
    %1380 = vmatprep.subr.bf16.mxu0 %v929
    %1381 = vmatpush1.bf16.msra.mxu0 %v928
    %1382 = vmatprep.subr.bf16.mxu0 %v933
    %1383 = vmatpush1.bf16.msra.mxu0 %v932
    %1384 = vmatprep.subr.bf16.mxu0 %v937
    %1385 = vmatpush1.bf16.msra.mxu0 %v936
    %1386 = vmatprep.subr.bf16.mxu0 %v941
    %1387 = vmatpush1.bf16.msra.mxu0 %v940
    %1388 = vmatprep.subr.bf16.mxu0 %v945
    %1389 = vmatpush1.bf16.msra.mxu0 %v944
    %1390 = vmatprep.subr.bf16.mxu0 %v949
    %1391 = vmatpush1.bf16.msra.mxu0 %v948
    %1392 = vmatprep.subr.bf16.mxu0 0
    %1393 = vmatpush1.bf16.msra.mxu0 0
    %1394 = vmatprep.subr.bf16.mxu0 0
    %1395 = vmatpush1.bf16.msra.mxu0 0
    %1396 = vmatprep.subr.bf16.mxu0 0
    %1397 = vmatpush1.bf16.msra.mxu0 0
    %1398 = vmatprep.subr.bf16.mxu0 0
    %1399 = vmatpush1.bf16.msra.mxu0 0
    %1400 = vmatprep.subr.bf16.mxu0 0
    %1401 = vmatpush1.bf16.msra.mxu0 0
    %1402 = vmatprep.subr.bf16.mxu0 0
    %1403 = vmatpush1.bf16.msra.mxu0 0
    %1404 = vmatprep.subr.bf16.mxu0 0
    %1405 = vmatpush1.bf16.msra.mxu0 0
    %1406 = vmatprep.subr.bf16.mxu0 0
    %1407 = vmatpush1.bf16.msra.mxu0 0
    %1408 = vmatprep.mubr.bf16.mxu0 0
    %1409 = vmatmul.mubr.bf16.gmra.mrb[0].mxu0 %v1327
    %v1410 = vpop.f32.mrb[0].mxu0
    %v1411 = vadd.f32 0.0, %v1410
    %v1412 = vpop.f32.mrb[0].mxu0
    %v1413 = vadd.f32 0.0, %v1412
    %v1414 = vpop.f32.mrb[0].mxu0
    %v1415 = vpop.f32.mrb[0].mxu0
    %1416 = vdwg.mxu0
    %v1417 = vadd.f32 %v1331, %v1370
    %v1418 = vadd.f32 %v1332, %v1372
    %v1419 = vadd.f32 %v1333, %v1411
    %v1420 = vadd.f32 %v1334, %v1413
    %v1421 = vxor.u32 %v1417, 2147483648
    %v1422 = vmul.f32 %v1421, 1.442695
    %v1423 = vpow.pop %v1422
    %v1424 = vadd.f32 %v1423, 1.0
    %v1425 = vrcp.pop %v1424
    %v1426 = vmul.f32 1.0, %v1425
    %v1427 = vxor.u32 %v1418, 2147483648
    %v1428 = vmul.f32 %v1427, 1.442695
    %v1429 = vpow.pop %v1428
    %v1430 = vadd.f32 %v1429, 1.0
    %v1431 = vrcp.pop %v1430
    %v1432 = vmul.f32 1.0, %v1431
    %v1433 = vtanh.pop %v1419
    %v1434 = vxor.u32 %v1420, 2147483648
    %v1435 = vmul.f32 %v1434, 1.442695
    %v1436 = vpow.pop %v1435
    %v1437 = vadd.f32 %v1436, 1.0
    %v1438 = vrcp.pop %v1437
    %v1439 = vmul.f32 1.0, %v1438
    %v1440 = vmul.f32 %v1432, %v1324
    %v1441 = vmul.f32 %v1426, %v1433
    %v1442 = vadd.f32 %v1440, %v1441
    %v1443 = vtanh.pop %v1442
    %v1444 = vmul.f32 %v1439, %v1443
    %v1445 = vpack.c.bf16 %v1444, %v1444
    %s1446 = scalar_lea.vmem [#allocation3], 12
    %1447 = vst [vmem:[%s1446] sm:$0xf] %v1445
    %s1448 = scalar_lea.vmem [#allocation2], 128
    %v1449 = vld [vmem:[%s1448] sm:$0xff]
    %v1450 = vld [vmem:[%s1448 + $0x8] sm:$0xff]
    %v1451 = vld [vmem:[%s1448 + $0x10] sm:$0xff]
    %v1452 = vld [vmem:[%s1448 + $0x18] sm:$0xff]
    %1453 = vmatprep.subr.bf16.mxu0 %v919
    %1454 = vmatpush1.bf16.msra.mxu0 %v918
    %1455 = vmatprep.subr.bf16.mxu0 %v923
    %1456 = vmatpush1.bf16.msra.mxu0 %v922
    %1457 = vmatprep.subr.bf16.mxu0 %v927
    %1458 = vmatpush1.bf16.msra.mxu0 %v926
    %1459 = vmatprep.subr.bf16.mxu0 %v931
    %1460 = vmatpush1.bf16.msra.mxu0 %v930
    %1461 = vmatprep.subr.bf16.mxu0 %v935
    %1462 = vmatpush1.bf16.msra.mxu0 %v934
    %1463 = vmatprep.subr.bf16.mxu0 %v939
    %1464 = vmatpush1.bf16.msra.mxu0 %v938
    %1465 = vmatprep.subr.bf16.mxu0 %v943
    %1466 = vmatpush1.bf16.msra.mxu0 %v942
    %1467 = vmatprep.subr.bf16.mxu0 %v947
    %1468 = vmatpush1.bf16.msra.mxu0 %v946
    %1469 = vmatprep.subr.bf16.mxu0 0
    %1470 = vmatpush1.bf16.msra.mxu0 0
    %1471 = vmatprep.subr.bf16.mxu0 0
    %1472 = vmatpush1.bf16.msra.mxu0 0
    %1473 = vmatprep.subr.bf16.mxu0 0
    %1474 = vmatpush1.bf16.msra.mxu0 0
    %1475 = vmatprep.subr.bf16.mxu0 0
    %1476 = vmatpush1.bf16.msra.mxu0 0
    %1477 = vmatprep.subr.bf16.mxu0 0
    %1478 = vmatpush1.bf16.msra.mxu0 0
    %1479 = vmatprep.subr.bf16.mxu0 0
    %1480 = vmatpush1.bf16.msra.mxu0 0
    %1481 = vmatprep.subr.bf16.mxu0 0
    %1482 = vmatpush1.bf16.msra.mxu0 0
    %1483 = vmatprep.subr.bf16.mxu0 0
    %1484 = vmatpush1.bf16.msra.mxu0 0
    %1485 = vmatprep.mubr.bf16.mxu0 0
    %1486 = vmatmul.mubr.bf16.gmra.mrb[0].mxu0 %v1445
    %v1487 = vpop.f32.mrb[0].mxu0
    %v1488 = vadd.f32 0.0, %v1487
    %v1489 = vpop.f32.mrb[0].mxu0
    %v1490 = vadd.f32 0.0, %v1489
    %v1491 = vpop.f32.mrb[0].mxu0
    %v1492 = vpop.f32.mrb[0].mxu0
    %1493 = vdwg.mxu0
    %1494 = vmatprep.subr.bf16.mxu0 %v921
    %1495 = vmatpush1.bf16.msra.mxu0 %v920
    %1496 = vmatprep.subr.bf16.mxu0 %v925
    %1497 = vmatpush1.bf16.msra.mxu0 %v924
    %1498 = vmatprep.subr.bf16.mxu0 %v929
    %1499 = vmatpush1.bf16.msra.mxu0 %v928
    %1500 = vmatprep.subr.bf16.mxu0 %v933
    %1501 = vmatpush1.bf16.msra.mxu0 %v932
    %1502 = vmatprep.subr.bf16.mxu0 %v937
    %1503 = vmatpush1.bf16.msra.mxu0 %v936
    %1504 = vmatprep.subr.bf16.mxu0 %v941
    %1505 = vmatpush1.bf16.msra.mxu0 %v940
    %1506 = vmatprep.subr.bf16.mxu0 %v945
    %1507 = vmatpush1.bf16.msra.mxu0 %v944
    %1508 = vmatprep.subr.bf16.mxu0 %v949
    %1509 = vmatpush1.bf16.msra.mxu0 %v948
    %1510 = vmatprep.subr.bf16.mxu0 0
    %1511 = vmatpush1.bf16.msra.mxu0 0
    %1512 = vmatprep.subr.bf16.mxu0 0
    %1513 = vmatpush1.bf16.msra.mxu0 0
    %1514 = vmatprep.subr.bf16.mxu0 0
    %1515 = vmatpush1.bf16.msra.mxu0 0
    %1516 = vmatprep.subr.bf16.mxu0 0
    %1517 = vmatpush1.bf16.msra.mxu0 0
    %1518 = vmatprep.subr.bf16.mxu0 0
    %1519 = vmatpush1.bf16.msra.mxu0 0
    %1520 = vmatprep.subr.bf16.mxu0 0
    %1521 = vmatpush1.bf16.msra.mxu0 0
    %1522 = vmatprep.subr.bf16.mxu0 0
    %1523 = vmatpush1.bf16.msra.mxu0 0
    %1524 = vmatprep.subr.bf16.mxu0 0
    %1525 = vmatpush1.bf16.msra.mxu0 0
    %1526 = vmatprep.mubr.bf16.mxu0 0
    %1527 = vmatmul.mubr.bf16.gmra.mrb[0].mxu0 %v1445
    %v1528 = vpop.f32.mrb[0].mxu0
    %v1529 = vadd.f32 0.0, %v1528
    %v1530 = vpop.f32.mrb[0].mxu0
    %v1531 = vadd.f32 0.0, %v1530
    %v1532 = vpop.f32.mrb[0].mxu0
    %v1533 = vpop.f32.mrb[0].mxu0
    %1534 = vdwg.mxu0
    %v1535 = vadd.f32 %v1449, %v1488
    %v1536 = vadd.f32 %v1450, %v1490
    %v1537 = vadd.f32 %v1451, %v1529
    %v1538 = vadd.f32 %v1452, %v1531
    %v1539 = vxor.u32 %v1535, 2147483648
    %v1540 = vmul.f32 %v1539, 1.442695
    %v1541 = vpow.pop %v1540
    %v1542 = vadd.f32 %v1541, 1.0
    %v1543 = vrcp.pop %v1542
    %v1544 = vmul.f32 1.0, %v1543
    %v1545 = vxor.u32 %v1536, 2147483648
    %v1546 = vmul.f32 %v1545, 1.442695
    %v1547 = vpow.pop %v1546
    %v1548 = vadd.f32 %v1547, 1.0
    %v1549 = vrcp.pop %v1548
    %v1550 = vmul.f32 1.0, %v1549
    %v1551 = vtanh.pop %v1537
    %v1552 = vxor.u32 %v1538, 2147483648
    %v1553 = vmul.f32 %v1552, 1.442695
    %v1554 = vpow.pop %v1553
    %v1555 = vadd.f32 %v1554, 1.0
    %v1556 = vrcp.pop %v1555
    %v1557 = vmul.f32 1.0, %v1556
    %v1558 = vmul.f32 %v1550, %v1442
    %v1559 = vmul.f32 %v1544, %v1551
    %v1560 = vadd.f32 %v1558, %v1559
    %v1561 = vtanh.pop %v1560
    %v1562 = vmul.f32 %v1557, %v1561
    %v1563 = vpack.c.bf16 %v1562, %v1562
    %s1564 = scalar_lea.vmem [#allocation3], 16
    %1565 = vst [vmem:[%s1564] sm:$0xf] %v1563
    %s1566 = scalar_lea.vmem [#allocation2], 160
    %v1567 = vld [vmem:[%s1566] sm:$0xff]
    %v1568 = vld [vmem:[%s1566 + $0x8] sm:$0xff]
    %v1569 = vld [vmem:[%s1566 + $0x10] sm:$0xff]
    %v1570 = vld [vmem:[%s1566 + $0x18] sm:$0xff]
    %1571 = vmatprep.subr.bf16.mxu0 %v919
    %1572 = vmatpush1.bf16.msra.mxu0 %v918
    %1573 = vmatprep.subr.bf16.mxu0 %v923
    %1574 = vmatpush1.bf16.msra.mxu0 %v922
    %1575 = vmatprep.subr.bf16.mxu0 %v927
    %1576 = vmatpush1.bf16.msra.mxu0 %v926
    %1577 = vmatprep.subr.bf16.mxu0 %v931
    %1578 = vmatpush1.bf16.msra.mxu0 %v930
    %1579 = vmatprep.subr.bf16.mxu0 %v935
    %1580 = vmatpush1.bf16.msra.mxu0 %v934
    %1581 = vmatprep.subr.bf16.mxu0 %v939
    %1582 = vmatpush1.bf16.msra.mxu0 %v938
    %1583 = vmatprep.subr.bf16.mxu0 %v943
    %1584 = vmatpush1.bf16.msra.mxu0 %v942
    %1585 = vmatprep.subr.bf16.mxu0 %v947
    %1586 = vmatpush1.bf16.msra.mxu0 %v946
    %1587 = vmatprep.subr.bf16.mxu0 0
    %1588 = vmatpush1.bf16.msra.mxu0 0
    %1589 = vmatprep.subr.bf16.mxu0 0
    %1590 = vmatpush1.bf16.msra.mxu0 0
    %1591 = vmatprep.subr.bf16.mxu0 0
    %1592 = vmatpush1.bf16.msra.mxu0 0
    %1593 = vmatprep.subr.bf16.mxu0 0
    %1594 = vmatpush1.bf16.msra.mxu0 0
    %1595 = vmatprep.subr.bf16.mxu0 0
    %1596 = vmatpush1.bf16.msra.mxu0 0
    %1597 = vmatprep.subr.bf16.mxu0 0
    %1598 = vmatpush1.bf16.msra.mxu0 0
    %1599 = vmatprep.subr.bf16.mxu0 0
    %1600 = vmatpush1.bf16.msra.mxu0 0
    %1601 = vmatprep.subr.bf16.mxu0 0
    %1602 = vmatpush1.bf16.msra.mxu0 0
    %1603 = vmatprep.mubr.bf16.mxu0 0
    %1604 = vmatmul.mubr.bf16.gmra.mrb[0].mxu0 %v1563
    %v1605 = vpop.f32.mrb[0].mxu0
    %v1606 = vadd.f32 0.0, %v1605
    %v1607 = vpop.f32.mrb[0].mxu0
    %v1608 = vadd.f32 0.0, %v1607
    %v1609 = vpop.f32.mrb[0].mxu0
    %v1610 = vpop.f32.mrb[0].mxu0
    %1611 = vdwg.mxu0
    %1612 = vmatprep.subr.bf16.mxu0 %v921
    %1613 = vmatpush1.bf16.msra.mxu0 %v920
    %1614 = vmatprep.subr.bf16.mxu0 %v925
    %1615 = vmatpush1.bf16.msra.mxu0 %v924
    %1616 = vmatprep.subr.bf16.mxu0 %v929
    %1617 = vmatpush1.bf16.msra.mxu0 %v928
    %1618 = vmatprep.subr.bf16.mxu0 %v933
    %1619 = vmatpush1.bf16.msra.mxu0 %v932
    %1620 = vmatprep.subr.bf16.mxu0 %v937
    %1621 = vmatpush1.bf16.msra.mxu0 %v936
    %1622 = vmatprep.subr.bf16.mxu0 %v941
    %1623 = vmatpush1.bf16.msra.mxu0 %v940
    %1624 = vmatprep.subr.bf16.mxu0 %v945
    %1625 = vmatpush1.bf16.msra.mxu0 %v944
    %1626 = vmatprep.subr.bf16.mxu0 %v949
    %1627 = vmatpush1.bf16.msra.mxu0 %v948
    %1628 = vmatprep.subr.bf16.mxu0 0
    %1629 = vmatpush1.bf16.msra.mxu0 0
    %1630 = vmatprep.subr.bf16.mxu0 0
    %1631 = vmatpush1.bf16.msra.mxu0 0
    %1632 = vmatprep.subr.bf16.mxu0 0
    %1633 = vmatpush1.bf16.msra.mxu0 0
    %1634 = vmatprep.subr.bf16.mxu0 0
    %1635 = vmatpush1.bf16.msra.mxu0 0
    %1636 = vmatprep.subr.bf16.mxu0 0
    %1637 = vmatpush1.bf16.msra.mxu0 0
    %1638 = vmatprep.subr.bf16.mxu0 0
    %1639 = vmatpush1.bf16.msra.mxu0 0
    %1640 = vmatprep.subr.bf16.mxu0 0
    %1641 = vmatpush1.bf16.msra.mxu0 0
    %1642 = vmatprep.subr.bf16.mxu0 0
    %1643 = vmatpush1.bf16.msra.mxu0 0
    %1644 = vmatprep.mubr.bf16.mxu0 0
    %1645 = vmatmul.mubr.bf16.gmra.mrb[0].mxu0 %v1563
    %v1646 = vpop.f32.mrb[0].mxu0
    %v1647 = vadd.f32 0.0, %v1646
    %v1648 = vpop.f32.mrb[0].mxu0
    %v1649 = vadd.f32 0.0, %v1648
    %v1650 = vpop.f32.mrb[0].mxu0
    %v1651 = vpop.f32.mrb[0].mxu0
    %1652 = vdwg.mxu0
    %v1653 = vadd.f32 %v1567, %v1606
    %v1654 = vadd.f32 %v1568, %v1608
    %v1655 = vadd.f32 %v1569, %v1647
    %v1656 = vadd.f32 %v1570, %v1649
    %v1657 = vxor.u32 %v1653, 2147483648
    %v1658 = vmul.f32 %v1657, 1.442695
    %v1659 = vpow.pop %v1658
    %v1660 = vadd.f32 %v1659, 1.0
    %v1661 = vrcp.pop %v1660
    %v1662 = vmul.f32 1.0, %v1661
    %v1663 = vxor.u32 %v1654, 2147483648
    %v1664 = vmul.f32 %v1663, 1.442695
    %v1665 = vpow.pop %v1664
    %v1666 = vadd.f32 %v1665, 1.0
    %v1667 = vrcp.pop %v1666
    %v1668 = vmul.f32 1.0, %v1667
    %v1669 = vtanh.pop %v1655
    %v1670 = vxor.u32 %v1656, 2147483648
    %v1671 = vmul.f32 %v1670, 1.442695
    %v1672 = vpow.pop %v1671
    %v1673 = vadd.f32 %v1672, 1.0
    %v1674 = vrcp.pop %v1673
    %v1675 = vmul.f32 1.0, %v1674
    %v1676 = vmul.f32 %v1668, %v1560
    %v1677 = vmul.f32 %v1662, %v1669
    %v1678 = vadd.f32 %v1676, %v1677
    %v1679 = vtanh.pop %v1678
    %v1680 = vmul.f32 %v1675, %v1679
    %v1681 = vpack.c.bf16 %v1680, %v1680
    %s1682 = scalar_lea.vmem [#allocation3], 20
    %1683 = vst [vmem:[%s1682] sm:$0xf] %v1681
    %s1684 = scalar_lea.vmem [#allocation2], 192
    %v1685 = vld [vmem:[%s1684] sm:$0xff]
    %v1686 = vld [vmem:[%s1684 + $0x8] sm:$0xff]
    %v1687 = vld [vmem:[%s1684 + $0x10] sm:$0xff]
    %v1688 = vld [vmem:[%s1684 + $0x18] sm:$0xff]
    %1689 = vmatprep.subr.bf16.mxu0 %v919
    %1690 = vmatpush1.bf16.msra.mxu0 %v918
    %1691 = vmatprep.subr.bf16.mxu0 %v923
    %1692 = vmatpush1.bf16.msra.mxu0 %v922
    %1693 = vmatprep.subr.bf16.mxu0 %v927
    %1694 = vmatpush1.bf16.msra.mxu0 %v926
    %1695 = vmatprep.subr.bf16.mxu0 %v931
    %1696 = vmatpush1.bf16.msra.mxu0 %v930
    %1697 = vmatprep.subr.bf16.mxu0 %v935
    %1698 = vmatpush1.bf16.msra.mxu0 %v934
    %1699 = vmatprep.subr.bf16.mxu0 %v939
    %1700 = vmatpush1.bf16.msra.mxu0 %v938
    %1701 = vmatprep.subr.bf16.mxu0 %v943
    %1702 = vmatpush1.bf16.msra.mxu0 %v942
    %1703 = vmatprep.subr.bf16.mxu0 %v947
    %1704 = vmatpush1.bf16.msra.mxu0 %v946
    %1705 = vmatprep.subr.bf16.mxu0 0
    %1706 = vmatpush1.bf16.msra.mxu0 0
    %1707 = vmatprep.subr.bf16.mxu0 0
    %1708 = vmatpush1.bf16.msra.mxu0 0
    %1709 = vmatprep.subr.bf16.mxu0 0
    %1710 = vmatpush1.bf16.msra.mxu0 0
    %1711 = vmatprep.subr.bf16.mxu0 0
    %1712 = vmatpush1.bf16.msra.mxu0 0
    %1713 = vmatprep.subr.bf16.mxu0 0
    %1714 = vmatpush1.bf16.msra.mxu0 0
    %1715 = vmatprep.subr.bf16.mxu0 0
    %1716 = vmatpush1.bf16.msra.mxu0 0
    %1717 = vmatprep.subr.bf16.mxu0 0
    %1718 = vmatpush1.bf16.msra.mxu0 0
    %1719 = vmatprep.subr.bf16.mxu0 0
    %1720 = vmatpush1.bf16.msra.mxu0 0
    %1721 = vmatprep.mubr.bf16.mxu0 0
    %1722 = vmatmul.mubr.bf16.gmra.mrb[0].mxu0 %v1681
    %v1723 = vpop.f32.mrb[0].mxu0
    %v1724 = vadd.f32 0.0, %v1723
    %v1725 = vpop.f32.mrb[0].mxu0
    %v1726 = vadd.f32 0.0, %v1725
    %v1727 = vpop.f32.mrb[0].mxu0
    %v1728 = vpop.f32.mrb[0].mxu0
    %1729 = vdwg.mxu0
    %1730 = vmatprep.subr.bf16.mxu0 %v921
    %1731 = vmatpush1.bf16.msra.mxu0 %v920
    %1732 = vmatprep.subr.bf16.mxu0 %v925
    %1733 = vmatpush1.bf16.msra.mxu0 %v924
    %1734 = vmatprep.subr.bf16.mxu0 %v929
    %1735 = vmatpush1.bf16.msra.mxu0 %v928
    %1736 = vmatprep.subr.bf16.mxu0 %v933
    %1737 = vmatpush1.bf16.msra.mxu0 %v932
    %1738 = vmatprep.subr.bf16.mxu0 %v937
    %1739 = vmatpush1.bf16.msra.mxu0 %v936
    %1740 = vmatprep.subr.bf16.mxu0 %v941
    %1741 = vmatpush1.bf16.msra.mxu0 %v940
    %1742 = vmatprep.subr.bf16.mxu0 %v945
    %1743 = vmatpush1.bf16.msra.mxu0 %v944
    %1744 = vmatprep.subr.bf16.mxu0 %v949
    %1745 = vmatpush1.bf16.msra.mxu0 %v948
    %1746 = vmatprep.subr.bf16.mxu0 0
    %1747 = vmatpush1.bf16.msra.mxu0 0
    %1748 = vmatprep.subr.bf16.mxu0 0
    %1749 = vmatpush1.bf16.msra.mxu0 0
    %1750 = vmatprep.subr.bf16.mxu0 0
    %1751 = vmatpush1.bf16.msra.mxu0 0
    %1752 = vmatprep.subr.bf16.mxu0 0
    %1753 = vmatpush1.bf16.msra.mxu0 0
    %1754 = vmatprep.subr.bf16.mxu0 0
    %1755 = vmatpush1.bf16.msra.mxu0 0
    %1756 = vmatprep.subr.bf16.mxu0 0
    %1757 = vmatpush1.bf16.msra.mxu0 0
    %1758 = vmatprep.subr.bf16.mxu0 0
    %1759 = vmatpush1.bf16.msra.mxu0 0
    %1760 = vmatprep.subr.bf16.mxu0 0
    %1761 = vmatpush1.bf16.msra.mxu0 0
    %1762 = vmatprep.mubr.bf16.mxu0 0
    %1763 = vmatmul.mubr.bf16.gmra.mrb[0].mxu0 %v1681
    %v1764 = vpop.f32.mrb[0].mxu0
    %v1765 = vadd.f32 0.0, %v1764
    %v1766 = vpop.f32.mrb[0].mxu0
    %v1767 = vadd.f32 0.0, %v1766
    %v1768 = vpop.f32.mrb[0].mxu0
    %v1769 = vpop.f32.mrb[0].mxu0
    %1770 = vdwg.mxu0
    %v1771 = vadd.f32 %v1685, %v1724
    %v1772 = vadd.f32 %v1686, %v1726
    %v1773 = vadd.f32 %v1687, %v1765
    %v1774 = vadd.f32 %v1688, %v1767
    %v1775 = vxor.u32 %v1771, 2147483648
    %v1776 = vmul.f32 %v1775, 1.442695
    %v1777 = vpow.pop %v1776
    %v1778 = vadd.f32 %v1777, 1.0
    %v1779 = vrcp.pop %v1778
    %v1780 = vmul.f32 1.0, %v1779
    %v1781 = vxor.u32 %v1772, 2147483648
    %v1782 = vmul.f32 %v1781, 1.442695
    %v1783 = vpow.pop %v1782
    %v1784 = vadd.f32 %v1783, 1.0
    %v1785 = vrcp.pop %v1784
    %v1786 = vmul.f32 1.0, %v1785
    %v1787 = vtanh.pop %v1773
    %v1788 = vxor.u32 %v1774, 2147483648
    %v1789 = vmul.f32 %v1788, 1.442695
    %v1790 = vpow.pop %v1789
    %v1791 = vadd.f32 %v1790, 1.0
    %v1792 = vrcp.pop %v1791
    %v1793 = vmul.f32 1.0, %v1792
    %v1794 = vmul.f32 %v1786, %v1678
    %v1795 = vmul.f32 %v1780, %v1787
    %v1796 = vadd.f32 %v1794, %v1795
    %v1797 = vtanh.pop %v1796
    %v1798 = vmul.f32 %v1793, %v1797
    %v1799 = vpack.c.bf16 %v1798, %v1798
    %s1800 = scalar_lea.vmem [#allocation3], 24
    %1801 = vst [vmem:[%s1800] sm:$0xf] %v1799
    %v1802 = vld [vmem:[#allocation3] sm:$0xf]
    %v1803 = vld [vmem:[#allocation3 + $0x4] sm:$0xf]
    %v1804 = vld [vmem:[#allocation3 + $0x8] sm:$0xf]
    %v1805 = vld [vmem:[#allocation3 + $0xc] sm:$0xf]
    %v1806 = vld [vmem:[#allocation3 + $0x10] sm:$0xf]
    %v1807 = vld [vmem:[#allocation3 + $0x14] sm:$0xf]
    %v1808 = vld [vmem:[#allocation3 + $0x18] sm:$0xf]
    %v1809 = vld [vmem:[#allocation8] sm:$0xff]
    %v1810 = vld [vmem:[#allocation8 + $0x8] sm:$0xff]
    %v1811 = vld [vmem:[#allocation8 + $0x10] sm:$0xff]
    %v1812 = vld [vmem:[#allocation8 + $0x18] sm:$0xff]
    %v1813 = vld [vmem:[#allocation8 + $0x20] sm:$0xff]
    %v1814 = vld [vmem:[#allocation8 + $0x28] sm:$0xff]
    %v1815 = vld [vmem:[#allocation8 + $0x30] sm:$0xff]
    %v1816 = vld [vmem:[#allocation8 + $0x38] sm:$0xff]
    %v1817 = vld [vmem:[#allocation8 + $0x40] sm:$0xff]
    %v1818 = vld [vmem:[#allocation8 + $0x48] sm:$0xff]
    %v1819 = vld [vmem:[#allocation8 + $0x50] sm:$0xff]
    %v1820 = vld [vmem:[#allocation8 + $0x58] sm:$0xff]
    %v1821 = vld [vmem:[#allocation8 + $0x60] sm:$0xff]
    %v1822 = vld [vmem:[#allocation8 + $0x68] sm:$0xff]
    %v1823 = vld [vmem:[#allocation8 + $0x70] sm:$0xff]
    %v1824 = vld [vmem:[#allocation8 + $0x78] sm:$0xff]
    %v1825 = vld [vmem:[#allocation8 + $0x80] sm:$0xff]
    %v1826 = vld [vmem:[#allocation8 + $0x88] sm:$0xff]
    %v1827 = vld [vmem:[#allocation8 + $0x90] sm:$0xff]
    %v1828 = vld [vmem:[#allocation8 + $0x98] sm:$0xff]
    %v1829 = vld [vmem:[#allocation8 + $0xa0] sm:$0xff]
    %v1830 = vld [vmem:[#allocation8 + $0xa8] sm:$0xff]
    %v1831 = vld [vmem:[#allocation8 + $0xb0] sm:$0xff]
    %v1832 = vld [vmem:[#allocation8 + $0xb8] sm:$0xff]
    %v1833 = vld [vmem:[#allocation8 + $0xc0] sm:$0xff]
    %v1834 = vld [vmem:[#allocation8 + $0xc8] sm:$0xff]
    %v1835 = vld [vmem:[#allocation8 + $0xd0] sm:$0xff]
    %v1836 = vld [vmem:[#allocation8 + $0xd8] sm:$0xff]
    %v1837 = vld [vmem:[#allocation8 + $0xe0] sm:$0xff]
    %v1838 = vld [vmem:[#allocation8 + $0xe8] sm:$0xff]
    %v1839 = vld [vmem:[#allocation8 + $0xf0] sm:$0xff]
    %v1840 = vld [vmem:[#allocation8 + $0xf8] sm:$0xff]
    %v1841 = vld [vmem:[#allocation11] sm:$0xf]
    %v1843 = vlaneseq
    %v1844 = vshrl.u32 %v1843, 7
    %v1845 = vsub.s32 0, %v1844
    %v1846 = vrot.slane %v1841, %v1845
    %v1847 = vlaneseq
    %v1848 = vshrl.u32 %v1847, 7
    %v1849 = vsub.s32 1, %v1848
    %v1850 = vrot.slane %v1841, %v1849
    %v1851 = vlaneseq
    %v1852 = vshrl.u32 %v1851, 7
    %v1853 = vsub.s32 2, %v1852
    %v1854 = vrot.slane %v1841, %v1853
    %v1855 = vlaneseq
    %v1856 = vshrl.u32 %v1855, 7
    %v1857 = vsub.s32 3, %v1856
    %v1858 = vrot.slane %v1841, %v1857
    %v1870 = vunpack.c.l.b16 %v1802
    %v1871 = vunpack.c.l.b16 %v1803
    %v1872 = vunpack.c.l.b16 %v1804
    %v1873 = vunpack.c.l.b16 %v1805
    %v1874 = vunpack.c.l.b16 %v1806
    %v1875 = vunpack.c.l.b16 %v1807
    %v1876 = vunpack.c.l.b16 %v1808
    %v1877 = vpack.c.b16 %v1871, %v1870
    %v1878 = vpack.c.b16 %v1873, %v1872
    %v1879 = vpack.c.b16 %v1875, %v1874
    %v1880 = vpack.c.b16 %v1876, %v1876
    %v1917 = vunpack.c.l.b16 %v1809
    %v1918 = vunpack.c.h.b16 %v1809
    %v1919 = vunpack.c.l.b16 %v1810
    %v1920 = vunpack.c.h.b16 %v1810
    %v1921 = vunpack.c.l.b16 %v1811
    %v1922 = vunpack.c.h.b16 %v1811
    %v1923 = vunpack.c.l.b16 %v1812
    %v1924 = vunpack.c.h.b16 %v1812
    %v1925 = vunpack.c.l.b16 %v1813
    %v1926 = vunpack.c.h.b16 %v1813
    %v1927 = vunpack.c.l.b16 %v1814
    %v1928 = vunpack.c.h.b16 %v1814
    %v1929 = vunpack.c.l.b16 %v1815
    %v1930 = vunpack.c.h.b16 %v1815
    %v1931 = vunpack.c.l.b16 %v1816
    %v1932 = vunpack.c.h.b16 %v1816
    %v1933 = vunpack.c.l.b16 %v1817
    %v1934 = vunpack.c.h.b16 %v1817
    %v1935 = vunpack.c.l.b16 %v1818
    %v1936 = vunpack.c.h.b16 %v1818
    %v1937 = vunpack.c.l.b16 %v1819
    %v1938 = vunpack.c.h.b16 %v1819
    %v1939 = vunpack.c.l.b16 %v1820
    %v1940 = vunpack.c.h.b16 %v1820
    %v1941 = vunpack.c.l.b16 %v1821
    %v1942 = vunpack.c.h.b16 %v1821
    %v1943 = vunpack.c.l.b16 %v1822
    %v1944 = vunpack.c.h.b16 %v1822
    %v1945 = vunpack.c.l.b16 %v1823
    %v1946 = vunpack.c.h.b16 %v1823
    %v1947 = vunpack.c.l.b16 %v1824
    %v1948 = vunpack.c.h.b16 %v1824
    %v1949 = vunpack.c.l.b16 %v1825
    %v1950 = vunpack.c.h.b16 %v1825
    %v1951 = vunpack.c.l.b16 %v1826
    %v1952 = vunpack.c.h.b16 %v1826
    %v1953 = vunpack.c.l.b16 %v1827
    %v1954 = vunpack.c.h.b16 %v1827
    %v1955 = vunpack.c.l.b16 %v1828
    %v1956 = vunpack.c.h.b16 %v1828
    %v1957 = vunpack.c.l.b16 %v1829
    %v1958 = vunpack.c.h.b16 %v1829
    %v1959 = vunpack.c.l.b16 %v1830
    %v1960 = vunpack.c.h.b16 %v1830
    %v1961 = vunpack.c.l.b16 %v1831
    %v1962 = vunpack.c.h.b16 %v1831
    %v1963 = vunpack.c.l.b16 %v1832
    %v1964 = vunpack.c.h.b16 %v1832
    %v1965 = vunpack.c.l.b16 %v1833
    %v1966 = vunpack.c.h.b16 %v1833
    %v1967 = vunpack.c.l.b16 %v1834
    %v1968 = vunpack.c.h.b16 %v1834
    %v1969 = vunpack.c.l.b16 %v1835
    %v1970 = vunpack.c.h.b16 %v1835
    %v1971 = vunpack.c.l.b16 %v1836
    %v1972 = vunpack.c.h.b16 %v1836
    %v1973 = vunpack.c.l.b16 %v1837
    %v1974 = vunpack.c.h.b16 %v1837
    %v1975 = vunpack.c.l.b16 %v1838
    %v1976 = vunpack.c.h.b16 %v1838
    %v1977 = vunpack.c.l.b16 %v1839
    %v1978 = vunpack.c.h.b16 %v1839
    %v1979 = vunpack.c.l.b16 %v1840
    %v1980 = vunpack.c.h.b16 %v1840
    %v1981 = vpack.c.b16 %v1921, %v1917
    %v1982 = vpack.c.b16 %v1922, %v1918
    %v1983 = vpack.c.b16 %v1923, %v1919
    %v1984 = vpack.c.b16 %v1924, %v1920
    %v1985 = vpack.c.b16 %v1929, %v1925
    %v1986 = vpack.c.b16 %v1930, %v1926
    %v1987 = vpack.c.b16 %v1931, %v1927
    %v1988 = vpack.c.b16 %v1932, %v1928
    %v1989 = vpack.c.b16 %v1937, %v1933
    %v1990 = vpack.c.b16 %v1938, %v1934
    %v1991 = vpack.c.b16 %v1939, %v1935
    %v1992 = vpack.c.b16 %v1940, %v1936
    %v1993 = vpack.c.b16 %v1945, %v1941
    %v1994 = vpack.c.b16 %v1946, %v1942
    %v1995 = vpack.c.b16 %v1947, %v1943
    %v1996 = vpack.c.b16 %v1948, %v1944
    %v1997 = vpack.c.b16 %v1953, %v1949
    %v1998 = vpack.c.b16 %v1954, %v1950
    %v1999 = vpack.c.b16 %v1955, %v1951
    %v2000 = vpack.c.b16 %v1956, %v1952
    %v2001 = vpack.c.b16 %v1961, %v1957
    %v2002 = vpack.c.b16 %v1962, %v1958
    %v2003 = vpack.c.b16 %v1963, %v1959
    %v2004 = vpack.c.b16 %v1964, %v1960
    %v2005 = vpack.c.b16 %v1969, %v1965
    %v2006 = vpack.c.b16 %v1970, %v1966
    %v2007 = vpack.c.b16 %v1971, %v1967
    %v2008 = vpack.c.b16 %v1972, %v1968
    %v2009 = vpack.c.b16 %v1977, %v1973
    %v2010 = vpack.c.b16 %v1978, %v1974
    %v2011 = vpack.c.b16 %v1979, %v1975
    %v2012 = vpack.c.b16 %v1980, %v1976
    %2045 = vmatprep.subr.bf16.mxu0 %v1982
    %2046 = vmatpush1.bf16.msra.mxu0 %v1981
    %2047 = vmatprep.subr.bf16.mxu0 %v1986
    %2048 = vmatpush1.bf16.msra.mxu0 %v1985
    %2049 = vmatprep.subr.bf16.mxu0 %v1990
    %2050 = vmatpush1.bf16.msra.mxu0 %v1989
    %2051 = vmatprep.subr.bf16.mxu0 %v1994
    %2052 = vmatpush1.bf16.msra.mxu0 %v1993
    %2053 = vmatprep.subr.bf16.mxu0 %v1998
    %2054 = vmatpush1.bf16.msra.mxu0 %v1997
    %2055 = vmatprep.subr.bf16.mxu0 %v2002
    %2056 = vmatpush1.bf16.msra.mxu0 %v2001
    %2057 = vmatprep.subr.bf16.mxu0 %v2006
    %2058 = vmatpush1.bf16.msra.mxu0 %v2005
    %2059 = vmatprep.subr.bf16.mxu0 %v2010
    %2060 = vmatpush1.bf16.msra.mxu0 %v2009
    %2061 = vmatprep.subr.bf16.mxu0 0
    %2062 = vmatpush1.bf16.msra.mxu0 0
    %2063 = vmatprep.subr.bf16.mxu0 0
    %2064 = vmatpush1.bf16.msra.mxu0 0
    %2065 = vmatprep.subr.bf16.mxu0 0
    %2066 = vmatpush1.bf16.msra.mxu0 0
    %2067 = vmatprep.subr.bf16.mxu0 0
    %2068 = vmatpush1.bf16.msra.mxu0 0
    %2069 = vmatprep.subr.bf16.mxu0 0
    %2070 = vmatpush1.bf16.msra.mxu0 0
    %2071 = vmatprep.subr.bf16.mxu0 0
    %2072 = vmatpush1.bf16.msra.mxu0 0
    %2073 = vmatprep.subr.bf16.mxu0 0
    %2074 = vmatpush1.bf16.msra.mxu0 0
    %2075 = vmatprep.subr.bf16.mxu0 0
    %2076 = vmatpush1.bf16.msra.mxu0 0
    %2077 = vmatprep.mubr.bf16.mxu0 0
    %2078 = vmatmul.mubr.bf16.gmra.mrb[0].mxu0 %v1877
    %v2079 = vpop.f32.mrb[0].mxu0
    %v2080 = vadd.f32 %v1846, %v2079
    %v2081 = vpop.f32.mrb[0].mxu0
    %v2082 = vadd.f32 %v1850, %v2081
    %v2083 = vpop.f32.mrb[0].mxu0
    %v2084 = vadd.f32 %v1846, %v2083
    %v2085 = vpop.f32.mrb[0].mxu0
    %v2086 = vadd.f32 %v1850, %v2085
    %2087 = vmatprep.mubr.bf16.mxu0 0
    %2088 = vmatmul.mubr.bf16.gmra.mrb[0].mxu0 %v1878
    %v2089 = vpop.f32.mrb[0].mxu0
    %v2090 = vadd.f32 %v1846, %v2089
    %v2091 = vpop.f32.mrb[0].mxu0
    %v2092 = vadd.f32 %v1850, %v2091
    %v2093 = vpop.f32.mrb[0].mxu0
    %v2094 = vadd.f32 %v1846, %v2093
    %v2095 = vpop.f32.mrb[0].mxu0
    %v2096 = vadd.f32 %v1850, %v2095
    %2097 = vmatprep.mubr.bf16.mxu0 0
    %2098 = vmatmul.mubr.bf16.gmra.mrb[0].mxu0 %v1879
    %v2099 = vpop.f32.mrb[0].mxu0
    %v2100 = vadd.f32 %v1846, %v2099
    %v2101 = vpop.f32.mrb[0].mxu0
    %v2102 = vadd.f32 %v1850, %v2101
    %v2103 = vpop.f32.mrb[0].mxu0
    %v2104 = vadd.f32 %v1846, %v2103
    %v2105 = vpop.f32.mrb[0].mxu0
    %v2106 = vadd.f32 %v1850, %v2105
    %2107 = vmatprep.mubr.bf16.mxu0 0
    %2108 = vmatmul.mubr.bf16.gmra.mrb[0].mxu0 %v1880
    %v2109 = vpop.f32.mrb[0].mxu0
    %v2110 = vadd.f32 %v1846, %v2109
    %v2111 = vpop.f32.mrb[0].mxu0
    %v2112 = vadd.f32 %v1850, %v2111
    %v2113 = vpop.f32.mrb[0].mxu0
    %v2114 = vpop.f32.mrb[0].mxu0
    %2115 = vdwg.mxu0
    %2116 = vmatprep.subr.bf16.mxu0 %v1984
    %2117 = vmatpush1.bf16.msra.mxu0 %v1983
    %2118 = vmatprep.subr.bf16.mxu0 %v1988
    %2119 = vmatpush1.bf16.msra.mxu0 %v1987
    %2120 = vmatprep.subr.bf16.mxu0 %v1992
    %2121 = vmatpush1.bf16.msra.mxu0 %v1991
    %2122 = vmatprep.subr.bf16.mxu0 %v1996
    %2123 = vmatpush1.bf16.msra.mxu0 %v1995
    %2124 = vmatprep.subr.bf16.mxu0 %v2000
    %2125 = vmatpush1.bf16.msra.mxu0 %v1999
    %2126 = vmatprep.subr.bf16.mxu0 %v2004
    %2127 = vmatpush1.bf16.msra.mxu0 %v2003
    %2128 = vmatprep.subr.bf16.mxu0 %v2008
    %2129 = vmatpush1.bf16.msra.mxu0 %v2007
    %2130 = vmatprep.subr.bf16.mxu0 %v2012
    %2131 = vmatpush1.bf16.msra.mxu0 %v2011
    %2132 = vmatprep.subr.bf16.mxu0 0
    %2133 = vmatpush1.bf16.msra.mxu0 0
    %2134 = vmatprep.subr.bf16.mxu0 0
    %2135 = vmatpush1.bf16.msra.mxu0 0
    %2136 = vmatprep.subr.bf16.mxu0 0
    %2137 = vmatpush1.bf16.msra.mxu0 0
    %2138 = vmatprep.subr.bf16.mxu0 0
    %2139 = vmatpush1.bf16.msra.mxu0 0
    %2140 = vmatprep.subr.bf16.mxu0 0
    %2141 = vmatpush1.bf16.msra.mxu0 0
    %2142 = vmatprep.subr.bf16.mxu0 0
    %2143 = vmatpush1.bf16.msra.mxu0 0
    %2144 = vmatprep.subr.bf16.mxu0 0
    %2145 = vmatpush1.bf16.msra.mxu0 0
    %2146 = vmatprep.subr.bf16.mxu0 0
    %2147 = vmatpush1.bf16.msra.mxu0 0
    %2148 = vmatprep.mubr.bf16.mxu0 0
    %2149 = vmatmul.mubr.bf16.gmra.mrb[0].mxu0 %v1877
    %v2150 = vpop.f32.mrb[0].mxu0
    %v2151 = vadd.f32 %v1854, %v2150
    %v2152 = vpop.f32.mrb[0].mxu0
    %v2153 = vadd.f32 %v1858, %v2152
    %v2154 = vpop.f32.mrb[0].mxu0
    %v2155 = vadd.f32 %v1854, %v2154
    %v2156 = vpop.f32.mrb[0].mxu0
    %v2157 = vadd.f32 %v1858, %v2156
    %2158 = vmatprep.mubr.bf16.mxu0 0
    %2159 = vmatmul.mubr.bf16.gmra.mrb[0].mxu0 %v1878
    %v2160 = vpop.f32.mrb[0].mxu0
    %v2161 = vadd.f32 %v1854, %v2160
    %v2162 = vpop.f32.mrb[0].mxu0
    %v2163 = vadd.f32 %v1858, %v2162
    %v2164 = vpop.f32.mrb[0].mxu0
    %v2165 = vadd.f32 %v1854, %v2164
    %v2166 = vpop.f32.mrb[0].mxu0
    %v2167 = vadd.f32 %v1858, %v2166
    %2168 = vmatprep.mubr.bf16.mxu0 0
    %2169 = vmatmul.mubr.bf16.gmra.mrb[0].mxu0 %v1879
    %v2170 = vpop.f32.mrb[0].mxu0
    %v2171 = vadd.f32 %v1854, %v2170
    %v2172 = vpop.f32.mrb[0].mxu0
    %v2173 = vadd.f32 %v1858, %v2172
    %v2174 = vpop.f32.mrb[0].mxu0
    %v2175 = vadd.f32 %v1854, %v2174
    %v2176 = vpop.f32.mrb[0].mxu0
    %v2177 = vadd.f32 %v1858, %v2176
    %2178 = vmatprep.mubr.bf16.mxu0 0
    %2179 = vmatmul.mubr.bf16.gmra.mrb[0].mxu0 %v1880
    %v2180 = vpop.f32.mrb[0].mxu0
    %v2181 = vadd.f32 %v1854, %v2180
    %v2182 = vpop.f32.mrb[0].mxu0
    %v2183 = vadd.f32 %v1858, %v2182
    %v2184 = vpop.f32.mrb[0].mxu0
    %v2185 = vpop.f32.mrb[0].mxu0
    %2186 = vdwg.mxu0
    %2187 = vst [vmem:[#allocation2] sm:$0xff] %v2080
    %2188 = vst [vmem:[#allocation2 + $0x8] sm:$0xff] %v2082
    %2189 = vst [vmem:[#allocation2 + $0x10] sm:$0xff] %v2151
    %2190 = vst [vmem:[#allocation2 + $0x18] sm:$0xff] %v2153
    %2191 = vst [vmem:[#allocation2 + $0x20] sm:$0xff] %v2084
    %2192 = vst [vmem:[#allocation2 + $0x28] sm:$0xff] %v2086
    %2193 = vst [vmem:[#allocation2 + $0x30] sm:$0xff] %v2155
    %2194 = vst [vmem:[#allocation2 + $0x38] sm:$0xff] %v2157
    %2195 = vst [vmem:[#allocation2 + $0x40] sm:$0xff] %v2090
    %2196 = vst [vmem:[#allocation2 + $0x48] sm:$0xff] %v2092
    %2197 = vst [vmem:[#allocation2 + $0x50] sm:$0xff] %v2161
    %2198 = vst [vmem:[#allocation2 + $0x58] sm:$0xff] %v2163
    %2199 = vst [vmem:[#allocation2 + $0x60] sm:$0xff] %v2094
    %2200 = vst [vmem:[#allocation2 + $0x68] sm:$0xff] %v2096
    %2201 = vst [vmem:[#allocation2 + $0x70] sm:$0xff] %v2165
    %2202 = vst [vmem:[#allocation2 + $0x78] sm:$0xff] %v2167
    %2203 = vst [vmem:[#allocation2 + $0x80] sm:$0xff] %v2100
    %2204 = vst [vmem:[#allocation2 + $0x88] sm:$0xff] %v2102
    %2205 = vst [vmem:[#allocation2 + $0x90] sm:$0xff] %v2171
    %2206 = vst [vmem:[#allocation2 + $0x98] sm:$0xff] %v2173
    %2207 = vst [vmem:[#allocation2 + $0xa0] sm:$0xff] %v2104
    %2208 = vst [vmem:[#allocation2 + $0xa8] sm:$0xff] %v2106
    %2209 = vst [vmem:[#allocation2 + $0xb0] sm:$0xff] %v2175
    %2210 = vst [vmem:[#allocation2 + $0xb8] sm:$0xff] %v2177
    %2211 = vst [vmem:[#allocation2 + $0xc0] sm:$0xff] %v2110
    %2212 = vst [vmem:[#allocation2 + $0xc8] sm:$0xff] %v2112
    %2213 = vst [vmem:[#allocation2 + $0xd0] sm:$0xff] %v2181
    %2214 = vst [vmem:[#allocation2 + $0xd8] sm:$0xff] %v2183
    %v2215 = vld [vmem:[#allocation9] sm:$0xff]
    %v2216 = vld [vmem:[#allocation9 + $0x8] sm:$0xff]
    %v2217 = vld [vmem:[#allocation9 + $0x10] sm:$0xff]
    %v2218 = vld [vmem:[#allocation9 + $0x18] sm:$0xff]
    %v2219 = vld [vmem:[#allocation9 + $0x20] sm:$0xff]
    %v2220 = vld [vmem:[#allocation9 + $0x28] sm:$0xff]
    %v2221 = vld [vmem:[#allocation9 + $0x30] sm:$0xff]
    %v2222 = vld [vmem:[#allocation9 + $0x38] sm:$0xff]
    %v2223 = vld [vmem:[#allocation9 + $0x40] sm:$0xff]
    %v2224 = vld [vmem:[#allocation9 + $0x48] sm:$0xff]
    %v2225 = vld [vmem:[#allocation9 + $0x50] sm:$0xff]
    %v2226 = vld [vmem:[#allocation9 + $0x58] sm:$0xff]
    %v2227 = vld [vmem:[#allocation9 + $0x60] sm:$0xff]
    %v2228 = vld [vmem:[#allocation9 + $0x68] sm:$0xff]
    %v2229 = vld [vmem:[#allocation9 + $0x70] sm:$0xff]
    %v2230 = vld [vmem:[#allocation9 + $0x78] sm:$0xff]
    %v2231 = vld [vmem:[#allocation9 + $0x80] sm:$0xff]
    %v2232 = vld [vmem:[#allocation9 + $0x88] sm:$0xff]
    %v2233 = vld [vmem:[#allocation9 + $0x90] sm:$0xff]
    %v2234 = vld [vmem:[#allocation9 + $0x98] sm:$0xff]
    %v2235 = vld [vmem:[#allocation9 + $0xa0] sm:$0xff]
    %v2236 = vld [vmem:[#allocation9 + $0xa8] sm:$0xff]
    %v2237 = vld [vmem:[#allocation9 + $0xb0] sm:$0xff]
    %v2238 = vld [vmem:[#allocation9 + $0xb8] sm:$0xff]
    %v2239 = vld [vmem:[#allocation9 + $0xc0] sm:$0xff]
    %v2240 = vld [vmem:[#allocation9 + $0xc8] sm:$0xff]
    %v2241 = vld [vmem:[#allocation9 + $0xd0] sm:$0xff]
    %v2242 = vld [vmem:[#allocation9 + $0xd8] sm:$0xff]
    %v2243 = vld [vmem:[#allocation9 + $0xe0] sm:$0xff]
    %v2244 = vld [vmem:[#allocation9 + $0xe8] sm:$0xff]
    %v2245 = vld [vmem:[#allocation9 + $0xf0] sm:$0xff]
    %v2246 = vld [vmem:[#allocation9 + $0xf8] sm:$0xff]
    %v2247 = vld [vmem:[#allocation2] sm:$0xff]
    %v2248 = vld [vmem:[#allocation2 + $0x8] sm:$0xff]
    %v2249 = vld [vmem:[#allocation2 + $0x10] sm:$0xff]
    %v2250 = vld [vmem:[#allocation2 + $0x18] sm:$0xff]
    %v2283 = vunpack.c.l.b16 %v2215
    %v2284 = vunpack.c.h.b16 %v2215
    %v2285 = vunpack.c.l.b16 %v2216
    %v2286 = vunpack.c.h.b16 %v2216
    %v2287 = vunpack.c.l.b16 %v2217
    %v2288 = vunpack.c.h.b16 %v2217
    %v2289 = vunpack.c.l.b16 %v2218
    %v2290 = vunpack.c.h.b16 %v2218
    %v2291 = vunpack.c.l.b16 %v2219
    %v2292 = vunpack.c.h.b16 %v2219
    %v2293 = vunpack.c.l.b16 %v2220
    %v2294 = vunpack.c.h.b16 %v2220
    %v2295 = vunpack.c.l.b16 %v2221
    %v2296 = vunpack.c.h.b16 %v2221
    %v2297 = vunpack.c.l.b16 %v2222
    %v2298 = vunpack.c.h.b16 %v2222
    %v2299 = vunpack.c.l.b16 %v2223
    %v2300 = vunpack.c.h.b16 %v2223
    %v2301 = vunpack.c.l.b16 %v2224
    %v2302 = vunpack.c.h.b16 %v2224
    %v2303 = vunpack.c.l.b16 %v2225
    %v2304 = vunpack.c.h.b16 %v2225
    %v2305 = vunpack.c.l.b16 %v2226
    %v2306 = vunpack.c.h.b16 %v2226
    %v2307 = vunpack.c.l.b16 %v2227
    %v2308 = vunpack.c.h.b16 %v2227
    %v2309 = vunpack.c.l.b16 %v2228
    %v2310 = vunpack.c.h.b16 %v2228
    %v2311 = vunpack.c.l.b16 %v2229
    %v2312 = vunpack.c.h.b16 %v2229
    %v2313 = vunpack.c.l.b16 %v2230
    %v2314 = vunpack.c.h.b16 %v2230
    %v2315 = vunpack.c.l.b16 %v2231
    %v2316 = vunpack.c.h.b16 %v2231
    %v2317 = vunpack.c.l.b16 %v2232
    %v2318 = vunpack.c.h.b16 %v2232
    %v2319 = vunpack.c.l.b16 %v2233
    %v2320 = vunpack.c.h.b16 %v2233
    %v2321 = vunpack.c.l.b16 %v2234
    %v2322 = vunpack.c.h.b16 %v2234
    %v2323 = vunpack.c.l.b16 %v2235
    %v2324 = vunpack.c.h.b16 %v2235
    %v2325 = vunpack.c.l.b16 %v2236
    %v2326 = vunpack.c.h.b16 %v2236
    %v2327 = vunpack.c.l.b16 %v2237
    %v2328 = vunpack.c.h.b16 %v2237
    %v2329 = vunpack.c.l.b16 %v2238
    %v2330 = vunpack.c.h.b16 %v2238
    %v2331 = vunpack.c.l.b16 %v2239
    %v2332 = vunpack.c.h.b16 %v2239
    %v2333 = vunpack.c.l.b16 %v2240
    %v2334 = vunpack.c.h.b16 %v2240
    %v2335 = vunpack.c.l.b16 %v2241
    %v2336 = vunpack.c.h.b16 %v2241
    %v2337 = vunpack.c.l.b16 %v2242
    %v2338 = vunpack.c.h.b16 %v2242
    %v2339 = vunpack.c.l.b16 %v2243
    %v2340 = vunpack.c.h.b16 %v2243
    %v2341 = vunpack.c.l.b16 %v2244
    %v2342 = vunpack.c.h.b16 %v2244
    %v2343 = vunpack.c.l.b16 %v2245
    %v2344 = vunpack.c.h.b16 %v2245
    %v2345 = vunpack.c.l.b16 %v2246
    %v2346 = vunpack.c.h.b16 %v2246
    %v2347 = vpack.c.b16 %v2287, %v2283
    %v2348 = vpack.c.b16 %v2288, %v2284
    %v2349 = vpack.c.b16 %v2289, %v2285
    %v2350 = vpack.c.b16 %v2290, %v2286
    %v2351 = vpack.c.b16 %v2295, %v2291
    %v2352 = vpack.c.b16 %v2296, %v2292
    %v2353 = vpack.c.b16 %v2297, %v2293
    %v2354 = vpack.c.b16 %v2298, %v2294
    %v2355 = vpack.c.b16 %v2303, %v2299
    %v2356 = vpack.c.b16 %v2304, %v2300
    %v2357 = vpack.c.b16 %v2305, %v2301
    %v2358 = vpack.c.b16 %v2306, %v2302
    %v2359 = vpack.c.b16 %v2311, %v2307
    %v2360 = vpack.c.b16 %v2312, %v2308
    %v2361 = vpack.c.b16 %v2313, %v2309
    %v2362 = vpack.c.b16 %v2314, %v2310
    %v2363 = vpack.c.b16 %v2319, %v2315
    %v2364 = vpack.c.b16 %v2320, %v2316
    %v2365 = vpack.c.b16 %v2321, %v2317
    %v2366 = vpack.c.b16 %v2322, %v2318
    %v2367 = vpack.c.b16 %v2327, %v2323
    %v2368 = vpack.c.b16 %v2328, %v2324
    %v2369 = vpack.c.b16 %v2329, %v2325
    %v2370 = vpack.c.b16 %v2330, %v2326
    %v2371 = vpack.c.b16 %v2335, %v2331
    %v2372 = vpack.c.b16 %v2336, %v2332
    %v2373 = vpack.c.b16 %v2337, %v2333
    %v2374 = vpack.c.b16 %v2338, %v2334
    %v2375 = vpack.c.b16 %v2343, %v2339
    %v2376 = vpack.c.b16 %v2344, %v2340
    %v2377 = vpack.c.b16 %v2345, %v2341
    %v2378 = vpack.c.b16 %v2346, %v2342
    %2411 = vmatprep.subr.bf16.mxu0 %v2348
    %2412 = vmatpush1.bf16.msra.mxu0 %v2347
    %2413 = vmatprep.subr.bf16.mxu0 %v2352
    %2414 = vmatpush1.bf16.msra.mxu0 %v2351
    %2415 = vmatprep.subr.bf16.mxu0 %v2356
    %2416 = vmatpush1.bf16.msra.mxu0 %v2355
    %2417 = vmatprep.subr.bf16.mxu0 %v2360
    %2418 = vmatpush1.bf16.msra.mxu0 %v2359
    %2419 = vmatprep.subr.bf16.mxu0 %v2364
    %2420 = vmatpush1.bf16.msra.mxu0 %v2363
    %2421 = vmatprep.subr.bf16.mxu0 %v2368
    %2422 = vmatpush1.bf16.msra.mxu0 %v2367
    %2423 = vmatprep.subr.bf16.mxu0 %v2372
    %2424 = vmatpush1.bf16.msra.mxu0 %v2371
    %2425 = vmatprep.subr.bf16.mxu0 %v2376
    %2426 = vmatpush1.bf16.msra.mxu0 %v2375
    %2427 = vmatprep.subr.bf16.mxu0 0
    %2428 = vmatpush1.bf16.msra.mxu0 0
    %2429 = vmatprep.subr.bf16.mxu0 0
    %2430 = vmatpush1.bf16.msra.mxu0 0
    %2431 = vmatprep.subr.bf16.mxu0 0
    %2432 = vmatpush1.bf16.msra.mxu0 0
    %2433 = vmatprep.subr.bf16.mxu0 0
    %2434 = vmatpush1.bf16.msra.mxu0 0
    %2435 = vmatprep.subr.bf16.mxu0 0
    %2436 = vmatpush1.bf16.msra.mxu0 0
    %2437 = vmatprep.subr.bf16.mxu0 0
    %2438 = vmatpush1.bf16.msra.mxu0 0
    %2439 = vmatprep.subr.bf16.mxu0 0
    %2440 = vmatpush1.bf16.msra.mxu0 0
    %2441 = vmatprep.subr.bf16.mxu0 0
    %2442 = vmatpush1.bf16.msra.mxu0 0
    %2443 = vmatprep.mubr.bf16.mxu0 0
    %2444 = vmatmul.mubr.bf16.gmra.mrb[0].mxu0 0
    %v2445 = vpop.f32.mrb[0].mxu0
    %v2446 = vadd.f32 0.0, %v2445
    %v2447 = vpop.f32.mrb[0].mxu0
    %v2448 = vadd.f32 0.0, %v2447
    %v2449 = vpop.f32.mrb[0].mxu0
    %v2450 = vpop.f32.mrb[0].mxu0
    %2451 = vdwg.mxu0
    %2452 = vmatprep.subr.bf16.mxu0 %v2350
    %2453 = vmatpush1.bf16.msra.mxu0 %v2349
    %2454 = vmatprep.subr.bf16.mxu0 %v2354
    %2455 = vmatpush1.bf16.msra.mxu0 %v2353
    %2456 = vmatprep.subr.bf16.mxu0 %v2358
    %2457 = vmatpush1.bf16.msra.mxu0 %v2357
    %2458 = vmatprep.subr.bf16.mxu0 %v2362
    %2459 = vmatpush1.bf16.msra.mxu0 %v2361
    %2460 = vmatprep.subr.bf16.mxu0 %v2366
    %2461 = vmatpush1.bf16.msra.mxu0 %v2365
    %2462 = vmatprep.subr.bf16.mxu0 %v2370
    %2463 = vmatpush1.bf16.msra.mxu0 %v2369
    %2464 = vmatprep.subr.bf16.mxu0 %v2374
    %2465 = vmatpush1.bf16.msra.mxu0 %v2373
    %2466 = vmatprep.subr.bf16.mxu0 %v2378
    %2467 = vmatpush1.bf16.msra.mxu0 %v2377
    %2468 = vmatprep.subr.bf16.mxu0 0
    %2469 = vmatpush1.bf16.msra.mxu0 0
    %2470 = vmatprep.subr.bf16.mxu0 0
    %2471 = vmatpush1.bf16.msra.mxu0 0
    %2472 = vmatprep.subr.bf16.mxu0 0
    %2473 = vmatpush1.bf16.msra.mxu0 0
    %2474 = vmatprep.subr.bf16.mxu0 0
    %2475 = vmatpush1.bf16.msra.mxu0 0
    %2476 = vmatprep.subr.bf16.mxu0 0
    %2477 = vmatpush1.bf16.msra.mxu0 0
    %2478 = vmatprep.subr.bf16.mxu0 0
    %2479 = vmatpush1.bf16.msra.mxu0 0
    %2480 = vmatprep.subr.bf16.mxu0 0
    %2481 = vmatpush1.bf16.msra.mxu0 0
    %2482 = vmatprep.subr.bf16.mxu0 0
    %2483 = vmatpush1.bf16.msra.mxu0 0
    %2484 = vmatprep.mubr.bf16.mxu0 0
    %2485 = vmatmul.mubr.bf16.gmra.mrb[0].mxu0 0
    %v2486 = vpop.f32.mrb[0].mxu0
    %v2487 = vadd.f32 0.0, %v2486
    %v2488 = vpop.f32.mrb[0].mxu0
    %v2489 = vadd.f32 0.0, %v2488
    %v2490 = vpop.f32.mrb[0].mxu0
    %v2491 = vpop.f32.mrb[0].mxu0
    %2492 = vdwg.mxu0
    %v2493 = vadd.f32 %v2247, %v2446
    %v2494 = vadd.f32 %v2248, %v2448
    %v2495 = vadd.f32 %v2249, %v2487
    %v2496 = vadd.f32 %v2250, %v2489
    %v2497 = vxor.u32 %v2493, 2147483648
    %v2498 = vmul.f32 %v2497, 1.442695
    %v2499 = vpow.pop %v2498
    %v2500 = vadd.f32 %v2499, 1.0
    %v2501 = vrcp.pop %v2500
    %v2502 = vmul.f32 1.0, %v2501
    %v2503 = vxor.u32 %v2494, 2147483648
    %v2504 = vmul.f32 %v2503, 1.442695
    %v2505 = vpow.pop %v2504
    %v2506 = vadd.f32 %v2505, 1.0
    %v2507 = vrcp.pop %v2506
    %v2508 = vmul.f32 1.0, %v2507
    %v2509 = vtanh.pop %v2495
    %v2510 = vxor.u32 %v2496, 2147483648
    %v2511 = vmul.f32 %v2510, 1.442695
    %v2512 = vpow.pop %v2511
    %v2513 = vadd.f32 %v2512, 1.0
    %v2514 = vrcp.pop %v2513
    %v2515 = vmul.f32 1.0, %v2514
    %v2516 = vmul.f32 %v2508, 0.0
    %v2517 = vmul.f32 %v2502, %v2509
    %v2518 = vadd.f32 %v2516, %v2517
    %v2519 = vtanh.pop %v2518
    %v2520 = vmul.f32 %v2515, %v2519
    %v2521 = vld [vmem:[%s1094] sm:$0xff]
    %v2522 = vld [vmem:[%s1094 + $0x8] sm:$0xff]
    %v2523 = vld [vmem:[%s1094 + $0x10] sm:$0xff]
    %v2524 = vld [vmem:[%s1094 + $0x18] sm:$0xff]
    %v2525 = vpack.c.bf16 %v2520, %v2520
    %2526 = vmatprep.subr.bf16.mxu0 %v2348
    %2527 = vmatpush1.bf16.msra.mxu0 %v2347
    %2528 = vmatprep.subr.bf16.mxu0 %v2352
    %2529 = vmatpush1.bf16.msra.mxu0 %v2351
    %2530 = vmatprep.subr.bf16.mxu0 %v2356
    %2531 = vmatpush1.bf16.msra.mxu0 %v2355
    %2532 = vmatprep.subr.bf16.mxu0 %v2360
    %2533 = vmatpush1.bf16.msra.mxu0 %v2359
    %2534 = vmatprep.subr.bf16.mxu0 %v2364
    %2535 = vmatpush1.bf16.msra.mxu0 %v2363
    %2536 = vmatprep.subr.bf16.mxu0 %v2368
    %2537 = vmatpush1.bf16.msra.mxu0 %v2367
    %2538 = vmatprep.subr.bf16.mxu0 %v2372
    %2539 = vmatpush1.bf16.msra.mxu0 %v2371
    %2540 = vmatprep.subr.bf16.mxu0 %v2376
    %2541 = vmatpush1.bf16.msra.mxu0 %v2375
    %2542 = vmatprep.subr.bf16.mxu0 0
    %2543 = vmatpush1.bf16.msra.mxu0 0
    %2544 = vmatprep.subr.bf16.mxu0 0
    %2545 = vmatpush1.bf16.msra.mxu0 0
    %2546 = vmatprep.subr.bf16.mxu0 0
    %2547 = vmatpush1.bf16.msra.mxu0 0
    %2548 = vmatprep.subr.bf16.mxu0 0
    %2549 = vmatpush1.bf16.msra.mxu0 0
    %2550 = vmatprep.subr.bf16.mxu0 0
    %2551 = vmatpush1.bf16.msra.mxu0 0
    %2552 = vmatprep.subr.bf16.mxu0 0
    %2553 = vmatpush1.bf16.msra.mxu0 0
    %2554 = vmatprep.subr.bf16.mxu0 0
    %2555 = vmatpush1.bf16.msra.mxu0 0
    %2556 = vmatprep.subr.bf16.mxu0 0
    %2557 = vmatpush1.bf16.msra.mxu0 0
    %2558 = vmatprep.mubr.bf16.mxu0 0
    %2559 = vmatmul.mubr.bf16.gmra.mrb[0].mxu0 %v2525
    %v2560 = vpop.f32.mrb[0].mxu0
    %v2561 = vadd.f32 0.0, %v2560
    %v2562 = vpop.f32.mrb[0].mxu0
    %v2563 = vadd.f32 0.0, %v2562
    %v2564 = vpop.f32.mrb[0].mxu0
    %v2565 = vpop.f32.mrb[0].mxu0
    %2566 = vdwg.mxu0
    %2567 = vmatprep.subr.bf16.mxu0 %v2350
    %2568 = vmatpush1.bf16.msra.mxu0 %v2349
    %2569 = vmatprep.subr.bf16.mxu0 %v2354
    %2570 = vmatpush1.bf16.msra.mxu0 %v2353
    %2571 = vmatprep.subr.bf16.mxu0 %v2358
    %2572 = vmatpush1.bf16.msra.mxu0 %v2357
    %2573 = vmatprep.subr.bf16.mxu0 %v2362
    %2574 = vmatpush1.bf16.msra.mxu0 %v2361
    %2575 = vmatprep.subr.bf16.mxu0 %v2366
    %2576 = vmatpush1.bf16.msra.mxu0 %v2365
    %2577 = vmatprep.subr.bf16.mxu0 %v2370
    %2578 = vmatpush1.bf16.msra.mxu0 %v2369
    %2579 = vmatprep.subr.bf16.mxu0 %v2374
    %2580 = vmatpush1.bf16.msra.mxu0 %v2373
    %2581 = vmatprep.subr.bf16.mxu0 %v2378
    %2582 = vmatpush1.bf16.msra.mxu0 %v2377
    %2583 = vmatprep.subr.bf16.mxu0 0
    %2584 = vmatpush1.bf16.msra.mxu0 0
    %2585 = vmatprep.subr.bf16.mxu0 0
    %2586 = vmatpush1.bf16.msra.mxu0 0
    %2587 = vmatprep.subr.bf16.mxu0 0
    %2588 = vmatpush1.bf16.msra.mxu0 0
    %2589 = vmatprep.subr.bf16.mxu0 0
    %2590 = vmatpush1.bf16.msra.mxu0 0
    %2591 = vmatprep.subr.bf16.mxu0 0
    %2592 = vmatpush1.bf16.msra.mxu0 0
    %2593 = vmatprep.subr.bf16.mxu0 0
    %2594 = vmatpush1.bf16.msra.mxu0 0
    %2595 = vmatprep.subr.bf16.mxu0 0
    %2596 = vmatpush1.bf16.msra.mxu0 0
    %2597 = vmatprep.subr.bf16.mxu0 0
    %2598 = vmatpush1.bf16.msra.mxu0 0
    %2599 = vmatprep.mubr.bf16.mxu0 0
    %2600 = vmatmul.mubr.bf16.gmra.mrb[0].mxu0 %v2525
    %v2601 = vpop.f32.mrb[0].mxu0
    %v2602 = vadd.f32 0.0, %v2601
    %v2603 = vpop.f32.mrb[0].mxu0
    %v2604 = vadd.f32 0.0, %v2603
    %v2605 = vpop.f32.mrb[0].mxu0
    %v2606 = vpop.f32.mrb[0].mxu0
    %2607 = vdwg.mxu0
    %v2608 = vadd.f32 %v2521, %v2561
    %v2609 = vadd.f32 %v2522, %v2563
    %v2610 = vadd.f32 %v2523, %v2602
    %v2611 = vadd.f32 %v2524, %v2604
    %v2612 = vxor.u32 %v2608, 2147483648
    %v2613 = vmul.f32 %v2612, 1.442695
    %v2614 = vpow.pop %v2613
    %v2615 = vadd.f32 %v2614, 1.0
    %v2616 = vrcp.pop %v2615
    %v2617 = vmul.f32 1.0, %v2616
    %v2618 = vxor.u32 %v2609, 2147483648
    %v2619 = vmul.f32 %v2618, 1.442695
    %v2620 = vpow.pop %v2619
    %v2621 = vadd.f32 %v2620, 1.0
    %v2622 = vrcp.pop %v2621
    %v2623 = vmul.f32 1.0, %v2622
    %v2624 = vtanh.pop %v2610
    %v2625 = vxor.u32 %v2611, 2147483648
    %v2626 = vmul.f32 %v2625, 1.442695
    %v2627 = vpow.pop %v2626
    %v2628 = vadd.f32 %v2627, 1.0
    %v2629 = vrcp.pop %v2628
    %v2630 = vmul.f32 1.0, %v2629
    %v2631 = vmul.f32 %v2623, %v2518
    %v2632 = vmul.f32 %v2617, %v2624
    %v2633 = vadd.f32 %v2631, %v2632
    %v2634 = vtanh.pop %v2633
    %v2635 = vmul.f32 %v2630, %v2634
    %v2636 = vld [vmem:[%s1212] sm:$0xff]
    %v2637 = vld [vmem:[%s1212 + $0x8] sm:$0xff]
    %v2638 = vld [vmem:[%s1212 + $0x10] sm:$0xff]
    %v2639 = vld [vmem:[%s1212 + $0x18] sm:$0xff]
    %v2640 = vpack.c.bf16 %v2635, %v2635
    %2641 = vmatprep.subr.bf16.mxu0 %v2348
    %2642 = vmatpush1.bf16.msra.mxu0 %v2347
    %2643 = vmatprep.subr.bf16.mxu0 %v2352
    %2644 = vmatpush1.bf16.msra.mxu0 %v2351
    %2645 = vmatprep.subr.bf16.mxu0 %v2356
    %2646 = vmatpush1.bf16.msra.mxu0 %v2355
    %2647 = vmatprep.subr.bf16.mxu0 %v2360
    %2648 = vmatpush1.bf16.msra.mxu0 %v2359
    %2649 = vmatprep.subr.bf16.mxu0 %v2364
    %2650 = vmatpush1.bf16.msra.mxu0 %v2363
    %2651 = vmatprep.subr.bf16.mxu0 %v2368
    %2652 = vmatpush1.bf16.msra.mxu0 %v2367
    %2653 = vmatprep.subr.bf16.mxu0 %v2372
    %2654 = vmatpush1.bf16.msra.mxu0 %v2371
    %2655 = vmatprep.subr.bf16.mxu0 %v2376
    %2656 = vmatpush1.bf16.msra.mxu0 %v2375
    %2657 = vmatprep.subr.bf16.mxu0 0
    %2658 = vmatpush1.bf16.msra.mxu0 0
    %2659 = vmatprep.subr.bf16.mxu0 0
    %2660 = vmatpush1.bf16.msra.mxu0 0
    %2661 = vmatprep.subr.bf16.mxu0 0
    %2662 = vmatpush1.bf16.msra.mxu0 0
    %2663 = vmatprep.subr.bf16.mxu0 0
    %2664 = vmatpush1.bf16.msra.mxu0 0
    %2665 = vmatprep.subr.bf16.mxu0 0
    %2666 = vmatpush1.bf16.msra.mxu0 0
    %2667 = vmatprep.subr.bf16.mxu0 0
    %2668 = vmatpush1.bf16.msra.mxu0 0
    %2669 = vmatprep.subr.bf16.mxu0 0
    %2670 = vmatpush1.bf16.msra.mxu0 0
    %2671 = vmatprep.subr.bf16.mxu0 0
    %2672 = vmatpush1.bf16.msra.mxu0 0
    %2673 = vmatprep.mubr.bf16.mxu0 0
    %2674 = vmatmul.mubr.bf16.gmra.mrb[0].mxu0 %v2640
    %v2675 = vpop.f32.mrb[0].mxu0
    %v2676 = vadd.f32 0.0, %v2675
    %v2677 = vpop.f32.mrb[0].mxu0
    %v2678 = vadd.f32 0.0, %v2677
    %v2679 = vpop.f32.mrb[0].mxu0
    %v2680 = vpop.f32.mrb[0].mxu0
    %2681 = vdwg.mxu0
    %2682 = vmatprep.subr.bf16.mxu0 %v2350
    %2683 = vmatpush1.bf16.msra.mxu0 %v2349
    %2684 = vmatprep.subr.bf16.mxu0 %v2354
    %2685 = vmatpush1.bf16.msra.mxu0 %v2353
    %2686 = vmatprep.subr.bf16.mxu0 %v2358
    %2687 = vmatpush1.bf16.msra.mxu0 %v2357
    %2688 = vmatprep.subr.bf16.mxu0 %v2362
    %2689 = vmatpush1.bf16.msra.mxu0 %v2361
    %2690 = vmatprep.subr.bf16.mxu0 %v2366
    %2691 = vmatpush1.bf16.msra.mxu0 %v2365
    %2692 = vmatprep.subr.bf16.mxu0 %v2370
    %2693 = vmatpush1.bf16.msra.mxu0 %v2369
    %2694 = vmatprep.subr.bf16.mxu0 %v2374
    %2695 = vmatpush1.bf16.msra.mxu0 %v2373
    %2696 = vmatprep.subr.bf16.mxu0 %v2378
    %2697 = vmatpush1.bf16.msra.mxu0 %v2377
    %2698 = vmatprep.subr.bf16.mxu0 0
    %2699 = vmatpush1.bf16.msra.mxu0 0
    %2700 = vmatprep.subr.bf16.mxu0 0
    %2701 = vmatpush1.bf16.msra.mxu0 0
    %2702 = vmatprep.subr.bf16.mxu0 0
    %2703 = vmatpush1.bf16.msra.mxu0 0
    %2704 = vmatprep.subr.bf16.mxu0 0
    %2705 = vmatpush1.bf16.msra.mxu0 0
    %2706 = vmatprep.subr.bf16.mxu0 0
    %2707 = vmatpush1.bf16.msra.mxu0 0
    %2708 = vmatprep.subr.bf16.mxu0 0
    %2709 = vmatpush1.bf16.msra.mxu0 0
    %2710 = vmatprep.subr.bf16.mxu0 0
    %2711 = vmatpush1.bf16.msra.mxu0 0
    %2712 = vmatprep.subr.bf16.mxu0 0
    %2713 = vmatpush1.bf16.msra.mxu0 0
    %2714 = vmatprep.mubr.bf16.mxu0 0
    %2715 = vmatmul.mubr.bf16.gmra.mrb[0].mxu0 %v2640
    %v2716 = vpop.f32.mrb[0].mxu0
    %v2717 = vadd.f32 0.0, %v2716
    %v2718 = vpop.f32.mrb[0].mxu0
    %v2719 = vadd.f32 0.0, %v2718
    %v2720 = vpop.f32.mrb[0].mxu0
    %v2721 = vpop.f32.mrb[0].mxu0
    %2722 = vdwg.mxu0
    %v2723 = vadd.f32 %v2636, %v2676
    %v2724 = vadd.f32 %v2637, %v2678
    %v2725 = vadd.f32 %v2638, %v2717
    %v2726 = vadd.f32 %v2639, %v2719
    %v2727 = vxor.u32 %v2723, 2147483648
    %v2728 = vmul.f32 %v2727, 1.442695
    %v2729 = vpow.pop %v2728
    %v2730 = vadd.f32 %v2729, 1.0
    %v2731 = vrcp.pop %v2730
    %v2732 = vmul.f32 1.0, %v2731
    %v2733 = vxor.u32 %v2724, 2147483648
    %v2734 = vmul.f32 %v2733, 1.442695
    %v2735 = vpow.pop %v2734
    %v2736 = vadd.f32 %v2735, 1.0
    %v2737 = vrcp.pop %v2736
    %v2738 = vmul.f32 1.0, %v2737
    %v2739 = vtanh.pop %v2725
    %v2740 = vxor.u32 %v2726, 2147483648
    %v2741 = vmul.f32 %v2740, 1.442695
    %v2742 = vpow.pop %v2741
    %v2743 = vadd.f32 %v2742, 1.0
    %v2744 = vrcp.pop %v2743
    %v2745 = vmul.f32 1.0, %v2744
    %v2746 = vmul.f32 %v2738, %v2633
    %v2747 = vmul.f32 %v2732, %v2739
    %v2748 = vadd.f32 %v2746, %v2747
    %v2749 = vtanh.pop %v2748
    %v2750 = vmul.f32 %v2745, %v2749
    %v2751 = vld [vmem:[%s1330] sm:$0xff]
    %v2752 = vld [vmem:[%s1330 + $0x8] sm:$0xff]
    %v2753 = vld [vmem:[%s1330 + $0x10] sm:$0xff]
    %v2754 = vld [vmem:[%s1330 + $0x18] sm:$0xff]
    %v2755 = vpack.c.bf16 %v2750, %v2750
    %2756 = vmatprep.subr.bf16.mxu0 %v2348
    %2757 = vmatpush1.bf16.msra.mxu0 %v2347
    %2758 = vmatprep.subr.bf16.mxu0 %v2352
    %2759 = vmatpush1.bf16.msra.mxu0 %v2351
    %2760 = vmatprep.subr.bf16.mxu0 %v2356
    %2761 = vmatpush1.bf16.msra.mxu0 %v2355
    %2762 = vmatprep.subr.bf16.mxu0 %v2360
    %2763 = vmatpush1.bf16.msra.mxu0 %v2359
    %2764 = vmatprep.subr.bf16.mxu0 %v2364
    %2765 = vmatpush1.bf16.msra.mxu0 %v2363
    %2766 = vmatprep.subr.bf16.mxu0 %v2368
    %2767 = vmatpush1.bf16.msra.mxu0 %v2367
    %2768 = vmatprep.subr.bf16.mxu0 %v2372
    %2769 = vmatpush1.bf16.msra.mxu0 %v2371
    %2770 = vmatprep.subr.bf16.mxu0 %v2376
    %2771 = vmatpush1.bf16.msra.mxu0 %v2375
    %2772 = vmatprep.subr.bf16.mxu0 0
    %2773 = vmatpush1.bf16.msra.mxu0 0
    %2774 = vmatprep.subr.bf16.mxu0 0
    %2775 = vmatpush1.bf16.msra.mxu0 0
    %2776 = vmatprep.subr.bf16.mxu0 0
    %2777 = vmatpush1.bf16.msra.mxu0 0
    %2778 = vmatprep.subr.bf16.mxu0 0
    %2779 = vmatpush1.bf16.msra.mxu0 0
    %2780 = vmatprep.subr.bf16.mxu0 0
    %2781 = vmatpush1.bf16.msra.mxu0 0
    %2782 = vmatprep.subr.bf16.mxu0 0
    %2783 = vmatpush1.bf16.msra.mxu0 0
    %2784 = vmatprep.subr.bf16.mxu0 0
    %2785 = vmatpush1.bf16.msra.mxu0 0
    %2786 = vmatprep.subr.bf16.mxu0 0
    %2787 = vmatpush1.bf16.msra.mxu0 0
    %2788 = vmatprep.mubr.bf16.mxu0 0
    %2789 = vmatmul.mubr.bf16.gmra.mrb[0].mxu0 %v2755
    %v2790 = vpop.f32.mrb[0].mxu0
    %v2791 = vadd.f32 0.0, %v2790
    %v2792 = vpop.f32.mrb[0].mxu0
    %v2793 = vadd.f32 0.0, %v2792
    %v2794 = vpop.f32.mrb[0].mxu0
    %v2795 = vpop.f32.mrb[0].mxu0
    %2796 = vdwg.mxu0
    %2797 = vmatprep.subr.bf16.mxu0 %v2350
    %2798 = vmatpush1.bf16.msra.mxu0 %v2349
    %2799 = vmatprep.subr.bf16.mxu0 %v2354
    %2800 = vmatpush1.bf16.msra.mxu0 %v2353
    %2801 = vmatprep.subr.bf16.mxu0 %v2358
    %2802 = vmatpush1.bf16.msra.mxu0 %v2357
    %2803 = vmatprep.subr.bf16.mxu0 %v2362
    %2804 = vmatpush1.bf16.msra.mxu0 %v2361
    %2805 = vmatprep.subr.bf16.mxu0 %v2366
    %2806 = vmatpush1.bf16.msra.mxu0 %v2365
    %2807 = vmatprep.subr.bf16.mxu0 %v2370
    %2808 = vmatpush1.bf16.msra.mxu0 %v2369
    %2809 = vmatprep.subr.bf16.mxu0 %v2374
    %2810 = vmatpush1.bf16.msra.mxu0 %v2373
    %2811 = vmatprep.subr.bf16.mxu0 %v2378
    %2812 = vmatpush1.bf16.msra.mxu0 %v2377
    %2813 = vmatprep.subr.bf16.mxu0 0
    %2814 = vmatpush1.bf16.msra.mxu0 0
    %2815 = vmatprep.subr.bf16.mxu0 0
    %2816 = vmatpush1.bf16.msra.mxu0 0
    %2817 = vmatprep.subr.bf16.mxu0 0
    %2818 = vmatpush1.bf16.msra.mxu0 0
    %2819 = vmatprep.subr.bf16.mxu0 0
    %2820 = vmatpush1.bf16.msra.mxu0 0
    %2821 = vmatprep.subr.bf16.mxu0 0
    %2822 = vmatpush1.bf16.msra.mxu0 0
    %2823 = vmatprep.subr.bf16.mxu0 0
    %2824 = vmatpush1.bf16.msra.mxu0 0
    %2825 = vmatprep.subr.bf16.mxu0 0
    %2826 = vmatpush1.bf16.msra.mxu0 0
    %2827 = vmatprep.subr.bf16.mxu0 0
    %2828 = vmatpush1.bf16.msra.mxu0 0
    %2829 = vmatprep.mubr.bf16.mxu0 0
    %2830 = vmatmul.mubr.bf16.gmra.mrb[0].mxu0 %v2755
    %v2831 = vpop.f32.mrb[0].mxu0
    %v2832 = vadd.f32 0.0, %v2831
    %v2833 = vpop.f32.mrb[0].mxu0
    %v2834 = vadd.f32 0.0, %v2833
    %v2835 = vpop.f32.mrb[0].mxu0
    %v2836 = vpop.f32.mrb[0].mxu0
    %2837 = vdwg.mxu0
    %v2838 = vadd.f32 %v2751, %v2791
    %v2839 = vadd.f32 %v2752, %v2793
    %v2840 = vadd.f32 %v2753, %v2832
    %v2841 = vadd.f32 %v2754, %v2834
    %v2842 = vxor.u32 %v2838, 2147483648
    %v2843 = vmul.f32 %v2842, 1.442695
    %v2844 = vpow.pop %v2843
    %v2845 = vadd.f32 %v2844, 1.0
    %v2846 = vrcp.pop %v2845
    %v2847 = vmul.f32 1.0, %v2846
    %v2848 = vxor.u32 %v2839, 2147483648
    %v2849 = vmul.f32 %v2848, 1.442695
    %v2850 = vpow.pop %v2849
    %v2851 = vadd.f32 %v2850, 1.0
    %v2852 = vrcp.pop %v2851
    %v2853 = vmul.f32 1.0, %v2852
    %v2854 = vtanh.pop %v2840
    %v2855 = vxor.u32 %v2841, 2147483648
    %v2856 = vmul.f32 %v2855, 1.442695
    %v2857 = vpow.pop %v2856
    %v2858 = vadd.f32 %v2857, 1.0
    %v2859 = vrcp.pop %v2858
    %v2860 = vmul.f32 1.0, %v2859
    %v2861 = vmul.f32 %v2853, %v2748
    %v2862 = vmul.f32 %v2847, %v2854
    %v2863 = vadd.f32 %v2861, %v2862
    %v2864 = vtanh.pop %v2863
    %v2865 = vmul.f32 %v2860, %v2864
    %v2866 = vld [vmem:[%s1448] sm:$0xff]
    %v2867 = vld [vmem:[%s1448 + $0x8] sm:$0xff]
    %v2868 = vld [vmem:[%s1448 + $0x10] sm:$0xff]
    %v2869 = vld [vmem:[%s1448 + $0x18] sm:$0xff]
    %v2870 = vpack.c.bf16 %v2865, %v2865
    %2871 = vmatprep.subr.bf16.mxu0 %v2348
    %2872 = vmatpush1.bf16.msra.mxu0 %v2347
    %2873 = vmatprep.subr.bf16.mxu0 %v2352
    %2874 = vmatpush1.bf16.msra.mxu0 %v2351
    %2875 = vmatprep.subr.bf16.mxu0 %v2356
    %2876 = vmatpush1.bf16.msra.mxu0 %v2355
    %2877 = vmatprep.subr.bf16.mxu0 %v2360
    %2878 = vmatpush1.bf16.msra.mxu0 %v2359
    %2879 = vmatprep.subr.bf16.mxu0 %v2364
    %2880 = vmatpush1.bf16.msra.mxu0 %v2363
    %2881 = vmatprep.subr.bf16.mxu0 %v2368
    %2882 = vmatpush1.bf16.msra.mxu0 %v2367
    %2883 = vmatprep.subr.bf16.mxu0 %v2372
    %2884 = vmatpush1.bf16.msra.mxu0 %v2371
    %2885 = vmatprep.subr.bf16.mxu0 %v2376
    %2886 = vmatpush1.bf16.msra.mxu0 %v2375
    %2887 = vmatprep.subr.bf16.mxu0 0
    %2888 = vmatpush1.bf16.msra.mxu0 0
    %2889 = vmatprep.subr.bf16.mxu0 0
    %2890 = vmatpush1.bf16.msra.mxu0 0
    %2891 = vmatprep.subr.bf16.mxu0 0
    %2892 = vmatpush1.bf16.msra.mxu0 0
    %2893 = vmatprep.subr.bf16.mxu0 0
    %2894 = vmatpush1.bf16.msra.mxu0 0
    %2895 = vmatprep.subr.bf16.mxu0 0
    %2896 = vmatpush1.bf16.msra.mxu0 0
    %2897 = vmatprep.subr.bf16.mxu0 0
    %2898 = vmatpush1.bf16.msra.mxu0 0
    %2899 = vmatprep.subr.bf16.mxu0 0
    %2900 = vmatpush1.bf16.msra.mxu0 0
    %2901 = vmatprep.subr.bf16.mxu0 0
    %2902 = vmatpush1.bf16.msra.mxu0 0
    %2903 = vmatprep.mubr.bf16.mxu0 0
    %2904 = vmatmul.mubr.bf16.gmra.mrb[0].mxu0 %v2870
    %v2905 = vpop.f32.mrb[0].mxu0
    %v2906 = vadd.f32 0.0, %v2905
    %v2907 = vpop.f32.mrb[0].mxu0
    %v2908 = vadd.f32 0.0, %v2907
    %v2909 = vpop.f32.mrb[0].mxu0
    %v2910 = vpop.f32.mrb[0].mxu0
    %2911 = vdwg.mxu0
    %2912 = vmatprep.subr.bf16.mxu0 %v2350
    %2913 = vmatpush1.bf16.msra.mxu0 %v2349
    %2914 = vmatprep.subr.bf16.mxu0 %v2354
    %2915 = vmatpush1.bf16.msra.mxu0 %v2353
    %2916 = vmatprep.subr.bf16.mxu0 %v2358
    %2917 = vmatpush1.bf16.msra.mxu0 %v2357
    %2918 = vmatprep.subr.bf16.mxu0 %v2362
    %2919 = vmatpush1.bf16.msra.mxu0 %v2361
    %2920 = vmatprep.subr.bf16.mxu0 %v2366
    %2921 = vmatpush1.bf16.msra.mxu0 %v2365
    %2922 = vmatprep.subr.bf16.mxu0 %v2370
    %2923 = vmatpush1.bf16.msra.mxu0 %v2369
    %2924 = vmatprep.subr.bf16.mxu0 %v2374
    %2925 = vmatpush1.bf16.msra.mxu0 %v2373
    %2926 = vmatprep.subr.bf16.mxu0 %v2378
    %2927 = vmatpush1.bf16.msra.mxu0 %v2377
    %2928 = vmatprep.subr.bf16.mxu0 0
    %2929 = vmatpush1.bf16.msra.mxu0 0
    %2930 = vmatprep.subr.bf16.mxu0 0
    %2931 = vmatpush1.bf16.msra.mxu0 0
    %2932 = vmatprep.subr.bf16.mxu0 0
    %2933 = vmatpush1.bf16.msra.mxu0 0
    %2934 = vmatprep.subr.bf16.mxu0 0
    %2935 = vmatpush1.bf16.msra.mxu0 0
    %2936 = vmatprep.subr.bf16.mxu0 0
    %2937 = vmatpush1.bf16.msra.mxu0 0
    %2938 = vmatprep.subr.bf16.mxu0 0
    %2939 = vmatpush1.bf16.msra.mxu0 0
    %2940 = vmatprep.subr.bf16.mxu0 0
    %2941 = vmatpush1.bf16.msra.mxu0 0
    %2942 = vmatprep.subr.bf16.mxu0 0
    %2943 = vmatpush1.bf16.msra.mxu0 0
    %2944 = vmatprep.mubr.bf16.mxu0 0
    %2945 = vmatmul.mubr.bf16.gmra.mrb[0].mxu0 %v2870
    %v2946 = vpop.f32.mrb[0].mxu0
    %v2947 = vadd.f32 0.0, %v2946
    %v2948 = vpop.f32.mrb[0].mxu0
    %v2949 = vadd.f32 0.0, %v2948
    %v2950 = vpop.f32.mrb[0].mxu0
    %v2951 = vpop.f32.mrb[0].mxu0
    %2952 = vdwg.mxu0
    %v2953 = vadd.f32 %v2866, %v2906
    %v2954 = vadd.f32 %v2867, %v2908
    %v2955 = vadd.f32 %v2868, %v2947
    %v2956 = vadd.f32 %v2869, %v2949
    %v2957 = vxor.u32 %v2953, 2147483648
    %v2958 = vmul.f32 %v2957, 1.442695
    %v2959 = vpow.pop %v2958
    %v2960 = vadd.f32 %v2959, 1.0
    %v2961 = vrcp.pop %v2960
    %v2962 = vmul.f32 1.0, %v2961
    %v2963 = vxor.u32 %v2954, 2147483648
    %v2964 = vmul.f32 %v2963, 1.442695
    %v2965 = vpow.pop %v2964
    %v2966 = vadd.f32 %v2965, 1.0
    %v2967 = vrcp.pop %v2966
    %v2968 = vmul.f32 1.0, %v2967
    %v2969 = vtanh.pop %v2955
    %v2970 = vxor.u32 %v2956, 2147483648
    %v2971 = vmul.f32 %v2970, 1.442695
    %v2972 = vpow.pop %v2971
    %v2973 = vadd.f32 %v2972, 1.0
    %v2974 = vrcp.pop %v2973
    %v2975 = vmul.f32 1.0, %v2974
    %v2976 = vmul.f32 %v2968, %v2863
    %v2977 = vmul.f32 %v2962, %v2969
    %v2978 = vadd.f32 %v2976, %v2977
    %v2979 = vtanh.pop %v2978
    %v2980 = vmul.f32 %v2975, %v2979
    %v2981 = vld [vmem:[%s1566] sm:$0xff]
    %v2982 = vld [vmem:[%s1566 + $0x8] sm:$0xff]
    %v2983 = vld [vmem:[%s1566 + $0x10] sm:$0xff]
    %v2984 = vld [vmem:[%s1566 + $0x18] sm:$0xff]
    %v2985 = vpack.c.bf16 %v2980, %v2980
    %2986 = vmatprep.subr.bf16.mxu0 %v2348
    %2987 = vmatpush1.bf16.msra.mxu0 %v2347
    %2988 = vmatprep.subr.bf16.mxu0 %v2352
    %2989 = vmatpush1.bf16.msra.mxu0 %v2351
    %2990 = vmatprep.subr.bf16.mxu0 %v2356
    %2991 = vmatpush1.bf16.msra.mxu0 %v2355
    %2992 = vmatprep.subr.bf16.mxu0 %v2360
    %2993 = vmatpush1.bf16.msra.mxu0 %v2359
    %2994 = vmatprep.subr.bf16.mxu0 %v2364
    %2995 = vmatpush1.bf16.msra.mxu0 %v2363
    %2996 = vmatprep.subr.bf16.mxu0 %v2368
    %2997 = vmatpush1.bf16.msra.mxu0 %v2367
    %2998 = vmatprep.subr.bf16.mxu0 %v2372
    %2999 = vmatpush1.bf16.msra.mxu0 %v2371
    %3000 = vmatprep.subr.bf16.mxu0 %v2376
    %3001 = vmatpush1.bf16.msra.mxu0 %v2375
    %3002 = vmatprep.subr.bf16.mxu0 0
    %3003 = vmatpush1.bf16.msra.mxu0 0
    %3004 = vmatprep.subr.bf16.mxu0 0
    %3005 = vmatpush1.bf16.msra.mxu0 0
    %3006 = vmatprep.subr.bf16.mxu0 0
    %3007 = vmatpush1.bf16.msra.mxu0 0
    %3008 = vmatprep.subr.bf16.mxu0 0
    %3009 = vmatpush1.bf16.msra.mxu0 0
    %3010 = vmatprep.subr.bf16.mxu0 0
    %3011 = vmatpush1.bf16.msra.mxu0 0
    %3012 = vmatprep.subr.bf16.mxu0 0
    %3013 = vmatpush1.bf16.msra.mxu0 0
    %3014 = vmatprep.subr.bf16.mxu0 0
    %3015 = vmatpush1.bf16.msra.mxu0 0
    %3016 = vmatprep.subr.bf16.mxu0 0
    %3017 = vmatpush1.bf16.msra.mxu0 0
    %3018 = vmatprep.mubr.bf16.mxu0 0
    %3019 = vmatmul.mubr.bf16.gmra.mrb[0].mxu0 %v2985
    %v3020 = vpop.f32.mrb[0].mxu0
    %v3021 = vadd.f32 0.0, %v3020
    %v3022 = vpop.f32.mrb[0].mxu0
    %v3023 = vadd.f32 0.0, %v3022
    %v3024 = vpop.f32.mrb[0].mxu0
    %v3025 = vpop.f32.mrb[0].mxu0
    %3026 = vdwg.mxu0
    %3027 = vmatprep.subr.bf16.mxu0 %v2350
    %3028 = vmatpush1.bf16.msra.mxu0 %v2349
    %3029 = vmatprep.subr.bf16.mxu0 %v2354
    %3030 = vmatpush1.bf16.msra.mxu0 %v2353
    %3031 = vmatprep.subr.bf16.mxu0 %v2358
    %3032 = vmatpush1.bf16.msra.mxu0 %v2357
    %3033 = vmatprep.subr.bf16.mxu0 %v2362
    %3034 = vmatpush1.bf16.msra.mxu0 %v2361
    %3035 = vmatprep.subr.bf16.mxu0 %v2366
    %3036 = vmatpush1.bf16.msra.mxu0 %v2365
    %3037 = vmatprep.subr.bf16.mxu0 %v2370
    %3038 = vmatpush1.bf16.msra.mxu0 %v2369
    %3039 = vmatprep.subr.bf16.mxu0 %v2374
    %3040 = vmatpush1.bf16.msra.mxu0 %v2373
    %3041 = vmatprep.subr.bf16.mxu0 %v2378
    %3042 = vmatpush1.bf16.msra.mxu0 %v2377
    %3043 = vmatprep.subr.bf16.mxu0 0
    %3044 = vmatpush1.bf16.msra.mxu0 0
    %3045 = vmatprep.subr.bf16.mxu0 0
    %3046 = vmatpush1.bf16.msra.mxu0 0
    %3047 = vmatprep.subr.bf16.mxu0 0
    %3048 = vmatpush1.bf16.msra.mxu0 0
    %3049 = vmatprep.subr.bf16.mxu0 0
    %3050 = vmatpush1.bf16.msra.mxu0 0
    %3051 = vmatprep.subr.bf16.mxu0 0
    %3052 = vmatpush1.bf16.msra.mxu0 0
    %3053 = vmatprep.subr.bf16.mxu0 0
    %3054 = vmatpush1.bf16.msra.mxu0 0
    %3055 = vmatprep.subr.bf16.mxu0 0
    %3056 = vmatpush1.bf16.msra.mxu0 0
    %3057 = vmatprep.subr.bf16.mxu0 0
    %3058 = vmatpush1.bf16.msra.mxu0 0
    %3059 = vmatprep.mubr.bf16.mxu0 0
    %3060 = vmatmul.mubr.bf16.gmra.mrb[0].mxu0 %v2985
    %v3061 = vpop.f32.mrb[0].mxu0
    %v3062 = vadd.f32 0.0, %v3061
    %v3063 = vpop.f32.mrb[0].mxu0
    %v3064 = vadd.f32 0.0, %v3063
    %v3065 = vpop.f32.mrb[0].mxu0
    %v3066 = vpop.f32.mrb[0].mxu0
    %3067 = vdwg.mxu0
    %v3068 = vadd.f32 %v2981, %v3021
    %v3069 = vadd.f32 %v2982, %v3023
    %v3070 = vadd.f32 %v2983, %v3062
    %v3071 = vadd.f32 %v2984, %v3064
    %v3072 = vxor.u32 %v3068, 2147483648
    %v3073 = vmul.f32 %v3072, 1.442695
    %v3074 = vpow.pop %v3073
    %v3075 = vadd.f32 %v3074, 1.0
    %v3076 = vrcp.pop %v3075
    %v3077 = vmul.f32 1.0, %v3076
    %v3078 = vxor.u32 %v3069, 2147483648
    %v3079 = vmul.f32 %v3078, 1.442695
    %v3080 = vpow.pop %v3079
    %v3081 = vadd.f32 %v3080, 1.0
    %v3082 = vrcp.pop %v3081
    %v3083 = vmul.f32 1.0, %v3082
    %v3084 = vtanh.pop %v3070
    %v3085 = vxor.u32 %v3071, 2147483648
    %v3086 = vmul.f32 %v3085, 1.442695
    %v3087 = vpow.pop %v3086
    %v3088 = vadd.f32 %v3087, 1.0
    %v3089 = vrcp.pop %v3088
    %v3090 = vmul.f32 1.0, %v3089
    %v3091 = vmul.f32 %v3083, %v2978
    %v3092 = vmul.f32 %v3077, %v3084
    %v3093 = vadd.f32 %v3091, %v3092
    %v3094 = vtanh.pop %v3093
    %v3095 = vmul.f32 %v3090, %v3094
    %v3096 = vld [vmem:[%s1684] sm:$0xff]
    %v3097 = vld [vmem:[%s1684 + $0x8] sm:$0xff]
    %v3098 = vld [vmem:[%s1684 + $0x10] sm:$0xff]
    %v3099 = vld [vmem:[%s1684 + $0x18] sm:$0xff]
    %v3100 = vpack.c.bf16 %v3095, %v3095
    %3101 = vmatprep.subr.bf16.mxu0 %v2348
    %3102 = vmatpush1.bf16.msra.mxu0 %v2347
    %3103 = vmatprep.subr.bf16.mxu0 %v2352
    %3104 = vmatpush1.bf16.msra.mxu0 %v2351
    %3105 = vmatprep.subr.bf16.mxu0 %v2356
    %3106 = vmatpush1.bf16.msra.mxu0 %v2355
    %3107 = vmatprep.subr.bf16.mxu0 %v2360
    %3108 = vmatpush1.bf16.msra.mxu0 %v2359
    %3109 = vmatprep.subr.bf16.mxu0 %v2364
    %3110 = vmatpush1.bf16.msra.mxu0 %v2363
    %3111 = vmatprep.subr.bf16.mxu0 %v2368
    %3112 = vmatpush1.bf16.msra.mxu0 %v2367
    %3113 = vmatprep.subr.bf16.mxu0 %v2372
    %3114 = vmatpush1.bf16.msra.mxu0 %v2371
    %3115 = vmatprep.subr.bf16.mxu0 %v2376
    %3116 = vmatpush1.bf16.msra.mxu0 %v2375
    %3117 = vmatprep.subr.bf16.mxu0 0
    %3118 = vmatpush1.bf16.msra.mxu0 0
    %3119 = vmatprep.subr.bf16.mxu0 0
    %3120 = vmatpush1.bf16.msra.mxu0 0
    %3121 = vmatprep.subr.bf16.mxu0 0
    %3122 = vmatpush1.bf16.msra.mxu0 0
    %3123 = vmatprep.subr.bf16.mxu0 0
    %3124 = vmatpush1.bf16.msra.mxu0 0
    %3125 = vmatprep.subr.bf16.mxu0 0
    %3126 = vmatpush1.bf16.msra.mxu0 0
    %3127 = vmatprep.subr.bf16.mxu0 0
    %3128 = vmatpush1.bf16.msra.mxu0 0
    %3129 = vmatprep.subr.bf16.mxu0 0
    %3130 = vmatpush1.bf16.msra.mxu0 0
    %3131 = vmatprep.subr.bf16.mxu0 0
    %3132 = vmatpush1.bf16.msra.mxu0 0
    %3133 = vmatprep.mubr.bf16.mxu0 0
    %3134 = vmatmul.mubr.bf16.gmra.mrb[0].mxu0 %v3100
    %v3135 = vpop.f32.mrb[0].mxu0
    %v3136 = vadd.f32 0.0, %v3135
    %v3137 = vpop.f32.mrb[0].mxu0
    %v3138 = vadd.f32 0.0, %v3137
    %v3139 = vpop.f32.mrb[0].mxu0
    %v3140 = vpop.f32.mrb[0].mxu0
    %3141 = vdwg.mxu0
    %3142 = vmatprep.subr.bf16.mxu0 %v2350
    %3143 = vmatpush1.bf16.msra.mxu0 %v2349
    %3144 = vmatprep.subr.bf16.mxu0 %v2354
    %3145 = vmatpush1.bf16.msra.mxu0 %v2353
    %3146 = vmatprep.subr.bf16.mxu0 %v2358
    %3147 = vmatpush1.bf16.msra.mxu0 %v2357
    %3148 = vmatprep.subr.bf16.mxu0 %v2362
    %3149 = vmatpush1.bf16.msra.mxu0 %v2361
    %3150 = vmatprep.subr.bf16.mxu0 %v2366
    %3151 = vmatpush1.bf16.msra.mxu0 %v2365
    %3152 = vmatprep.subr.bf16.mxu0 %v2370
    %3153 = vmatpush1.bf16.msra.mxu0 %v2369
    %3154 = vmatprep.subr.bf16.mxu0 %v2374
    %3155 = vmatpush1.bf16.msra.mxu0 %v2373
    %3156 = vmatprep.subr.bf16.mxu0 %v2378
    %3157 = vmatpush1.bf16.msra.mxu0 %v2377
    %3158 = vmatprep.subr.bf16.mxu0 0
    %3159 = vmatpush1.bf16.msra.mxu0 0
    %3160 = vmatprep.subr.bf16.mxu0 0
    %3161 = vmatpush1.bf16.msra.mxu0 0
    %3162 = vmatprep.subr.bf16.mxu0 0
    %3163 = vmatpush1.bf16.msra.mxu0 0
    %3164 = vmatprep.subr.bf16.mxu0 0
    %3165 = vmatpush1.bf16.msra.mxu0 0
    %3166 = vmatprep.subr.bf16.mxu0 0
    %3167 = vmatpush1.bf16.msra.mxu0 0
    %3168 = vmatprep.subr.bf16.mxu0 0
    %3169 = vmatpush1.bf16.msra.mxu0 0
    %3170 = vmatprep.subr.bf16.mxu0 0
    %3171 = vmatpush1.bf16.msra.mxu0 0
    %3172 = vmatprep.subr.bf16.mxu0 0
    %3173 = vmatpush1.bf16.msra.mxu0 0
    %3174 = vmatprep.mubr.bf16.mxu0 0
    %3175 = vmatmul.mubr.bf16.gmra.mrb[0].mxu0 %v3100
    %v3176 = vpop.f32.mrb[0].mxu0
    %v3177 = vadd.f32 0.0, %v3176
    %v3178 = vpop.f32.mrb[0].mxu0
    %v3179 = vadd.f32 0.0, %v3178
    %v3180 = vpop.f32.mrb[0].mxu0
    %v3181 = vpop.f32.mrb[0].mxu0
    %3182 = vdwg.mxu0
    %v3183 = vadd.f32 %v3096, %v3136
    %v3184 = vadd.f32 %v3097, %v3138
    %v3185 = vadd.f32 %v3098, %v3177
    %v3186 = vadd.f32 %v3099, %v3179
    %v3187 = vxor.u32 %v3183, 2147483648
    %v3188 = vmul.f32 %v3187, 1.442695
    %v3189 = vpow.pop %v3188
    %v3190 = vadd.f32 %v3189, 1.0
    %v3191 = vrcp.pop %v3190
    %v3192 = vmul.f32 1.0, %v3191
    %v3193 = vxor.u32 %v3184, 2147483648
    %v3194 = vmul.f32 %v3193, 1.442695
    %v3195 = vpow.pop %v3194
    %v3196 = vadd.f32 %v3195, 1.0
    %v3197 = vrcp.pop %v3196
    %v3198 = vmul.f32 1.0, %v3197
    %v3199 = vtanh.pop %v3185
    %v3200 = vxor.u32 %v3186, 2147483648
    %v3201 = vmul.f32 %v3200, 1.442695
    %v3202 = vpow.pop %v3201
    %v3203 = vadd.f32 %v3202, 1.0
    %v3204 = vrcp.pop %v3203
    %v3205 = vmul.f32 1.0, %v3204
    %v3206 = vmul.f32 %v3198, %v3093
    %v3207 = vmul.f32 %v3192, %v3199
    %v3208 = vadd.f32 %v3206, %v3207
    %v3209 = vtanh.pop %v3208
    %v3210 = vmul.f32 %v3205, %v3209
    %v3211 = vpack.c.bf16 %v3210, %v3210
    %v3212 = vld [vmem:[#allocation12] sm:$0xf]
    %v3213 = vld [vmem:[#allocation12 + $0x4] sm:$0xf]
    %v3214 = vld [vmem:[#allocation12 + $0x8] sm:$0xf]
    %v3215 = vld [vmem:[#allocation12 + $0xc] sm:$0xf]
    %v3216 = vld [vmem:[#allocation12 + $0x10] sm:$0xf]
    %v3217 = vld [vmem:[#allocation12 + $0x14] sm:$0xf]
    %v3218 = vld [vmem:[#allocation12 + $0x18] sm:$0xf]
    %v3219 = vld [vmem:[#allocation12 + $0x1c] sm:$0xf]
    %v3220 = vld [vmem:[#allocation12 + $0x20] sm:$0xf]
    %v3221 = vld [vmem:[#allocation12 + $0x24] sm:$0xf]
    %v3222 = vld [vmem:[#allocation12 + $0x28] sm:$0xf]
    %v3223 = vld [vmem:[#allocation12 + $0x2c] sm:$0xf]
    %v3224 = vld [vmem:[#allocation12 + $0x30] sm:$0xf]
    %v3225 = vld [vmem:[#allocation12 + $0x34] sm:$0xf]
    %v3226 = vld [vmem:[#allocation12 + $0x38] sm:$0xf]
    %v3227 = vld [vmem:[#allocation12 + $0x3c] sm:$0xf]
    %v3228 = vld [vmem:[#allocation14] sm:$0x1]
    %v3230 = vlaneseq
    %v3231 = vshrl.u32 %v3230, 7
    %v3232 = vsub.s32 0, %v3231
    %v3233 = vrot.slane %v3228, %v3232
    %v3251 = vunpack.c.l.b16 %v3212
    %v3252 = vunpack.c.l.b16 %v3213
    %v3253 = vunpack.c.l.b16 %v3214
    %v3254 = vunpack.c.l.b16 %v3215
    %v3255 = vunpack.c.l.b16 %v3216
    %v3256 = vunpack.c.l.b16 %v3217
    %v3257 = vunpack.c.l.b16 %v3218
    %v3258 = vunpack.c.l.b16 %v3219
    %v3259 = vunpack.c.l.b16 %v3220
    %v3260 = vunpack.c.l.b16 %v3221
    %v3261 = vunpack.c.l.b16 %v3222
    %v3262 = vunpack.c.l.b16 %v3223
    %v3263 = vunpack.c.l.b16 %v3224
    %v3264 = vunpack.c.l.b16 %v3225
    %v3265 = vunpack.c.l.b16 %v3226
    %v3266 = vunpack.c.l.b16 %v3227
    %v3267 = vpack.c.b16 %v3252, %v3251
    %v3268 = vpack.c.b16 %v3254, %v3253
    %v3269 = vpack.c.b16 %v3256, %v3255
    %v3270 = vpack.c.b16 %v3258, %v3257
    %v3271 = vpack.c.b16 %v3260, %v3259
    %v3272 = vpack.c.b16 %v3262, %v3261
    %v3273 = vpack.c.b16 %v3264, %v3263
    %v3274 = vpack.c.b16 %v3266, %v3265
    %3283 = vmatprep.subr.bf16.mxu0 0
    %3284 = vmatpush1.bf16.msra.mxu0 %v3267
    %3285 = vmatprep.subr.bf16.mxu0 0
    %3286 = vmatpush1.bf16.msra.mxu0 %v3268
    %3287 = vmatprep.subr.bf16.mxu0 0
    %3288 = vmatpush1.bf16.msra.mxu0 %v3269
    %3289 = vmatprep.subr.bf16.mxu0 0
    %3290 = vmatpush1.bf16.msra.mxu0 %v3270
    %3291 = vmatprep.subr.bf16.mxu0 0
    %3292 = vmatpush1.bf16.msra.mxu0 %v3271
    %3293 = vmatprep.subr.bf16.mxu0 0
    %3294 = vmatpush1.bf16.msra.mxu0 %v3272
    %3295 = vmatprep.subr.bf16.mxu0 0
    %3296 = vmatpush1.bf16.msra.mxu0 %v3273
    %3297 = vmatprep.subr.bf16.mxu0 0
    %3298 = vmatpush1.bf16.msra.mxu0 %v3274
    %3299 = vmatprep.subr.bf16.mxu0 0
    %3300 = vmatpush1.bf16.msra.mxu0 0
    %3301 = vmatprep.subr.bf16.mxu0 0
    %3302 = vmatpush1.bf16.msra.mxu0 0
    %3303 = vmatprep.subr.bf16.mxu0 0
    %3304 = vmatpush1.bf16.msra.mxu0 0
    %3305 = vmatprep.subr.bf16.mxu0 0
    %3306 = vmatpush1.bf16.msra.mxu0 0
    %3307 = vmatprep.subr.bf16.mxu0 0
    %3308 = vmatpush1.bf16.msra.mxu0 0
    %3309 = vmatprep.subr.bf16.mxu0 0
    %3310 = vmatpush1.bf16.msra.mxu0 0
    %3311 = vmatprep.subr.bf16.mxu0 0
    %3312 = vmatpush1.bf16.msra.mxu0 0
    %3313 = vmatprep.subr.bf16.mxu0 0
    %3314 = vmatpush1.bf16.msra.mxu0 0
    %3315 = vmatprep.mubr.bf16.mxu0 0
    %3316 = vmatmul.mubr.bf16.gmra.mrb[0].mxu0 %v3211
    %v3317 = vpop.f32.mrb[0].mxu0
    %v3318 = vadd.f32 %v3233, %v3317
    %v3319 = vpop.f32.mrb[0].mxu0
    %v3320 = vpop.f32.mrb[0].mxu0
    %v3321 = vpop.f32.mrb[0].mxu0
    %3322 = vdwg.mxu0
    %3323 = vst [vmem:[%s13] sm:$0xff] %v3318
    // Predicated region
    $region82: #{cnn_lstm_forward.1} parent=1 // pred_check
      _
    $region83: #{cnn_lstm_forward.1} parent=1 // pred_check_branch
      %3325 = sbr.rel (0) target = $region85
    $region84: #{cnn_lstm_forward.1} parent=1 // pred_region
      _
    $region85: #{cnn_lstm_forward.1} parent=1 // pred_fallthru
      _
    // Predicated region
    $region86: #{cnn_lstm_forward.1} parent=1 // pred_check
      _
    $region87: #{cnn_lstm_forward.1} parent=1 // pred_check_branch
      %3327 = sbr.rel (0) target = $region89
    $region88: #{cnn_lstm_forward.1} parent=1 // pred_region
      _
    $region89: #{cnn_lstm_forward.1} parent=1 // pred_fallthru
      _
    %3328 = vsyncpa [#allocation5], 1
    %3329 = vsyncpa [#allocation7], 1
    %3330 = vsyncpa [#allocation10], 1
    %3331 = vsyncpa [#allocation13], 1

</llo_original>
